<compile_context>
chip_gen: v5e
topology: v5e:2x2
jax: 0.10.0
libtpu: 0.0.40
codegen_flags: <defaults>
</compile_context>

<pallas_src>
import jax
import jax.numpy as jnp
from jax.experimental import pallas as pl
from jax.experimental.pallas import tpu as pltpu

# ----- problem sizes (small shapes consistent with the module interface) -----
B = 2                         # batch of image pairs
C_IN = 3                      # channels (spec is [b, 3, 224, 224]; spatially shrunk)
H = W = 16
KH = KW = 3
K = C_IN * KH * KW            # 27 im2col features
K_PAD = 32                    # zero-padded im2col depth
HW = H * W                    # 256 spatial positions
NIMG = 2 * B                  # both images of every pair stacked along batch
ROWS = NIMG * HW              # 1024 im2col rows
C_CONV = 32                   # stand-in backbone conv width
FEAT = 1000                   # resnet18 fc out_features
FEAT_PAD = 1024               # lane-dense padding (pad cols/rows are exactly zero)
COMB = 2 * FEAT_PAD           # padded "combined_features" width (2048)
MLP_DIMS = [2 * FEAT, 512, 256, 128, 64, 32, 1]
BN_EPS = 1e-5

NSTEPS = 4                    # K-split of the dominant 2048x512 head weight
CHUNK = COMB // NSTEPS        # 512 rows of w1 per grid step


# ----------------------------- JAX glue: im2col ------------------------------
def im2col(x):
    """x: [N, C, H, W] -> patches [N, H*W, C*KH*KW] for a 3x3, stride-1, pad-1 conv."""
    n, c, h, w = x.shape
    xp = jnp.pad(x, ((0, 0), (0, 0), (1, 1), (1, 1)))
    cols = []
    for i in range(KH):
        for j in range(KW):
            cols.append(xp[:, :, i:i + h, j:j + w])          # [N, C, H, W]
    p = jnp.stack(cols, axis=2)                              # [N, C, KH*KW, H, W]
    return p.transpose(0, 3, 4, 1, 2).reshape(n, h * w, c * KH * KW)


# ------------------------- fused forward Pallas kernel ------------------------
def _siamese_kernel(patches_ref, pool1_ref, pool2_ref, wc_ref, bc_ref,
                    wf_ref, bf_ref, w1_ref, b1_ref,
                    w2_ref, b2_ref, w3_ref, b3_ref, w4_ref, b4_ref,
                    w5_ref, b5_ref, w6_ref, b6_ref,
                    o_ref, feat_ref, acc_ref):
    f32 = jnp.float32
    bf16 = jnp.bfloat16
    step = pl.program_id(0)

    # ---- step 0: stand-in backbone on both images; result stays resident in VMEM ----
    @pl.when(step == 0)
    def _backbone():
        h = jnp.dot(patches_ref[...], wc_ref[...], preferred_element_type=f32) + bc_ref[...]
        h = jnp.maximum(h, 0.0).astype(bf16)                                   # conv + ReLU
        pooled1 = jnp.dot(pool1_ref[...], h, preferred_element_type=f32)       # GAP img1 (MXU)
        pooled2 = jnp.dot(pool2_ref[...], h, preferred_element_type=f32)       # GAP img2 (MXU)
        feat1 = jnp.dot(pooled1.astype(bf16), wf_ref[...],
                        preferred_element_type=f32) + bf_ref[...]              # [B, FEAT_PAD]
        feat2 = jnp.dot(pooled2.astype(bf16), wf_ref[...],
                        preferred_element_type=f32) + bf_ref[...]              # [B, FEAT_PAD]
        # combined_features = cat(feat1, feat2) along the lane axis (pad cols are 0).
        feat_ref[:, :FEAT_PAD] = feat1.astype(bf16)
        feat_ref[:, FEAT_PAD:] = feat2.astype(bf16)
        acc_ref[...] = jnp.zeros_like(acc_ref)

    # ---- every step: accumulate one K-chunk of combined @ W1 (native bf16 MXU) ----
    off = pl.multiple_of(step * CHUNK, CHUNK)
    fchunk = feat_ref[:, pl.ds(off, CHUNK)]                                    # [B, CHUNK] bf16
    acc_ref[...] += jnp.dot(fchunk, w1_ref[...], preferred_element_type=f32)

    # ---- last step: rest of cls_head (BN folded into Linear, Dropout = identity) ----
    @pl.when(step == pl.num_programs(0) - 1)
    def _head():
        h = jnp.maximum(acc_ref[...] + b1_ref[...], 0.0)
        for w_ref, b_ref in ((w2_ref, b2_ref), (w3_ref, b3_ref),
                             (w4_ref, b4_ref), (w5_ref, b5_ref)):
            h = jnp.dot(h.astype(bf16), w_ref[...], preferred_element_type=f32) + b_ref[...]
            h = jnp.maximum(h, 0.0)
        z = jnp.dot(h.astype(bf16), w6_ref[...], preferred_element_type=f32) + b6_ref[...]
        sig = 1.0 / (1.0 + jnp.exp(-z))                                        # exact sigmoid
        o_ref[...] = jnp.minimum(100.0 * sig, 100.0).astype(o_ref.dtype)


def siamese_pallas(patches, params):
    resident = [patches, params["pool1"], params["pool2"],
                params["wc"], params["bc"], params["wf"], params["bf"]]
    tail = [params["b1"]]
    for i in range(2, 7):
        tail += [params[f"w{i}"], params[f"b{i}"]]

    def full_spec(a):
        # Full-array block, constant block index -> DMA'd once and kept resident.
        return pl.BlockSpec(a.shape, lambda i: (0, 0))

    in_specs = ([full_spec(a) for a in resident]
                # w1 [COMB, 512] split along K across the grid so its DMA pipelines.
                + [pl.BlockSpec((CHUNK, MLP_DIMS[1]), lambda i: (i, 0))]
                + [full_spec(a) for a in tail])

    return pl.pallas_call(
        _siamese_kernel,
        out_shape=jax.ShapeDtypeStruct((B, 1), jnp.float32),
        grid=(NSTEPS,),
        in_specs=in_specs,
        out_specs=pl.BlockSpec((B, 1), lambda i: (0, 0)),
        scratch_shapes=[pltpu.VMEM((B, COMB), jnp.bfloat16),        # combined features
                        pltpu.VMEM((B, MLP_DIMS[1]), jnp.float32)],  # layer-1 accumulator
        compiler_params=pltpu.CompilerParams(dimension_semantics=("arbitrary",)),
    )(*(resident + [params["w1"]] + tail))


# ------------------------------ parameters -----------------------------------
def init_params(key):
    ks = jax.random.split(key, 5)
    wc = jax.random.normal(ks[0], (K, C_CONV), jnp.float32) / jnp.sqrt(K)
    bc = 0.01 * jax.random.normal(ks[1], (1, C_CONV), jnp.float32)
    wf = jax.random.normal(ks[2], (C_CONV, FEAT), jnp.float32) / jnp.sqrt(C_CONV)
    bf = 0.01 * jax.random.normal(ks[3], (1, FEAT), jnp.float32)
    wc = jnp.pad(wc, ((0, K_PAD - K), (0, 0)))                    # zero-pad im2col depth
    wf = jnp.pad(wf, ((0, 0), (0, FEAT_PAD - FEAT)))              # lane-dense features
    bf = jnp.pad(bf, ((0, 0), (0, FEAT_PAD - FEAT)))

    head = []
    layer_keys = jax.random.split(ks[4], len(MLP_DIMS) - 1)
    for li, (din, dout) in enumerate(zip(MLP_DIMS[:-1], MLP_DIMS[1:])):
        k1, k2, k3, k4, k5, k6 = jax.random.split(layer_keys[li], 6)
        w = jax.random.normal(k1, (din, dout), jnp.float32) / jnp.sqrt(din)   # Linear weight^T
        bb = 0.01 * jax.random.normal(k2, (dout,), jnp.float32)
        if dout != 1:
            # BatchNorm1d (eval mode, running stats) folded into the Linear.
            gamma = 1.0 + 0.1 * jax.random.normal(k3, (dout,), jnp.float32)
            beta = 0.1 * jax.random.normal(k4, (dout,), jnp.float32)
            r_mean = 0.1 * jax.random.normal(k5, (dout,), jnp.float32)
            r_var = 1.0 + 0.5 * jax.nn.sigmoid(jax.random.normal(k6, (dout,), jnp.float32))
            scale = gamma / jnp.sqrt(r_var + BN_EPS)
            shift = beta - r_mean * scale
            w = w * scale[None, :]
            bb = bb * scale + shift
        head.append((w, bb.reshape(1, dout)))

    # First head Linear (2000 -> 512): split into feat1/feat2 halves, zero-pad each
    # input block 1000 -> 1024 and re-stack, so that
    #   cat(feat1_pad, feat2_pad) @ w1_pad == cat(feat1, feat2) @ w1 exactly.
    w1, b1 = head[0]
    w1_pad = jnp.concatenate([jnp.pad(w1[:FEAT], ((0, FEAT_PAD - FEAT), (0, 0))),
                              jnp.pad(w1[FEAT:], ((0, FEAT_PAD - FEAT), (0, 0)))], axis=0)

    # Per-image global-average pooling expressed as matmuls (1/HW is exact in bf16).
    pool = jnp.repeat(jnp.eye(NIMG, dtype=jnp.float32), HW, axis=1) / float(HW)  # [NIMG, ROWS]

    bf16 = jnp.bfloat16
    params = {
        "pool1": pool[:B].astype(bf16), "pool2": pool[B:].astype(bf16),
        "wc": wc.astype(bf16), "bc": bc,
        "wf": wf.astype(bf16), "bf": bf,
        "w1": w1_pad.astype(bf16), "b1": b1,
    }
    for i, (w, b) in enumerate(head[1:], start=2):
        params[f"w{i}"] = w.astype(bf16)
        params[f"b{i}"] = b
    return params


# ------------------------------- forward --------------------------------------
@jax.jit
def siamese_forward(img1, img2, params):
    # TODO(synk): image concat + im2col stay in XLA; folding them into the kernel
    # (shifted pl.ds views of a padded image block) is a further ~us-level win.
    imgs = jnp.concatenate([img1, img2], axis=0)                  # [2B, 3, H, W]
    patches = im2col(imgs).reshape(ROWS, K)                       # [2B*HW, K]
    patches = jnp.pad(patches, ((0, 0), (0, K_PAD - K))).astype(jnp.bfloat16)
    return siamese_pallas(patches, params)                        # [B, 1] = 100 * sigmoid(...)


if __name__ == "__main__":
    key = jax.random.PRNGKey(0)
    k_img1, k_img2, k_param = jax.random.split(key, 3)
    params = init_params(k_param)
    img1 = jax.random.normal(k_img1, (B, C_IN, H, W), jnp.float32)
    img2 = jax.random.normal(k_img2, (B, C_IN, H, W), jnp.float32)
    out = siamese_forward(img1, img2, params)
    jax.block_until_ready(out)
    assert out.shape == (B, 1) and out.dtype == jnp.float32
    assert bool(jnp.all(jnp.isfinite(out)))
    assert bool(jnp.all(out >= 0.0)) and bool(jnp.all(out <= 100.0))
    print("KERNEL_OK")
</pallas_src>

<mosaic_0001>
module attributes {stable_mosaic.version = 11 : i64} {
  func.func @_siamese_kernel(%arg0: i32, %arg1: memref<1024x32xbf16, #tpu.memory_space<vmem>>, %arg2: memref<2x1024xbf16, #tpu.memory_space<vmem>>, %arg3: memref<2x1024xbf16, #tpu.memory_space<vmem>>, %arg4: memref<32x32xbf16, #tpu.memory_space<vmem>>, %arg5: memref<1x32xf32, #tpu.memory_space<vmem>>, %arg6: memref<32x1024xbf16, #tpu.memory_space<vmem>>, %arg7: memref<1x1024xf32, #tpu.memory_space<vmem>>, %arg8: memref<512x512xbf16, #tpu.memory_space<vmem>>, %arg9: memref<1x512xf32, #tpu.memory_space<vmem>>, %arg10: memref<512x256xbf16, #tpu.memory_space<vmem>>, %arg11: memref<1x256xf32, #tpu.memory_space<vmem>>, %arg12: memref<256x128xbf16, #tpu.memory_space<vmem>>, %arg13: memref<1x128xf32, #tpu.memory_space<vmem>>, %arg14: memref<128x64xbf16, #tpu.memory_space<vmem>>, %arg15: memref<1x64xf32, #tpu.memory_space<vmem>>, %arg16: memref<64x32xbf16, #tpu.memory_space<vmem>>, %arg17: memref<1x32xf32, #tpu.memory_space<vmem>>, %arg18: memref<32x1xbf16, #tpu.memory_space<vmem>>, %arg19: memref<1x1xf32, #tpu.memory_space<vmem>>, %arg20: memref<2x1xf32, #tpu.memory_space<vmem>>, %arg21: memref<2x2048xbf16, #tpu.memory_space<vmem>>, %arg22: memref<2x512xf32, #tpu.memory_space<vmem>>) attributes {dimension_semantics = [#tpu.dimension_semantics<arbitrary>], iteration_bounds = array<i64: 4>, scalar_prefetch = 0 : i64, scratch_operands = 2 : i64, tpu.core_type = #tpu.core_type<tc>, window_params = [{pipeline_mode = #tpu.pipeline_mode<synchronous>, transform_indices = @transform_0, window_bounds = array<i64: 1024, 32>}, {pipeline_mode = #tpu.pipeline_mode<synchronous>, transform_indices = @transform_1, window_bounds = array<i64: 2, 1024>}, {pipeline_mode = #tpu.pipeline_mode<synchronous>, transform_indices = @transform_2, window_bounds = array<i64: 2, 1024>}, {pipeline_mode = #tpu.pipeline_mode<synchronous>, transform_indices = @transform_3, window_bounds = array<i64: 32, 32>}, {pipeline_mode = #tpu.pipeline_mode<synchronous>, transform_indices = @transform_4, window_bounds = array<i64: 1, 32>}, {pipeline_mode = #tpu.pipeline_mode<synchronous>, transform_indices = @transform_5, window_bounds = array<i64: 32, 1024>}, {pipeline_mode = #tpu.pipeline_mode<synchronous>, transform_indices = @transform_6, window_bounds = array<i64: 1, 1024>}, {transform_indices = @transform_7, window_bounds = array<i64: 512, 512>}, {pipeline_mode = #tpu.pipeline_mode<synchronous>, transform_indices = @transform_8, window_bounds = array<i64: 1, 512>}, {pipeline_mode = #tpu.pipeline_mode<synchronous>, transform_indices = @transform_9, window_bounds = array<i64: 512, 256>}, {pipeline_mode = #tpu.pipeline_mode<synchronous>, transform_indices = @transform_10, window_bounds = array<i64: 1, 256>}, {pipeline_mode = #tpu.pipeline_mode<synchronous>, transform_indices = @transform_11, window_bounds = array<i64: 256, 128>}, {pipeline_mode = #tpu.pipeline_mode<synchronous>, transform_indices = @transform_12, window_bounds = array<i64: 1, 128>}, {pipeline_mode = #tpu.pipeline_mode<synchronous>, transform_indices = @transform_13, window_bounds = array<i64: 128, 64>}, {pipeline_mode = #tpu.pipeline_mode<synchronous>, transform_indices = @transform_14, window_bounds = array<i64: 1, 64>}, {pipeline_mode = #tpu.pipeline_mode<synchronous>, transform_indices = @transform_15, window_bounds = array<i64: 64, 32>}, {pipeline_mode = #tpu.pipeline_mode<synchronous>, transform_indices = @transform_16, window_bounds = array<i64: 1, 32>}, {pipeline_mode = #tpu.pipeline_mode<synchronous>, transform_indices = @transform_17, window_bounds = array<i64: 32, 1>}, {pipeline_mode = #tpu.pipeline_mode<synchronous>, transform_indices = @transform_18, window_bounds = array<i64: 1, 1>}, {pipeline_mode = #tpu.pipeline_mode<synchronous>, transform_indices = @transform_19, window_bounds = array<i64: 2, 1>}]} {
    %c0_i32 = arith.constant 0 : i32
    %0 = arith.cmpi eq, %arg0, %c0_i32 : i32
    %1 = arith.extui %0 : i1 to i32
    %c0_i32_0 = arith.constant 0 : i32
    %2 = arith.cmpi ne, %1, %c0_i32_0 : i32
    scf.if %2 {
      %c0_8 = arith.constant 0 : index
      %c0_9 = arith.constant 0 : index
      %15 = vector.load %arg1[%c0_8, %c0_9] : memref<1024x32xbf16, #tpu.memory_space<vmem>>, vector<1024x32xbf16>
      %c0_10 = arith.constant 0 : index
      %c0_11 = arith.constant 0 : index
      %16 = vector.load %arg4[%c0_10, %c0_11] : memref<32x32xbf16, #tpu.memory_space<vmem>>, vector<32x32xbf16>
      %cst_12 = arith.constant dense<0.000000e+00> : vector<1024x32xf32>
      %17 = tpu.matmul %15, %16, %cst_12 {dimension_numbers = #tpu.dot_dimension_numbers<[1], [0], [0], [1], [0, 0, 1, 1], [], []>} : vector<1024x32xbf16>, vector<32x32xbf16>, vector<1024x32xf32> -> vector<1024x32xf32>
      %c0_13 = arith.constant 0 : index
      %c0_14 = arith.constant 0 : index
      %18 = vector.load %arg5[%c0_13, %c0_14] : memref<1x32xf32, #tpu.memory_space<vmem>>, vector<1x32xf32>
      %19 = vector.broadcast %18 : vector<1x32xf32> to vector<1024x32xf32>
      %20 = arith.addf %17, %19 : vector<1024x32xf32>
      %cst_15 = arith.constant 0.000000e+00 : f32
      %21 = vector.broadcast %cst_15 : f32 to vector<1024x32xf32>
      %22 = arith.maximumf %20, %21 : vector<1024x32xf32>
      %23 = arith.truncf %22 : vector<1024x32xf32> to vector<1024x32xbf16>
      %c0_16 = arith.constant 0 : index
      %c0_17 = arith.constant 0 : index
      %24 = vector.load %arg2[%c0_16, %c0_17] : memref<2x1024xbf16, #tpu.memory_space<vmem>>, vector<2x1024xbf16>
      %cst_18 = arith.constant dense<0.000000e+00> : vector<2x32xf32>
      %25 = tpu.matmul %24, %23, %cst_18 {dimension_numbers = #tpu.dot_dimension_numbers<[1], [0], [0], [1], [0, 0, 1, 1], [], []>} : vector<2x1024xbf16>, vector<1024x32xbf16>, vector<2x32xf32> -> vector<2x32xf32>
      %c0_19 = arith.constant 0 : index
      %c0_20 = arith.constant 0 : index
      %26 = vector.load %arg3[%c0_19, %c0_20] : memref<2x1024xbf16, #tpu.memory_space<vmem>>, vector<2x1024xbf16>
      %cst_21 = arith.constant dense<0.000000e+00> : vector<2x32xf32>
      %27 = tpu.matmul %26, %23, %cst_21 {dimension_numbers = #tpu.dot_dimension_numbers<[1], [0], [0], [1], [0, 0, 1, 1], [], []>} : vector<2x1024xbf16>, vector<1024x32xbf16>, vector<2x32xf32> -> vector<2x32xf32>
      %28 = arith.truncf %25 : vector<2x32xf32> to vector<2x32xbf16>
      %c0_22 = arith.constant 0 : index
      %c0_23 = arith.constant 0 : index
      %29 = vector.load %arg6[%c0_22, %c0_23] : memref<32x1024xbf16, #tpu.memory_space<vmem>>, vector<32x1024xbf16>
      %cst_24 = arith.constant dense<0.000000e+00> : vector<2x1024xf32>
      %30 = tpu.matmul %28, %29, %cst_24 {dimension_numbers = #tpu.dot_dimension_numbers<[1], [0], [0], [1], [0, 0, 1, 1], [], []>} : vector<2x32xbf16>, vector<32x1024xbf16>, vector<2x1024xf32> -> vector<2x1024xf32>
      %c0_25 = arith.constant 0 : index
      %c0_26 = arith.constant 0 : index
      %31 = vector.load %arg7[%c0_25, %c0_26] : memref<1x1024xf32, #tpu.memory_space<vmem>>, vector<1x1024xf32>
      %32 = vector.broadcast %31 : vector<1x1024xf32> to vector<2x1024xf32>
      %33 = arith.addf %30, %32 : vector<2x1024xf32>
      %34 = arith.truncf %27 : vector<2x32xf32> to vector<2x32xbf16>
      %c0_27 = arith.constant 0 : index
      %c0_28 = arith.constant 0 : index
      %35 = vector.load %arg6[%c0_27, %c0_28] : memref<32x1024xbf16, #tpu.memory_space<vmem>>, vector<32x1024xbf16>
      %cst_29 = arith.constant dense<0.000000e+00> : vector<2x1024xf32>
      %36 = tpu.matmul %34, %35, %cst_29 {dimension_numbers = #tpu.dot_dimension_numbers<[1], [0], [0], [1], [0, 0, 1, 1], [], []>} : vector<2x32xbf16>, vector<32x1024xbf16>, vector<2x1024xf32> -> vector<2x1024xf32>
      %c0_30 = arith.constant 0 : index
      %c0_31 = arith.constant 0 : index
      %37 = vector.load %arg7[%c0_30, %c0_31] : memref<1x1024xf32, #tpu.memory_space<vmem>>, vector<1x1024xf32>
      %38 = vector.broadcast %37 : vector<1x1024xf32> to vector<2x1024xf32>
      %39 = arith.addf %36, %38 : vector<2x1024xf32>
      %40 = arith.truncf %33 : vector<2x1024xf32> to vector<2x1024xbf16>
      %c0_32 = arith.constant 0 : index
      %c0_33 = arith.constant 0 : index
      %41 = vector.load %arg21[%c0_32, %c0_33] : memref<2x2048xbf16, #tpu.memory_space<vmem>>, vector<2x1024xbf16>
      tpu.vector_store %arg21[%c0_32, %c0_33], %40 {strides = array<i32>} : memref<2x2048xbf16, #tpu.memory_space<vmem>>, vector<2x1024xbf16>,
      %42 = arith.truncf %39 : vector<2x1024xf32> to vector<2x1024xbf16>
      %c0_34 = arith.constant 0 : index
      %c1024 = arith.constant 1024 : index
      %43 = vector.load %arg21[%c0_34, %c1024] : memref<2x2048xbf16, #tpu.memory_space<vmem>>, vector<2x1024xbf16>
      tpu.vector_store %arg21[%c0_34, %c1024], %42 {strides = array<i32>} : memref<2x2048xbf16, #tpu.memory_space<vmem>>, vector<2x1024xbf16>,
      %cst_35 = arith.constant 0.000000e+00 : f32
      %44 = vector.broadcast %cst_35 : f32 to vector<2x512xf32>
      %c0_36 = arith.constant 0 : index
      %c0_37 = arith.constant 0 : index
      %45 = vector.load %arg22[%c0_36, %c0_37] : memref<2x512xf32, #tpu.memory_space<vmem>>, vector<2x512xf32>
      tpu.vector_store %arg22[%c0_36, %c0_37], %44 {strides = array<i32>} : memref<2x512xf32, #tpu.memory_space<vmem>>, vector<2x512xf32>,
    } else {
    }
    %c512_i32 = arith.constant 512 : i32
    %3 = arith.muli %arg0, %c512_i32 : i32
    %4 = tpu.assume_multiple %3, 512 : i32
    %c0 = arith.constant 0 : index
    %5 = arith.index_cast %4 : i32 to index
    %6 = vector.load %arg21[%c0, %5] : memref<2x2048xbf16, #tpu.memory_space<vmem>>, vector<2x512xbf16>
    %c0_1 = arith.constant 0 : index
    %c0_2 = arith.constant 0 : index
    %7 = vector.load %arg22[%c0_1, %c0_2] : memref<2x512xf32, #tpu.memory_space<vmem>>, vector<2x512xf32>
    %c0_3 = arith.constant 0 : index
    %c0_4 = arith.constant 0 : index
    %8 = vector.load %arg8[%c0_3, %c0_4] : memref<512x512xbf16, #tpu.memory_space<vmem>>, vector<512x512xbf16>
    %cst = arith.constant dense<0.000000e+00> : vector<2x512xf32>
    %9 = tpu.matmul %6, %8, %cst {dimension_numbers = #tpu.dot_dimension_numbers<[1], [0], [0], [1], [0, 0, 1, 1], [], []>} : vector<2x512xbf16>, vector<512x512xbf16>, vector<2x512xf32> -> vector<2x512xf32>
    %10 = arith.addf %7, %9 : vector<2x512xf32>
    %c0_5 = arith.constant 0 : index
    %c0_6 = arith.constant 0 : index
    %11 = vector.load %arg22[%c0_5, %c0_6] : memref<2x512xf32, #tpu.memory_space<vmem>>, vector<2x512xf32>
    tpu.vector_store %arg22[%c0_5, %c0_6], %10 {strides = array<i32>} : memref<2x512xf32, #tpu.memory_space<vmem>>, vector<2x512xf32>,
    %c3_i32 = arith.constant 3 : i32
    %12 = arith.cmpi eq, %arg0, %c3_i32 : i32
    %13 = arith.extui %12 : i1 to i32
    %c0_i32_7 = arith.constant 0 : i32
    %14 = arith.cmpi ne, %13, %c0_i32_7 : i32
    scf.if %14 {
      %c0_8 = arith.constant 0 : index
      %c0_9 = arith.constant 0 : index
      %15 = vector.load %arg22[%c0_8, %c0_9] : memref<2x512xf32, #tpu.memory_space<vmem>>, vector<2x512xf32>
      %c0_10 = arith.constant 0 : index
      %c0_11 = arith.constant 0 : index
      %16 = vector.load %arg9[%c0_10, %c0_11] : memref<1x512xf32, #tpu.memory_space<vmem>>, vector<1x512xf32>
      %17 = vector.broadcast %16 : vector<1x512xf32> to vector<2x512xf32>
      %18 = arith.addf %15, %17 : vector<2x512xf32>
      %cst_12 = arith.constant 0.000000e+00 : f32
      %19 = vector.broadcast %cst_12 : f32 to vector<2x512xf32>
      %20 = arith.maximumf %18, %19 : vector<2x512xf32>
      %21 = arith.truncf %20 : vector<2x512xf32> to vector<2x512xbf16>
      %c0_13 = arith.constant 0 : index
      %c0_14 = arith.constant 0 : index
      %22 = vector.load %arg10[%c0_13, %c0_14] : memref<512x256xbf16, #tpu.memory_space<vmem>>, vector<512x256xbf16>
      %cst_15 = arith.constant dense<0.000000e+00> : vector<2x256xf32>
      %23 = tpu.matmul %21, %22, %cst_15 {dimension_numbers = #tpu.dot_dimension_numbers<[1], [0], [0], [1], [0, 0, 1, 1], [], []>} : vector<2x512xbf16>, vector<512x256xbf16>, vector<2x256xf32> -> vector<2x256xf32>
      %c0_16 = arith.constant 0 : index
      %c0_17 = arith.constant 0 : index
      %24 = vector.load %arg11[%c0_16, %c0_17] : memref<1x256xf32, #tpu.memory_space<vmem>>, vector<1x256xf32>
      %25 = vector.broadcast %24 : vector<1x256xf32> to vector<2x256xf32>
      %26 = arith.addf %23, %25 : vector<2x256xf32>
      %cst_18 = arith.constant 0.000000e+00 : f32
      %27 = vector.broadcast %cst_18 : f32 to vector<2x256xf32>
      %28 = arith.maximumf %26, %27 : vector<2x256xf32>
      %29 = arith.truncf %28 : vector<2x256xf32> to vector<2x256xbf16>
      %c0_19 = arith.constant 0 : index
      %c0_20 = arith.constant 0 : index
      %30 = vector.load %arg12[%c0_19, %c0_20] : memref<256x128xbf16, #tpu.memory_space<vmem>>, vector<256x128xbf16>
      %cst_21 = arith.constant dense<0.000000e+00> : vector<2x128xf32>
      %31 = tpu.matmul %29, %30, %cst_21 {dimension_numbers = #tpu.dot_dimension_numbers<[1], [0], [0], [1], [0, 0, 1, 1], [], []>} : vector<2x256xbf16>, vector<256x128xbf16>, vector<2x128xf32> -> vector<2x128xf32>
      %c0_22 = arith.constant 0 : index
      %c0_23 = arith.constant 0 : index
      %32 = vector.load %arg13[%c0_22, %c0_23] : memref<1x128xf32, #tpu.memory_space<vmem>>, vector<1x128xf32>
      %33 = vector.broadcast %32 : vector<1x128xf32> to vector<2x128xf32>
      %34 = arith.addf %31, %33 : vector<2x128xf32>
      %cst_24 = arith.constant 0.000000e+00 : f32
      %35 = vector.broadcast %cst_24 : f32 to vector<2x128xf32>
      %36 = arith.maximumf %34, %35 : vector<2x128xf32>
      %37 = arith.truncf %36 : vector<2x128xf32> to vector<2x128xbf16>
      %c0_25 = arith.constant 0 : index
      %c0_26 = arith.constant 0 : index
      %38 = vector.load %arg14[%c0_25, %c0_26] : memref<128x64xbf16, #tpu.memory_space<vmem>>, vector<128x64xbf16>
      %cst_27 = arith.constant dense<0.000000e+00> : vector<2x64xf32>
      %39 = tpu.matmul %37, %38, %cst_27 {dimension_numbers = #tpu.dot_dimension_numbers<[1], [0], [0], [1], [0, 0, 1, 1], [], []>} : vector<2x128xbf16>, vector<128x64xbf16>, vector<2x64xf32> -> vector<2x64xf32>
      %c0_28 = arith.constant 0 : index
      %c0_29 = arith.constant 0 : index
      %40 = vector.load %arg15[%c0_28, %c0_29] : memref<1x64xf32, #tpu.memory_space<vmem>>, vector<1x64xf32>
      %41 = vector.broadcast %40 : vector<1x64xf32> to vector<2x64xf32>
      %42 = arith.addf %39, %41 : vector<2x64xf32>
      %cst_30 = arith.constant 0.000000e+00 : f32
      %43 = vector.broadcast %cst_30 : f32 to vector<2x64xf32>
      %44 = arith.maximumf %42, %43 : vector<2x64xf32>
      %45 = arith.truncf %44 : vector<2x64xf32> to vector<2x64xbf16>
      %c0_31 = arith.constant 0 : index
      %c0_32 = arith.constant 0 : index
      %46 = vector.load %arg16[%c0_31, %c0_32] : memref<64x32xbf16, #tpu.memory_space<vmem>>, vector<64x32xbf16>
      %cst_33 = arith.constant dense<0.000000e+00> : vector<2x32xf32>
      %47 = tpu.matmul %45, %46, %cst_33 {dimension_numbers = #tpu.dot_dimension_numbers<[1], [0], [0], [1], [0, 0, 1, 1], [], []>} : vector<2x64xbf16>, vector<64x32xbf16>, vector<2x32xf32> -> vector<2x32xf32>
      %c0_34 = arith.constant 0 : index
      %c0_35 = arith.constant 0 : index
      %48 = vector.load %arg17[%c0_34, %c0_35] : memref<1x32xf32, #tpu.memory_space<vmem>>, vector<1x32xf32>
      %49 = vector.broadcast %48 : vector<1x32xf32> to vector<2x32xf32>
      %50 = arith.addf %47, %49 : vector<2x32xf32>
      %cst_36 = arith.constant 0.000000e+00 : f32
      %51 = vector.broadcast %cst_36 : f32 to vector<2x32xf32>
      %52 = arith.maximumf %50, %51 : vector<2x32xf32>
      %53 = arith.truncf %52 : vector<2x32xf32> to vector<2x32xbf16>
      %c0_37 = arith.constant 0 : index
      %c0_38 = arith.constant 0 : index
      %54 = vector.load %arg18[%c0_37, %c0_38] : memref<32x1xbf16, #tpu.memory_space<vmem>>, vector<32x1xbf16>
      %cst_39 = arith.constant dense<0.000000e+00> : vector<2x1xf32>
      %55 = tpu.matmul %53, %54, %cst_39 {dimension_numbers = #tpu.dot_dimension_numbers<[1], [0], [0], [1], [0, 0, 1, 1], [], []>} : vector<2x32xbf16>, vector<32x1xbf16>, vector<2x1xf32> -> vector<2x1xf32>
      %c0_40 = arith.constant 0 : index
      %c0_41 = arith.constant 0 : index
      %56 = vector.load %arg19[%c0_40, %c0_41] : memref<1x1xf32, #tpu.memory_space<vmem>>, vector<1x1xf32>
      %57 = vector.broadcast %56 : vector<1x1xf32> to vector<2x1xf32>
      %58 = arith.addf %55, %57 : vector<2x1xf32>
      %cst_42 = arith.constant 0.000000e+00 : f32
      %59 = vector.broadcast %cst_42 : f32 to vector<2x1xf32>
      %60 = arith.subf %59, %58 : vector<2x1xf32>
      %61 = math.exp %60 : vector<2x1xf32>
      %cst_43 = arith.constant 1.000000e+00 : f32
      %62 = vector.broadcast %cst_43 : f32 to vector<2x1xf32>
      %63 = arith.addf %62, %61 : vector<2x1xf32>
      %cst_44 = arith.constant 1.000000e+00 : f32
      %64 = vector.broadcast %cst_44 : f32 to vector<2x1xf32>
      %65 = arith.divf %64, %63 : vector<2x1xf32>
      %cst_45 = arith.constant 1.000000e+02 : f32
      %66 = vector.broadcast %cst_45 : f32 to vector<2x1xf32>
      %67 = arith.mulf %66, %65 : vector<2x1xf32>
      %cst_46 = arith.constant 1.000000e+02 : f32
      %68 = vector.broadcast %cst_46 : f32 to vector<2x1xf32>
      %69 = arith.minimumf %67, %68 : vector<2x1xf32>
      %c0_47 = arith.constant 0 : index
      %c0_48 = arith.constant 0 : index
      %70 = vector.load %arg20[%c0_47, %c0_48] : memref<2x1xf32, #tpu.memory_space<vmem>>, vector<2x1xf32>
      tpu.vector_store %arg20[%c0_47, %c0_48], %69 {strides = array<i32>} : memref<2x1xf32, #tpu.memory_space<vmem>>, vector<2x1xf32>,
    } else {
    }
    return
  }
  func.func @transform_0(%arg0: i32) -> (i32, i32) {
    %c0_i32 = arith.constant 0 : i32
    %c0_i32_0 = arith.constant 0 : i32
    %c0_i32_1 = arith.constant 0 : i32
    return %c0_i32, %c0_i32_0 : i32, i32
  }
  func.func @transform_1(%arg0: i32) -> (i32, i32) {
    %c0_i32 = arith.constant 0 : i32
    %c0_i32_0 = arith.constant 0 : i32
    %c0_i32_1 = arith.constant 0 : i32
    return %c0_i32, %c0_i32_0 : i32, i32
  }
  func.func @transform_2(%arg0: i32) -> (i32, i32) {
    %c0_i32 = arith.constant 0 : i32
    %c0_i32_0 = arith.constant 0 : i32
    %c0_i32_1 = arith.constant 0 : i32
    return %c0_i32, %c0_i32_0 : i32, i32
  }
  func.func @transform_3(%arg0: i32) -> (i32, i32) {
    %c0_i32 = arith.constant 0 : i32
    %c0_i32_0 = arith.constant 0 : i32
    %c0_i32_1 = arith.constant 0 : i32
    return %c0_i32, %c0_i32_0 : i32, i32
  }
  func.func @transform_4(%arg0: i32) -> (i32, i32) {
    %c0_i32 = arith.constant 0 : i32
    %c0_i32_0 = arith.constant 0 : i32
    %c0_i32_1 = arith.constant 0 : i32
    return %c0_i32, %c0_i32_0 : i32, i32
  }
  func.func @transform_5(%arg0: i32) -> (i32, i32) {
    %c0_i32 = arith.constant 0 : i32
    %c0_i32_0 = arith.constant 0 : i32
    %c0_i32_1 = arith.constant 0 : i32
    return %c0_i32, %c0_i32_0 : i32, i32
  }
  func.func @transform_6(%arg0: i32) -> (i32, i32) {
    %c0_i32 = arith.constant 0 : i32
    %c0_i32_0 = arith.constant 0 : i32
    %c0_i32_1 = arith.constant 0 : i32
    return %c0_i32, %c0_i32_0 : i32, i32
  }
  func.func @transform_7(%arg0: i32) -> (i32, i32) {
    %c0_i32 = arith.constant 0 : i32
    %c0_i32_0 = arith.constant 0 : i32
    return %arg0, %c0_i32 : i32, i32
  }
  func.func @transform_8(%arg0: i32) -> (i32, i32) {
    %c0_i32 = arith.constant 0 : i32
    %c0_i32_0 = arith.constant 0 : i32
    %c0_i32_1 = arith.constant 0 : i32
    return %c0_i32, %c0_i32_0 : i32, i32
  }
  func.func @transform_9(%arg0: i32) -> (i32, i32) {
    %c0_i32 = arith.constant 0 : i32
    %c0_i32_0 = arith.constant 0 : i32
    %c0_i32_1 = arith.constant 0 : i32
    return %c0_i32, %c0_i32_0 : i32, i32
  }
  func.func @transform_10(%arg0: i32) -> (i32, i32) {
    %c0_i32 = arith.constant 0 : i32
    %c0_i32_0 = arith.constant 0 : i32
    %c0_i32_1 = arith.constant 0 : i32
    return %c0_i32, %c0_i32_0 : i32, i32
  }
  func.func @transform_11(%arg0: i32) -> (i32, i32) {
    %c0_i32 = arith.constant 0 : i32
    %c0_i32_0 = arith.constant 0 : i32
    %c0_i32_1 = arith.constant 0 : i32
    return %c0_i32, %c0_i32_0 : i32, i32
  }
  func.func @transform_12(%arg0: i32) -> (i32, i32) {
    %c0_i32 = arith.constant 0 : i32
    %c0_i32_0 = arith.constant 0 : i32
    %c0_i32_1 = arith.constant 0 : i32
    return %c0_i32, %c0_i32_0 : i32, i32
  }
  func.func @transform_13(%arg0: i32) -> (i32, i32) {
    %c0_i32 = arith.constant 0 : i32
    %c0_i32_0 = arith.constant 0 : i32
    %c0_i32_1 = arith.constant 0 : i32
    return %c0_i32, %c0_i32_0 : i32, i32
  }
  func.func @transform_14(%arg0: i32) -> (i32, i32) {
    %c0_i32 = arith.constant 0 : i32
    %c0_i32_0 = arith.constant 0 : i32
    %c0_i32_1 = arith.constant 0 : i32
    return %c0_i32, %c0_i32_0 : i32, i32
  }
  func.func @transform_15(%arg0: i32) -> (i32, i32) {
    %c0_i32 = arith.constant 0 : i32
    %c0_i32_0 = arith.constant 0 : i32
    %c0_i32_1 = arith.constant 0 : i32
    return %c0_i32, %c0_i32_0 : i32, i32
  }
  func.func @transform_16(%arg0: i32) -> (i32, i32) {
    %c0_i32 = arith.constant 0 : i32
    %c0_i32_0 = arith.constant 0 : i32
    %c0_i32_1 = arith.constant 0 : i32
    return %c0_i32, %c0_i32_0 : i32, i32
  }
  func.func @transform_17(%arg0: i32) -> (i32, i32) {
    %c0_i32 = arith.constant 0 : i32
    %c0_i32_0 = arith.constant 0 : i32
    %c0_i32_1 = arith.constant 0 : i32
    return %c0_i32, %c0_i32_0 : i32, i32
  }
  func.func @transform_18(%arg0: i32) -> (i32, i32) {
    %c0_i32 = arith.constant 0 : i32
    %c0_i32_0 = arith.constant 0 : i32
    %c0_i32_1 = arith.constant 0 : i32
    return %c0_i32, %c0_i32_0 : i32, i32
  }
  func.func @transform_19(%arg0: i32) -> (i32, i32) {
    %c0_i32 = arith.constant 0 : i32
    %c0_i32_0 = arith.constant 0 : i32
    %c0_i32_1 = arith.constant 0 : i32
    return %c0_i32, %c0_i32_0 : i32, i32
  }
}

</mosaic_0001>

<llo_original>
// kernel: siamese_forward.1
$region0: #{siamese_forward.1}
  #allocation0 [shape = 'u32[]', space=smem, size = 0x4, offset = 0x4, fixed_abs, tag = 'smem constant byte address 0x4 - core index']
  #allocation1 [shape = 'u32[72,128]{1,0:T(1,128)}', space=vmem, size = 0x9000, scoped, tag = 'internal scratch']
  #allocation2 [shape = 'bf16[2,2048]{1,0:T(2,128)(2,1)}', space=vmem, size = 0x2000, scoped, tag = 'scratch operand']
  #allocation3 [shape = 'f32[2,512]{1,0:T(2,128)}', space=vmem, size = 0x1000, scoped, tag = 'scratch operand']
  #allocation4 [shape = 'f32[1,1]{1,0:T(1,128)S(1)}', space=vmem, size = 0x200, scoped, tag = 'scoped memory for siamese_forward.1']
  %s0 = inlined_call_operand.vmem [shape: bf16[1024,32], index: 0, kind: input, shape index: {}]
  %s1 = inlined_call_operand.vmem [shape: bf16[2,1024], index: 1, kind: input, shape index: {}]
  %s2 = inlined_call_operand.vmem [shape: bf16[2,1024], index: 2, kind: input, shape index: {}]
  %s3 = inlined_call_operand.vmem [shape: bf16[32,32], index: 3, kind: input, shape index: {}]
  %s4 = inlined_call_operand.vmem [shape: f32[1,32], index: 4, kind: input, shape index: {}]
  %s5 = inlined_call_operand.vmem [shape: bf16[32,1024], index: 5, kind: input, shape index: {}]
  %s6 = inlined_call_operand.vmem [shape: f32[1,1024], index: 6, kind: input, shape index: {}]
  %s7 = inlined_call_operand.vmem [shape: bf16[2048,512], index: 7, kind: input, shape index: {}]
  %s8 = inlined_call_operand.vmem [shape: f32[1,512], index: 8, kind: input, shape index: {}]
  %s9 = inlined_call_operand.vmem [shape: bf16[512,256], index: 9, kind: input, shape index: {}]
  %s10 = inlined_call_operand.vmem [shape: f32[1,256], index: 10, kind: input, shape index: {}]
  %s11 = inlined_call_operand.vmem [shape: bf16[256,128], index: 11, kind: input, shape index: {}]
  %s12 = inlined_call_operand.vmem [shape: f32[1,128], index: 12, kind: input, shape index: {}]
  %s13 = inlined_call_operand.vmem [shape: bf16[128,64], index: 13, kind: input, shape index: {}]
  %s14 = inlined_call_operand.vmem [shape: f32[1,64], index: 14, kind: input, shape index: {}]
  %s15 = inlined_call_operand.vmem [shape: bf16[64,32], index: 15, kind: input, shape index: {}]
  %s16 = inlined_call_operand.vmem [shape: f32[1,32], index: 16, kind: input, shape index: {}]
  %s17 = inlined_call_operand.vmem [shape: bf16[32,1], index: 17, kind: input, shape index: {}]
  %s18 = inlined_call_operand.<no memory space> [shape: f32[1,1], index: 18, kind: input, shape index: {}]
  %s19 = inlined_call_operand.vmem [shape: f32[2,1], index: 19, kind: output, shape index: {}]
  %s20 = sld [smem:[#allocation0]]
  $region117: #{siamese_forward.1} parent=0
    _
  %s22 = ssub.s32 1, %s20
  %s23 = scalar_select 0, %s22, %s20
  %v24 = vstv %s18
  %25 = vst [vmem:[#allocation4] sm:$0x1] %v24
  loop: start=0, step=1, limit=6
  $region2: #{siamese_forward.1} parent=0 // loop_pre_header
    _
  $region3: #{siamese_forward.1} parent=0 // loop_header
    %s27 = sphi 0, %s31
    %p28 = scmp.ge.s32.totalorder %s27, 6
    %s35 = sphi 0, %s35
    %s37 = sphi 0, %s35
    %s38 = sphi 0, %s37
    %s52 = sphi 0, %s38
    %s56 = sphi 0, %s56
    %s58 = sphi 0, %s56
    %s59 = sphi 0, %s58
    %s73 = sphi 0, %s59
    %s77 = sphi 0, %s77
    %s79 = sphi 0, %s77
    %s80 = sphi 0, %s79
    %s94 = sphi 0, %s80
    %s98 = sphi 0, %s98
    %s100 = sphi 0, %s98
    %s101 = sphi 0, %s100
    %s115 = sphi 0, %s101
    %s119 = sphi 0, %s119
    %s121 = sphi 0, %s119
    %s122 = sphi 0, %s121
    %s136 = sphi 0, %s122
    %s140 = sphi 0, %s140
    %s142 = sphi 0, %s140
    %s143 = sphi 0, %s142
    %s157 = sphi 0, %s143
    %s161 = sphi 0, %s161
    %s163 = sphi 0, %s161
    %s164 = sphi 0, %s163
    %s178 = sphi 0, %s164
    %s184 = sphi 0, %s186
    %s187 = sphi 0, %s184
    %s188 = sphi 0, %s187
    %s204 = sphi 0, %s188
    %s208 = sphi 0, %s208
    %s210 = sphi 0, %s208
    %s211 = sphi 0, %s210
    %s225 = sphi 0, %s211
    %s229 = sphi 0, %s229
    %s231 = sphi 0, %s229
    %s232 = sphi 0, %s231
    %s246 = sphi 0, %s232
    %s250 = sphi 0, %s250
    %s252 = sphi 0, %s250
    %s253 = sphi 0, %s252
    %s267 = sphi 0, %s253
    %s271 = sphi 0, %s271
    %s273 = sphi 0, %s271
    %s274 = sphi 0, %s273
    %s288 = sphi 0, %s274
    %s292 = sphi 0, %s292
    %s294 = sphi 0, %s292
    %s295 = sphi 0, %s294
    %s309 = sphi 0, %s295
    %s313 = sphi 0, %s313
    %s315 = sphi 0, %s313
    %s316 = sphi 0, %s315
    %s330 = sphi 0, %s316
    %s334 = sphi 0, %s334
    %s336 = sphi 0, %s334
    %s337 = sphi 0, %s336
    %s351 = sphi 0, %s337
    %s355 = sphi 0, %s355
    %s357 = sphi 0, %s355
    %s358 = sphi 0, %s357
    %s372 = sphi 0, %s358
    %s376 = sphi 0, %s376
    %s378 = sphi 0, %s376
    %s379 = sphi 0, %s378
    %s393 = sphi 0, %s379
    %s397 = sphi 0, %s397
    %s399 = sphi 0, %s397
    %s400 = sphi 0, %s399
    %s414 = sphi 0, %s400
    %s418 = sphi 0, %s418
    %s420 = sphi 0, %s418
    %s421 = sphi 0, %s420
    %s435 = sphi 0, %s421
    %s439 = sphi 0, %s439
    %s441 = sphi 0, %s439
    %s442 = sphi 0, %s441
    %s456 = sphi 0, %s442
  $region4: #{siamese_forward.1} parent=0 // loop_header_branch
    %30 = sbr.rel (%p28) target = $region8
  $region5: #{siamese_forward.1} parent=0 // loop_body
    %s32 = ssub.s32 %s27, 1
    %s33 = ssub.s32 %s27, 2
    %s34 = sadd.s32 %s27, 1
    %s36 = sadd.s32 %s35, 1
    %p39 = scmp.eq.s32.totalorder %s27, 3
    %p40 = scmp.ne.s32.totalorder %s35, %s37
    %p41 = scmp.eq.s32.totalorder %s27, 0
    %p42 = por %p40, %p41
    %p43 = scmp.ne.s32.totalorder %s35, %s37
    %p44 = scmp.eq.s32.totalorder %s32, 3
    %p45 = por %p43, %p44
    %p46 = scmp.ne.s32.totalorder %s37, %s38
    %p47 = scmp.eq.s32.totalorder %s32, 0
    %p48 = por %p46, %p47
    %p49 = scmp.ne.s32.totalorder %s37, %s38
    %p50 = scmp.eq.s32.totalorder %s33, 3
    %p51 = por %p49, %p50
    %p53 = scmp.ne.s32.totalorder %s38, %s52
    %p54 = scmp.eq.s32.totalorder %s33, 0
    %p55 = por %p53, %p54
    %s57 = sadd.s32 %s56, 1
    %p60 = scmp.eq.s32.totalorder %s27, 3
    %p61 = scmp.ne.s32.totalorder %s56, %s58
    %p62 = scmp.eq.s32.totalorder %s27, 0
    %p63 = por %p61, %p62
    %p64 = scmp.ne.s32.totalorder %s56, %s58
    %p65 = scmp.eq.s32.totalorder %s32, 3
    %p66 = por %p64, %p65
    %p67 = scmp.ne.s32.totalorder %s58, %s59
    %p68 = scmp.eq.s32.totalorder %s32, 0
    %p69 = por %p67, %p68
    %p70 = scmp.ne.s32.totalorder %s58, %s59
    %p71 = scmp.eq.s32.totalorder %s33, 3
    %p72 = por %p70, %p71
    %p74 = scmp.ne.s32.totalorder %s59, %s73
    %p75 = scmp.eq.s32.totalorder %s33, 0
    %p76 = por %p74, %p75
    %s78 = sadd.s32 %s77, 1
    %p81 = scmp.eq.s32.totalorder %s27, 3
    %p82 = scmp.ne.s32.totalorder %s77, %s79
    %p83 = scmp.eq.s32.totalorder %s27, 0
    %p84 = por %p82, %p83
    %p85 = scmp.ne.s32.totalorder %s77, %s79
    %p86 = scmp.eq.s32.totalorder %s32, 3
    %p87 = por %p85, %p86
    %p88 = scmp.ne.s32.totalorder %s79, %s80
    %p89 = scmp.eq.s32.totalorder %s32, 0
    %p90 = por %p88, %p89
    %p91 = scmp.ne.s32.totalorder %s79, %s80
    %p92 = scmp.eq.s32.totalorder %s33, 3
    %p93 = por %p91, %p92
    %p95 = scmp.ne.s32.totalorder %s80, %s94
    %p96 = scmp.eq.s32.totalorder %s33, 0
    %p97 = por %p95, %p96
    %s99 = sadd.s32 %s98, 1
    %p102 = scmp.eq.s32.totalorder %s27, 3
    %p103 = scmp.ne.s32.totalorder %s98, %s100
    %p104 = scmp.eq.s32.totalorder %s27, 0
    %p105 = por %p103, %p104
    %p106 = scmp.ne.s32.totalorder %s98, %s100
    %p107 = scmp.eq.s32.totalorder %s32, 3
    %p108 = por %p106, %p107
    %p109 = scmp.ne.s32.totalorder %s100, %s101
    %p110 = scmp.eq.s32.totalorder %s32, 0
    %p111 = por %p109, %p110
    %p112 = scmp.ne.s32.totalorder %s100, %s101
    %p113 = scmp.eq.s32.totalorder %s33, 3
    %p114 = por %p112, %p113
    %p116 = scmp.ne.s32.totalorder %s101, %s115
    %p117 = scmp.eq.s32.totalorder %s33, 0
    %p118 = por %p116, %p117
    %s120 = sadd.s32 %s119, 1
    %p123 = scmp.eq.s32.totalorder %s27, 3
    %p124 = scmp.ne.s32.totalorder %s119, %s121
    %p125 = scmp.eq.s32.totalorder %s27, 0
    %p126 = por %p124, %p125
    %p127 = scmp.ne.s32.totalorder %s119, %s121
    %p128 = scmp.eq.s32.totalorder %s32, 3
    %p129 = por %p127, %p128
    %p130 = scmp.ne.s32.totalorder %s121, %s122
    %p131 = scmp.eq.s32.totalorder %s32, 0
    %p132 = por %p130, %p131
    %p133 = scmp.ne.s32.totalorder %s121, %s122
    %p134 = scmp.eq.s32.totalorder %s33, 3
    %p135 = por %p133, %p134
    %p137 = scmp.ne.s32.totalorder %s122, %s136
    %p138 = scmp.eq.s32.totalorder %s33, 0
    %p139 = por %p137, %p138
    %s141 = sadd.s32 %s140, 1
    %p144 = scmp.eq.s32.totalorder %s27, 3
    %p145 = scmp.ne.s32.totalorder %s140, %s142
    %p146 = scmp.eq.s32.totalorder %s27, 0
    %p147 = por %p145, %p146
    %p148 = scmp.ne.s32.totalorder %s140, %s142
    %p149 = scmp.eq.s32.totalorder %s32, 3
    %p150 = por %p148, %p149
    %p151 = scmp.ne.s32.totalorder %s142, %s143
    %p152 = scmp.eq.s32.totalorder %s32, 0
    %p153 = por %p151, %p152
    %p154 = scmp.ne.s32.totalorder %s142, %s143
    %p155 = scmp.eq.s32.totalorder %s33, 3
    %p156 = por %p154, %p155
    %p158 = scmp.ne.s32.totalorder %s143, %s157
    %p159 = scmp.eq.s32.totalorder %s33, 0
    %p160 = por %p158, %p159
    %s162 = sadd.s32 %s161, 1
    %p165 = scmp.eq.s32.totalorder %s27, 3
    %p166 = scmp.ne.s32.totalorder %s161, %s163
    %p167 = scmp.eq.s32.totalorder %s27, 0
    %p168 = por %p166, %p167
    %p169 = scmp.ne.s32.totalorder %s161, %s163
    %p170 = scmp.eq.s32.totalorder %s32, 3
    %p171 = por %p169, %p170
    %p172 = scmp.ne.s32.totalorder %s163, %s164
    %p173 = scmp.eq.s32.totalorder %s32, 0
    %p174 = por %p172, %p173
    %p175 = scmp.ne.s32.totalorder %s163, %s164
    %p176 = scmp.eq.s32.totalorder %s33, 3
    %p177 = por %p175, %p176
    %p179 = scmp.ne.s32.totalorder %s164, %s178
    %p180 = scmp.eq.s32.totalorder %s33, 0
    %p181 = por %p179, %p180
    %s182 = ssub.s32 %s27, %s34
    %p183 = scmp.eq.s32.totalorder %s182, 0
    %s185 = sadd.s32 %s184, 1
    %s186 = scalar_select %p183, %s184, %s185
    %p189 = pneg %p183
    %p190 = scmp.eq.s32.totalorder %s27, 3
    %p191 = por %p189, %p190
    %p192 = scmp.ne.s32.totalorder %s184, %s187
    %p193 = scmp.eq.s32.totalorder %s27, 0
    %p194 = por %p192, %p193
    %p195 = scmp.ne.s32.totalorder %s184, %s187
    %p196 = scmp.eq.s32.totalorder %s32, 3
    %p197 = por %p195, %p196
    %p198 = scmp.ne.s32.totalorder %s187, %s188
    %p199 = scmp.eq.s32.totalorder %s32, 0
    %p200 = por %p198, %p199
    %p201 = scmp.ne.s32.totalorder %s187, %s188
    %p202 = scmp.eq.s32.totalorder %s33, 3
    %p203 = por %p201, %p202
    %p205 = scmp.ne.s32.totalorder %s188, %s204
    %p206 = scmp.eq.s32.totalorder %s33, 0
    %p207 = por %p205, %p206
    %s209 = sadd.s32 %s208, 1
    %p212 = scmp.eq.s32.totalorder %s27, 3
    %p213 = scmp.ne.s32.totalorder %s208, %s210
    %p214 = scmp.eq.s32.totalorder %s27, 0
    %p215 = por %p213, %p214
    %p216 = scmp.ne.s32.totalorder %s208, %s210
    %p217 = scmp.eq.s32.totalorder %s32, 3
    %p218 = por %p216, %p217
    %p219 = scmp.ne.s32.totalorder %s210, %s211
    %p220 = scmp.eq.s32.totalorder %s32, 0
    %p221 = por %p219, %p220
    %p222 = scmp.ne.s32.totalorder %s210, %s211
    %p223 = scmp.eq.s32.totalorder %s33, 3
    %p224 = por %p222, %p223
    %p226 = scmp.ne.s32.totalorder %s211, %s225
    %p227 = scmp.eq.s32.totalorder %s33, 0
    %p228 = por %p226, %p227
    %s230 = sadd.s32 %s229, 1
    %p233 = scmp.eq.s32.totalorder %s27, 3
    %p234 = scmp.ne.s32.totalorder %s229, %s231
    %p235 = scmp.eq.s32.totalorder %s27, 0
    %p236 = por %p234, %p235
    %p237 = scmp.ne.s32.totalorder %s229, %s231
    %p238 = scmp.eq.s32.totalorder %s32, 3
    %p239 = por %p237, %p238
    %p240 = scmp.ne.s32.totalorder %s231, %s232
    %p241 = scmp.eq.s32.totalorder %s32, 0
    %p242 = por %p240, %p241
    %p243 = scmp.ne.s32.totalorder %s231, %s232
    %p244 = scmp.eq.s32.totalorder %s33, 3
    %p245 = por %p243, %p244
    %p247 = scmp.ne.s32.totalorder %s232, %s246
    %p248 = scmp.eq.s32.totalorder %s33, 0
    %p249 = por %p247, %p248
    %s251 = sadd.s32 %s250, 1
    %p254 = scmp.eq.s32.totalorder %s27, 3
    %p255 = scmp.ne.s32.totalorder %s250, %s252
    %p256 = scmp.eq.s32.totalorder %s27, 0
    %p257 = por %p255, %p256
    %p258 = scmp.ne.s32.totalorder %s250, %s252
    %p259 = scmp.eq.s32.totalorder %s32, 3
    %p260 = por %p258, %p259
    %p261 = scmp.ne.s32.totalorder %s252, %s253
    %p262 = scmp.eq.s32.totalorder %s32, 0
    %p263 = por %p261, %p262
    %p264 = scmp.ne.s32.totalorder %s252, %s253
    %p265 = scmp.eq.s32.totalorder %s33, 3
    %p266 = por %p264, %p265
    %p268 = scmp.ne.s32.totalorder %s253, %s267
    %p269 = scmp.eq.s32.totalorder %s33, 0
    %p270 = por %p268, %p269
    %s272 = sadd.s32 %s271, 1
    %p275 = scmp.eq.s32.totalorder %s27, 3
    %p276 = scmp.ne.s32.totalorder %s271, %s273
    %p277 = scmp.eq.s32.totalorder %s27, 0
    %p278 = por %p276, %p277
    %p279 = scmp.ne.s32.totalorder %s271, %s273
    %p280 = scmp.eq.s32.totalorder %s32, 3
    %p281 = por %p279, %p280
    %p282 = scmp.ne.s32.totalorder %s273, %s274
    %p283 = scmp.eq.s32.totalorder %s32, 0
    %p284 = por %p282, %p283
    %p285 = scmp.ne.s32.totalorder %s273, %s274
    %p286 = scmp.eq.s32.totalorder %s33, 3
    %p287 = por %p285, %p286
    %p289 = scmp.ne.s32.totalorder %s274, %s288
    %p290 = scmp.eq.s32.totalorder %s33, 0
    %p291 = por %p289, %p290
    %s293 = sadd.s32 %s292, 1
    %p296 = scmp.eq.s32.totalorder %s27, 3
    %p297 = scmp.ne.s32.totalorder %s292, %s294
    %p298 = scmp.eq.s32.totalorder %s27, 0
    %p299 = por %p297, %p298
    %p300 = scmp.ne.s32.totalorder %s292, %s294
    %p301 = scmp.eq.s32.totalorder %s32, 3
    %p302 = por %p300, %p301
    %p303 = scmp.ne.s32.totalorder %s294, %s295
    %p304 = scmp.eq.s32.totalorder %s32, 0
    %p305 = por %p303, %p304
    %p306 = scmp.ne.s32.totalorder %s294, %s295
    %p307 = scmp.eq.s32.totalorder %s33, 3
    %p308 = por %p306, %p307
    %p310 = scmp.ne.s32.totalorder %s295, %s309
    %p311 = scmp.eq.s32.totalorder %s33, 0
    %p312 = por %p310, %p311
    %s314 = sadd.s32 %s313, 1
    %p317 = scmp.eq.s32.totalorder %s27, 3
    %p318 = scmp.ne.s32.totalorder %s313, %s315
    %p319 = scmp.eq.s32.totalorder %s27, 0
    %p320 = por %p318, %p319
    %p321 = scmp.ne.s32.totalorder %s313, %s315
    %p322 = scmp.eq.s32.totalorder %s32, 3
    %p323 = por %p321, %p322
    %p324 = scmp.ne.s32.totalorder %s315, %s316
    %p325 = scmp.eq.s32.totalorder %s32, 0
    %p326 = por %p324, %p325
    %p327 = scmp.ne.s32.totalorder %s315, %s316
    %p328 = scmp.eq.s32.totalorder %s33, 3
    %p329 = por %p327, %p328
    %p331 = scmp.ne.s32.totalorder %s316, %s330
    %p332 = scmp.eq.s32.totalorder %s33, 0
    %p333 = por %p331, %p332
    %s335 = sadd.s32 %s334, 1
    %p338 = scmp.eq.s32.totalorder %s27, 3
    %p339 = scmp.ne.s32.totalorder %s334, %s336
    %p340 = scmp.eq.s32.totalorder %s27, 0
    %p341 = por %p339, %p340
    %p342 = scmp.ne.s32.totalorder %s334, %s336
    %p343 = scmp.eq.s32.totalorder %s32, 3
    %p344 = por %p342, %p343
    %p345 = scmp.ne.s32.totalorder %s336, %s337
    %p346 = scmp.eq.s32.totalorder %s32, 0
    %p347 = por %p345, %p346
    %p348 = scmp.ne.s32.totalorder %s336, %s337
    %p349 = scmp.eq.s32.totalorder %s33, 3
    %p350 = por %p348, %p349
    %p352 = scmp.ne.s32.totalorder %s337, %s351
    %p353 = scmp.eq.s32.totalorder %s33, 0
    %p354 = por %p352, %p353
    %s356 = sadd.s32 %s355, 1
    %p359 = scmp.eq.s32.totalorder %s27, 3
    %p360 = scmp.ne.s32.totalorder %s355, %s357
    %p361 = scmp.eq.s32.totalorder %s27, 0
    %p362 = por %p360, %p361
    %p363 = scmp.ne.s32.totalorder %s355, %s357
    %p364 = scmp.eq.s32.totalorder %s32, 3
    %p365 = por %p363, %p364
    %p366 = scmp.ne.s32.totalorder %s357, %s358
    %p367 = scmp.eq.s32.totalorder %s32, 0
    %p368 = por %p366, %p367
    %p369 = scmp.ne.s32.totalorder %s357, %s358
    %p370 = scmp.eq.s32.totalorder %s33, 3
    %p371 = por %p369, %p370
    %p373 = scmp.ne.s32.totalorder %s358, %s372
    %p374 = scmp.eq.s32.totalorder %s33, 0
    %p375 = por %p373, %p374
    %s377 = sadd.s32 %s376, 1
    %p380 = scmp.eq.s32.totalorder %s27, 3
    %p381 = scmp.ne.s32.totalorder %s376, %s378
    %p382 = scmp.eq.s32.totalorder %s27, 0
    %p383 = por %p381, %p382
    %p384 = scmp.ne.s32.totalorder %s376, %s378
    %p385 = scmp.eq.s32.totalorder %s32, 3
    %p386 = por %p384, %p385
    %p387 = scmp.ne.s32.totalorder %s378, %s379
    %p388 = scmp.eq.s32.totalorder %s32, 0
    %p389 = por %p387, %p388
    %p390 = scmp.ne.s32.totalorder %s378, %s379
    %p391 = scmp.eq.s32.totalorder %s33, 3
    %p392 = por %p390, %p391
    %p394 = scmp.ne.s32.totalorder %s379, %s393
    %p395 = scmp.eq.s32.totalorder %s33, 0
    %p396 = por %p394, %p395
    %s398 = sadd.s32 %s397, 1
    %p401 = scmp.eq.s32.totalorder %s27, 3
    %p402 = scmp.ne.s32.totalorder %s397, %s399
    %p403 = scmp.eq.s32.totalorder %s27, 0
    %p404 = por %p402, %p403
    %p405 = scmp.ne.s32.totalorder %s397, %s399
    %p406 = scmp.eq.s32.totalorder %s32, 3
    %p407 = por %p405, %p406
    %p408 = scmp.ne.s32.totalorder %s399, %s400
    %p409 = scmp.eq.s32.totalorder %s32, 0
    %p410 = por %p408, %p409
    %p411 = scmp.ne.s32.totalorder %s399, %s400
    %p412 = scmp.eq.s32.totalorder %s33, 3
    %p413 = por %p411, %p412
    %p415 = scmp.ne.s32.totalorder %s400, %s414
    %p416 = scmp.eq.s32.totalorder %s33, 0
    %p417 = por %p415, %p416
    %s419 = sadd.s32 %s418, 1
    %p422 = scmp.eq.s32.totalorder %s27, 3
    %p423 = scmp.ne.s32.totalorder %s418, %s420
    %p424 = scmp.eq.s32.totalorder %s27, 0
    %p425 = por %p423, %p424
    %p426 = scmp.ne.s32.totalorder %s418, %s420
    %p427 = scmp.eq.s32.totalorder %s32, 3
    %p428 = por %p426, %p427
    %p429 = scmp.ne.s32.totalorder %s420, %s421
    %p430 = scmp.eq.s32.totalorder %s32, 0
    %p431 = por %p429, %p430
    %p432 = scmp.ne.s32.totalorder %s420, %s421
    %p433 = scmp.eq.s32.totalorder %s33, 3
    %p434 = por %p432, %p433
    %p436 = scmp.ne.s32.totalorder %s421, %s435
    %p437 = scmp.eq.s32.totalorder %s33, 0
    %p438 = por %p436, %p437
    %s440 = sadd.s32 %s439, 1
    %p443 = scmp.eq.s32.totalorder %s27, 3
    %p444 = scmp.ne.s32.totalorder %s439, %s441
    %p445 = scmp.eq.s32.totalorder %s27, 0
    %p446 = por %p444, %p445
    %p447 = scmp.ne.s32.totalorder %s439, %s441
    %p448 = scmp.eq.s32.totalorder %s32, 3
    %p449 = por %p447, %p448
    %p450 = scmp.ne.s32.totalorder %s441, %s442
    %p451 = scmp.eq.s32.totalorder %s32, 0
    %p452 = por %p450, %p451
    %p453 = scmp.ne.s32.totalorder %s441, %s442
    %p454 = scmp.eq.s32.totalorder %s33, 3
    %p455 = por %p453, %p454
    %p457 = scmp.ne.s32.totalorder %s442, %s456
    %p458 = scmp.eq.s32.totalorder %s33, 0
    %p459 = por %p457, %p458
    %p460 = scmp.le.s32.totalorder 1, %s27
    %p461 = scmp.lt.s32.totalorder %s27, 5
    %p462 = pnand %p460, %p461
    %p463 = pneg %p462
    // Predicated region
    $region9: #{siamese_forward.1} parent=5 // pred_check
      _
    $region10: #{siamese_forward.1} parent=5 // pred_check_branch
      %465 = sbr.rel (%p462) target = $region12
    $region11: #{siamese_forward.1} parent=5 // pred_region
      %s466 = ssub.s32 %s27, 1
      // Predicated region
      $region13: #{siamese_forward.1} parent=11 // pred_check
        %p467 = pneg %p48
      $region14: #{siamese_forward.1} parent=11 // pred_check_branch
        %469 = sbr.rel (%p467) target = $region16
      $region15: #{siamese_forward.1} parent=11 // pred_region
        _
      $region16: #{siamese_forward.1} parent=11 // pred_fallthru
        _
      // Predicated region
      $region17: #{siamese_forward.1} parent=11 // pred_check
        %p470 = pneg %p69
      $region18: #{siamese_forward.1} parent=11 // pred_check_branch
        %472 = sbr.rel (%p470) target = $region20
      $region19: #{siamese_forward.1} parent=11 // pred_region
        _
      $region20: #{siamese_forward.1} parent=11 // pred_fallthru
        _
      // Predicated region
      $region21: #{siamese_forward.1} parent=11 // pred_check
        %p473 = pneg %p90
      $region22: #{siamese_forward.1} parent=11 // pred_check_branch
        %475 = sbr.rel (%p473) target = $region24
      $region23: #{siamese_forward.1} parent=11 // pred_region
        _
      $region24: #{siamese_forward.1} parent=11 // pred_fallthru
        _
      // Predicated region
      $region25: #{siamese_forward.1} parent=11 // pred_check
        %p476 = pneg %p111
      $region26: #{siamese_forward.1} parent=11 // pred_check_branch
        %478 = sbr.rel (%p476) target = $region28
      $region27: #{siamese_forward.1} parent=11 // pred_region
        _
      $region28: #{siamese_forward.1} parent=11 // pred_fallthru
        _
      // Predicated region
      $region29: #{siamese_forward.1} parent=11 // pred_check
        %p479 = pneg %p132
      $region30: #{siamese_forward.1} parent=11 // pred_check_branch
        %481 = sbr.rel (%p479) target = $region32
      $region31: #{siamese_forward.1} parent=11 // pred_region
        _
      $region32: #{siamese_forward.1} parent=11 // pred_fallthru
        _
      // Predicated region
      $region33: #{siamese_forward.1} parent=11 // pred_check
        %p482 = pneg %p153
      $region34: #{siamese_forward.1} parent=11 // pred_check_branch
        %484 = sbr.rel (%p482) target = $region36
      $region35: #{siamese_forward.1} parent=11 // pred_region
        _
      $region36: #{siamese_forward.1} parent=11 // pred_fallthru
        _
      // Predicated region
      $region37: #{siamese_forward.1} parent=11 // pred_check
        %p485 = pneg %p174
      $region38: #{siamese_forward.1} parent=11 // pred_check_branch
        %487 = sbr.rel (%p485) target = $region40
      $region39: #{siamese_forward.1} parent=11 // pred_region
        _
      $region40: #{siamese_forward.1} parent=11 // pred_fallthru
        _
      // Predicated region
      $region41: #{siamese_forward.1} parent=11 // pred_check
        %p488 = pneg %p221
      $region42: #{siamese_forward.1} parent=11 // pred_check_branch
        %490 = sbr.rel (%p488) target = $region44
      $region43: #{siamese_forward.1} parent=11 // pred_region
        _
      $region44: #{siamese_forward.1} parent=11 // pred_fallthru
        _
      // Predicated region
      $region45: #{siamese_forward.1} parent=11 // pred_check
        %p491 = pneg %p242
      $region46: #{siamese_forward.1} parent=11 // pred_check_branch
        %493 = sbr.rel (%p491) target = $region48
      $region47: #{siamese_forward.1} parent=11 // pred_region
        _
      $region48: #{siamese_forward.1} parent=11 // pred_fallthru
        _
      // Predicated region
      $region49: #{siamese_forward.1} parent=11 // pred_check
        %p494 = pneg %p263
      $region50: #{siamese_forward.1} parent=11 // pred_check_branch
        %496 = sbr.rel (%p494) target = $region52
      $region51: #{siamese_forward.1} parent=11 // pred_region
        _
      $region52: #{siamese_forward.1} parent=11 // pred_fallthru
        _
      // Predicated region
      $region53: #{siamese_forward.1} parent=11 // pred_check
        %p497 = pneg %p284
      $region54: #{siamese_forward.1} parent=11 // pred_check_branch
        %499 = sbr.rel (%p497) target = $region56
      $region55: #{siamese_forward.1} parent=11 // pred_region
        _
      $region56: #{siamese_forward.1} parent=11 // pred_fallthru
        _
      // Predicated region
      $region57: #{siamese_forward.1} parent=11 // pred_check
        %p500 = pneg %p305
      $region58: #{siamese_forward.1} parent=11 // pred_check_branch
        %502 = sbr.rel (%p500) target = $region60
      $region59: #{siamese_forward.1} parent=11 // pred_region
        _
      $region60: #{siamese_forward.1} parent=11 // pred_fallthru
        _
      // Predicated region
      $region61: #{siamese_forward.1} parent=11 // pred_check
        %p503 = pneg %p326
      $region62: #{siamese_forward.1} parent=11 // pred_check_branch
        %505 = sbr.rel (%p503) target = $region64
      $region63: #{siamese_forward.1} parent=11 // pred_region
        _
      $region64: #{siamese_forward.1} parent=11 // pred_fallthru
        _
      // Predicated region
      $region65: #{siamese_forward.1} parent=11 // pred_check
        %p506 = pneg %p347
      $region66: #{siamese_forward.1} parent=11 // pred_check_branch
        %508 = sbr.rel (%p506) target = $region68
      $region67: #{siamese_forward.1} parent=11 // pred_region
        _
      $region68: #{siamese_forward.1} parent=11 // pred_fallthru
        _
      // Predicated region
      $region69: #{siamese_forward.1} parent=11 // pred_check
        %p509 = pneg %p368
      $region70: #{siamese_forward.1} parent=11 // pred_check_branch
        %511 = sbr.rel (%p509) target = $region72
      $region71: #{siamese_forward.1} parent=11 // pred_region
        _
      $region72: #{siamese_forward.1} parent=11 // pred_fallthru
        _
      // Predicated region
      $region73: #{siamese_forward.1} parent=11 // pred_check
        %p512 = pneg %p389
      $region74: #{siamese_forward.1} parent=11 // pred_check_branch
        %514 = sbr.rel (%p512) target = $region76
      $region75: #{siamese_forward.1} parent=11 // pred_region
        _
      $region76: #{siamese_forward.1} parent=11 // pred_fallthru
        _
      // Predicated region
      $region77: #{siamese_forward.1} parent=11 // pred_check
        %p515 = pneg %p410
      $region78: #{siamese_forward.1} parent=11 // pred_check_branch
        %517 = sbr.rel (%p515) target = $region80
      $region79: #{siamese_forward.1} parent=11 // pred_region
        _
      $region80: #{siamese_forward.1} parent=11 // pred_fallthru
        _
      // Predicated region
      $region81: #{siamese_forward.1} parent=11 // pred_check
        %p518 = pneg %p431
      $region82: #{siamese_forward.1} parent=11 // pred_check_branch
        %520 = sbr.rel (%p518) target = $region84
      $region83: #{siamese_forward.1} parent=11 // pred_region
        _
      $region84: #{siamese_forward.1} parent=11 // pred_fallthru
        _
    $region12: #{siamese_forward.1} parent=5 // pred_fallthru
      _
    %p521 = scmp.lt.s32.totalorder %s27, 4
    // Predicated region
    $region85: #{siamese_forward.1} parent=5 // pred_check
      %p522 = pneg %p521
    $region86: #{siamese_forward.1} parent=5 // pred_check_branch
      %524 = sbr.rel (%p522) target = $region88
    $region87: #{siamese_forward.1} parent=5 // pred_region
      // Predicated region
      $region89: #{siamese_forward.1} parent=87 // pred_check
        %p525 = pneg %p194
      $region90: #{siamese_forward.1} parent=87 // pred_check_branch
        %527 = sbr.rel (%p525) target = $region92
      $region91: #{siamese_forward.1} parent=87 // pred_region
        %s528 = smul.u32 64, %s27
        %p529 = scmp.lt.s32.totalorder %s528, 255
        %s530 = scalar_select %p529, %s528, 255
        %s531 = smul.addr %s530, 4
        %s532 = smul.addr %s531, 4
        %s533 = scalar_lea.vmem %s7, %s532
        %s534 = smul.u32 64, %s27
      $region92: #{siamese_forward.1} parent=87 // pred_fallthru
        _
    $region88: #{siamese_forward.1} parent=5 // pred_fallthru
      _
    %p535 = scmp.le.s32.totalorder 1, %s27
    %p536 = scmp.lt.s32.totalorder %s27, 5
    %p537 = pnand %p535, %p536
    %p538 = pneg %p537
    // Predicated region
    $region93: #{siamese_forward.1} parent=5 // pred_check
      _
    $region94: #{siamese_forward.1} parent=5 // pred_check_branch
      %540 = sbr.rel (%p537) target = $region96
    $region95: #{siamese_forward.1} parent=5 // pred_region
      %s541 = ssub.s32 %s27, 1
      %p542 = pneg %p48
      %p543 = pneg %p45
      %p544 = pneg %p69
      %p545 = pneg %p66
      %p546 = pneg %p90
      %p547 = pneg %p87
      %p548 = pneg %p111
      %p549 = pneg %p108
      %p550 = pneg %p132
      %p551 = pneg %p129
      %p552 = pneg %p153
      %p553 = pneg %p150
      %p554 = pneg %p174
      %p555 = pneg %p171
      %s556 = smul.u32 64, %s32
      %p557 = scmp.lt.s32.totalorder %s556, 255
      %s558 = scalar_select %p557, %s556, 255
      %s559 = smul.addr %s558, 4
      %s560 = smul.addr %s559, 4
      %s561 = scalar_lea.vmem %s7, %s560
      %p562 = pneg %p200
      %p563 = pneg %p197
      %p564 = pneg %p221
      %p565 = pneg %p218
      %p566 = pneg %p242
      %p567 = pneg %p239
      %p568 = pneg %p263
      %p569 = pneg %p260
      %p570 = pneg %p284
      %p571 = pneg %p281
      %p572 = pneg %p305
      %p573 = pneg %p302
      %p574 = pneg %p326
      %p575 = pneg %p323
      %p576 = pneg %p347
      %p577 = pneg %p344
      %p578 = pneg %p368
      %p579 = pneg %p365
      %p580 = pneg %p389
      %p581 = pneg %p386
      %p582 = pneg %p410
      %p583 = pneg %p407
      %p584 = pneg %p431
      %p585 = pneg %p428
      %p586 = pneg %p452
      %p587 = pneg %p449
      %s588 = smul.u32 64, %s32
      %p589 = scmp.lt.s32.totalorder %s588, 255
      %s590 = scalar_select %p589, %s588, 255
      %s591 = smul.addr %s590, 4
      %s592 = smul.addr %s591, 4
      %s593 = scalar_lea.vmem %s7, %s592
      %s594 = smul.u32 64, %s32
      %p596 = scmp.eq.s32.totalorder %s32, 0
      // Predicated region
      $region97: #{siamese_forward.1} parent=95 // pred_check
        %p597 = pneg %p596
      $region98: #{siamese_forward.1} parent=95 // pred_check_branch
        %599 = sbr.rel (%p597) target = $region100
      $region99: #{siamese_forward.1} parent=95 // pred_region
        %v600 = vld [vmem:[%s0] sm:$0xf]
        %v601 = vld [vmem:[%s0 + $0x4] sm:$0xf]
        %v602 = vld [vmem:[%s0 + $0x8] sm:$0xf]
        %v603 = vld [vmem:[%s0 + $0xc] sm:$0xf]
        %v604 = vld [vmem:[%s0 + $0x10] sm:$0xf]
        %v605 = vld [vmem:[%s0 + $0x14] sm:$0xf]
        %v606 = vld [vmem:[%s0 + $0x18] sm:$0xf]
        %v607 = vld [vmem:[%s0 + $0x1c] sm:$0xf]
        %v608 = vld [vmem:[%s0 + $0x20] sm:$0xf]
        %v609 = vld [vmem:[%s0 + $0x24] sm:$0xf]
        %v610 = vld [vmem:[%s0 + $0x28] sm:$0xf]
        %v611 = vld [vmem:[%s0 + $0x2c] sm:$0xf]
        %v612 = vld [vmem:[%s0 + $0x30] sm:$0xf]
        %v613 = vld [vmem:[%s0 + $0x34] sm:$0xf]
        %v614 = vld [vmem:[%s0 + $0x38] sm:$0xf]
        %v615 = vld [vmem:[%s0 + $0x3c] sm:$0xf]
        %v616 = vld [vmem:[%s0 + $0x40] sm:$0xf]
        %v617 = vld [vmem:[%s0 + $0x44] sm:$0xf]
        %v618 = vld [vmem:[%s0 + $0x48] sm:$0xf]
        %v619 = vld [vmem:[%s0 + $0x4c] sm:$0xf]
        %v620 = vld [vmem:[%s0 + $0x50] sm:$0xf]
        %v621 = vld [vmem:[%s0 + $0x54] sm:$0xf]
        %v622 = vld [vmem:[%s0 + $0x58] sm:$0xf]
        %v623 = vld [vmem:[%s0 + $0x5c] sm:$0xf]
        %v624 = vld [vmem:[%s0 + $0x60] sm:$0xf]
        %v625 = vld [vmem:[%s0 + $0x64] sm:$0xf]
        %v626 = vld [vmem:[%s0 + $0x68] sm:$0xf]
        %v627 = vld [vmem:[%s0 + $0x6c] sm:$0xf]
        %v628 = vld [vmem:[%s0 + $0x70] sm:$0xf]
        %v629 = vld [vmem:[%s0 + $0x74] sm:$0xf]
        %v630 = vld [vmem:[%s0 + $0x78] sm:$0xf]
        %v631 = vld [vmem:[%s0 + $0x7c] sm:$0xf]
        %v632 = vld [vmem:[%s0 + $0x80] sm:$0xf]
        %v633 = vld [vmem:[%s0 + $0x84] sm:$0xf]
        %v634 = vld [vmem:[%s0 + $0x88] sm:$0xf]
        %v635 = vld [vmem:[%s0 + $0x8c] sm:$0xf]
        %v636 = vld [vmem:[%s0 + $0x90] sm:$0xf]
        %v637 = vld [vmem:[%s0 + $0x94] sm:$0xf]
        %v638 = vld [vmem:[%s0 + $0x98] sm:$0xf]
        %v639 = vld [vmem:[%s0 + $0x9c] sm:$0xf]
        %v640 = vld [vmem:[%s0 + $0xa0] sm:$0xf]
        %v641 = vld [vmem:[%s0 + $0xa4] sm:$0xf]
        %v642 = vld [vmem:[%s0 + $0xa8] sm:$0xf]
        %v643 = vld [vmem:[%s0 + $0xac] sm:$0xf]
        %v644 = vld [vmem:[%s0 + $0xb0] sm:$0xf]
        %v645 = vld [vmem:[%s0 + $0xb4] sm:$0xf]
        %v646 = vld [vmem:[%s0 + $0xb8] sm:$0xf]
        %v647 = vld [vmem:[%s0 + $0xbc] sm:$0xf]
        %v648 = vld [vmem:[%s0 + $0xc0] sm:$0xf]
        %v649 = vld [vmem:[%s0 + $0xc4] sm:$0xf]
        %v650 = vld [vmem:[%s0 + $0xc8] sm:$0xf]
        %v651 = vld [vmem:[%s0 + $0xcc] sm:$0xf]
        %v652 = vld [vmem:[%s0 + $0xd0] sm:$0xf]
        %v653 = vld [vmem:[%s0 + $0xd4] sm:$0xf]
        %v654 = vld [vmem:[%s0 + $0xd8] sm:$0xf]
        %v655 = vld [vmem:[%s0 + $0xdc] sm:$0xf]
        %v656 = vld [vmem:[%s0 + $0xe0] sm:$0xf]
        %v657 = vld [vmem:[%s0 + $0xe4] sm:$0xf]
        %v658 = vld [vmem:[%s0 + $0xe8] sm:$0xf]
        %v659 = vld [vmem:[%s0 + $0xec] sm:$0xf]
        %v660 = vld [vmem:[%s0 + $0xf0] sm:$0xf]
        %v661 = vld [vmem:[%s0 + $0xf4] sm:$0xf]
        %v662 = vld [vmem:[%s0 + $0xf8] sm:$0xf]
        %v663 = vld [vmem:[%s0 + $0xfc] sm:$0xf]
        %v664 = vld [vmem:[%s0 + $0x100] sm:$0xf]
        %v665 = vld [vmem:[%s0 + $0x104] sm:$0xf]
        %v666 = vld [vmem:[%s0 + $0x108] sm:$0xf]
        %v667 = vld [vmem:[%s0 + $0x10c] sm:$0xf]
        %v668 = vld [vmem:[%s0 + $0x110] sm:$0xf]
        %v669 = vld [vmem:[%s0 + $0x114] sm:$0xf]
        %v670 = vld [vmem:[%s0 + $0x118] sm:$0xf]
        %v671 = vld [vmem:[%s0 + $0x11c] sm:$0xf]
        %v672 = vld [vmem:[%s0 + $0x120] sm:$0xf]
        %v673 = vld [vmem:[%s0 + $0x124] sm:$0xf]
        %v674 = vld [vmem:[%s0 + $0x128] sm:$0xf]
        %v675 = vld [vmem:[%s0 + $0x12c] sm:$0xf]
        %v676 = vld [vmem:[%s0 + $0x130] sm:$0xf]
        %v677 = vld [vmem:[%s0 + $0x134] sm:$0xf]
        %v678 = vld [vmem:[%s0 + $0x138] sm:$0xf]
        %v679 = vld [vmem:[%s0 + $0x13c] sm:$0xf]
        %v680 = vld [vmem:[%s0 + $0x140] sm:$0xf]
        %v681 = vld [vmem:[%s0 + $0x144] sm:$0xf]
        %v682 = vld [vmem:[%s0 + $0x148] sm:$0xf]
        %v683 = vld [vmem:[%s0 + $0x14c] sm:$0xf]
        %v684 = vld [vmem:[%s0 + $0x150] sm:$0xf]
        %v685 = vld [vmem:[%s0 + $0x154] sm:$0xf]
        %v686 = vld [vmem:[%s0 + $0x158] sm:$0xf]
        %v687 = vld [vmem:[%s0 + $0x15c] sm:$0xf]
        %v688 = vld [vmem:[%s0 + $0x160] sm:$0xf]
        %v689 = vld [vmem:[%s0 + $0x164] sm:$0xf]
        %v690 = vld [vmem:[%s0 + $0x168] sm:$0xf]
        %v691 = vld [vmem:[%s0 + $0x16c] sm:$0xf]
        %v692 = vld [vmem:[%s0 + $0x170] sm:$0xf]
        %v693 = vld [vmem:[%s0 + $0x174] sm:$0xf]
        %v694 = vld [vmem:[%s0 + $0x178] sm:$0xf]
        %v695 = vld [vmem:[%s0 + $0x17c] sm:$0xf]
        %v696 = vld [vmem:[%s0 + $0x180] sm:$0xf]
        %v697 = vld [vmem:[%s0 + $0x184] sm:$0xf]
        %v698 = vld [vmem:[%s0 + $0x188] sm:$0xf]
        %v699 = vld [vmem:[%s0 + $0x18c] sm:$0xf]
        %v700 = vld [vmem:[%s0 + $0x190] sm:$0xf]
        %v701 = vld [vmem:[%s0 + $0x194] sm:$0xf]
        %v702 = vld [vmem:[%s0 + $0x198] sm:$0xf]
        %v703 = vld [vmem:[%s0 + $0x19c] sm:$0xf]
        %v704 = vld [vmem:[%s0 + $0x1a0] sm:$0xf]
        %v705 = vld [vmem:[%s0 + $0x1a4] sm:$0xf]
        %v706 = vld [vmem:[%s0 + $0x1a8] sm:$0xf]
        %v707 = vld [vmem:[%s0 + $0x1ac] sm:$0xf]
        %v708 = vld [vmem:[%s0 + $0x1b0] sm:$0xf]
        %v709 = vld [vmem:[%s0 + $0x1b4] sm:$0xf]
        %v710 = vld [vmem:[%s0 + $0x1b8] sm:$0xf]
        %v711 = vld [vmem:[%s0 + $0x1bc] sm:$0xf]
        %v712 = vld [vmem:[%s0 + $0x1c0] sm:$0xf]
        %v713 = vld [vmem:[%s0 + $0x1c4] sm:$0xf]
        %v714 = vld [vmem:[%s0 + $0x1c8] sm:$0xf]
        %v715 = vld [vmem:[%s0 + $0x1cc] sm:$0xf]
        %v716 = vld [vmem:[%s0 + $0x1d0] sm:$0xf]
        %v717 = vld [vmem:[%s0 + $0x1d4] sm:$0xf]
        %v718 = vld [vmem:[%s0 + $0x1d8] sm:$0xf]
        %v719 = vld [vmem:[%s0 + $0x1dc] sm:$0xf]
        %v720 = vld [vmem:[%s0 + $0x1e0] sm:$0xf]
        %v721 = vld [vmem:[%s0 + $0x1e4] sm:$0xf]
        %v722 = vld [vmem:[%s0 + $0x1e8] sm:$0xf]
        %v723 = vld [vmem:[%s0 + $0x1ec] sm:$0xf]
        %v724 = vld [vmem:[%s0 + $0x1f0] sm:$0xf]
        %v725 = vld [vmem:[%s0 + $0x1f4] sm:$0xf]
        %v726 = vld [vmem:[%s0 + $0x1f8] sm:$0xf]
        %v727 = vld [vmem:[%s0 + $0x1fc] sm:$0xf]
        %v728 = vld [vmem:[%s3] sm:$0xf]
        %v729 = vld [vmem:[%s3 + $0x4] sm:$0xf]
        %v730 = vld [vmem:[%s3 + $0x8] sm:$0xf]
        %v731 = vld [vmem:[%s3 + $0xc] sm:$0xf]
        %v732 = vld [vmem:[%s4] sm:$0x1]
        %v734 = vperm.slane %v732, 0
        %v864 = vunpack.c.l.b16 %v600
        %v865 = vunpack.c.l.b16 %v601
        %v866 = vunpack.c.l.b16 %v602
        %v867 = vunpack.c.l.b16 %v603
        %v868 = vunpack.c.l.b16 %v604
        %v869 = vunpack.c.l.b16 %v605
        %v870 = vunpack.c.l.b16 %v606
        %v871 = vunpack.c.l.b16 %v607
        %v872 = vunpack.c.l.b16 %v608
        %v873 = vunpack.c.l.b16 %v609
        %v874 = vunpack.c.l.b16 %v610
        %v875 = vunpack.c.l.b16 %v611
        %v876 = vunpack.c.l.b16 %v612
        %v877 = vunpack.c.l.b16 %v613
        %v878 = vunpack.c.l.b16 %v614
        %v879 = vunpack.c.l.b16 %v615
        %v880 = vunpack.c.l.b16 %v616
        %v881 = vunpack.c.l.b16 %v617
        %v882 = vunpack.c.l.b16 %v618
        %v883 = vunpack.c.l.b16 %v619
        %v884 = vunpack.c.l.b16 %v620
        %v885 = vunpack.c.l.b16 %v621
        %v886 = vunpack.c.l.b16 %v622
        %v887 = vunpack.c.l.b16 %v623
        %v888 = vunpack.c.l.b16 %v624
        %v889 = vunpack.c.l.b16 %v625
        %v890 = vunpack.c.l.b16 %v626
        %v891 = vunpack.c.l.b16 %v627
        %v892 = vunpack.c.l.b16 %v628
        %v893 = vunpack.c.l.b16 %v629
        %v894 = vunpack.c.l.b16 %v630
        %v895 = vunpack.c.l.b16 %v631
        %v896 = vunpack.c.l.b16 %v632
        %v897 = vunpack.c.l.b16 %v633
        %v898 = vunpack.c.l.b16 %v634
        %v899 = vunpack.c.l.b16 %v635
        %v900 = vunpack.c.l.b16 %v636
        %v901 = vunpack.c.l.b16 %v637
        %v902 = vunpack.c.l.b16 %v638
        %v903 = vunpack.c.l.b16 %v639
        %v904 = vunpack.c.l.b16 %v640
        %v905 = vunpack.c.l.b16 %v641
        %v906 = vunpack.c.l.b16 %v642
        %v907 = vunpack.c.l.b16 %v643
        %v908 = vunpack.c.l.b16 %v644
        %v909 = vunpack.c.l.b16 %v645
        %v910 = vunpack.c.l.b16 %v646
        %v911 = vunpack.c.l.b16 %v647
        %v912 = vunpack.c.l.b16 %v648
        %v913 = vunpack.c.l.b16 %v649
        %v914 = vunpack.c.l.b16 %v650
        %v915 = vunpack.c.l.b16 %v651
        %v916 = vunpack.c.l.b16 %v652
        %v917 = vunpack.c.l.b16 %v653
        %v918 = vunpack.c.l.b16 %v654
        %v919 = vunpack.c.l.b16 %v655
        %v920 = vunpack.c.l.b16 %v656
        %v921 = vunpack.c.l.b16 %v657
        %v922 = vunpack.c.l.b16 %v658
        %v923 = vunpack.c.l.b16 %v659
        %v924 = vunpack.c.l.b16 %v660
        %v925 = vunpack.c.l.b16 %v661
        %v926 = vunpack.c.l.b16 %v662
        %v927 = vunpack.c.l.b16 %v663
        %v928 = vunpack.c.l.b16 %v664
        %v929 = vunpack.c.l.b16 %v665
        %v930 = vunpack.c.l.b16 %v666
        %v931 = vunpack.c.l.b16 %v667
        %v932 = vunpack.c.l.b16 %v668
        %v933 = vunpack.c.l.b16 %v669
        %v934 = vunpack.c.l.b16 %v670
        %v935 = vunpack.c.l.b16 %v671
        %v936 = vunpack.c.l.b16 %v672
        %v937 = vunpack.c.l.b16 %v673
        %v938 = vunpack.c.l.b16 %v674
        %v939 = vunpack.c.l.b16 %v675
        %v940 = vunpack.c.l.b16 %v676
        %v941 = vunpack.c.l.b16 %v677
        %v942 = vunpack.c.l.b16 %v678
        %v943 = vunpack.c.l.b16 %v679
        %v944 = vunpack.c.l.b16 %v680
        %v945 = vunpack.c.l.b16 %v681
        %v946 = vunpack.c.l.b16 %v682
        %v947 = vunpack.c.l.b16 %v683
        %v948 = vunpack.c.l.b16 %v684
        %v949 = vunpack.c.l.b16 %v685
        %v950 = vunpack.c.l.b16 %v686
        %v951 = vunpack.c.l.b16 %v687
        %v952 = vunpack.c.l.b16 %v688
        %v953 = vunpack.c.l.b16 %v689
        %v954 = vunpack.c.l.b16 %v690
        %v955 = vunpack.c.l.b16 %v691
        %v956 = vunpack.c.l.b16 %v692
        %v957 = vunpack.c.l.b16 %v693
        %v958 = vunpack.c.l.b16 %v694
        %v959 = vunpack.c.l.b16 %v695
        %v960 = vunpack.c.l.b16 %v696
        %v961 = vunpack.c.l.b16 %v697
        %v962 = vunpack.c.l.b16 %v698
        %v963 = vunpack.c.l.b16 %v699
        %v964 = vunpack.c.l.b16 %v700
        %v965 = vunpack.c.l.b16 %v701
        %v966 = vunpack.c.l.b16 %v702
        %v967 = vunpack.c.l.b16 %v703
        %v968 = vunpack.c.l.b16 %v704
        %v969 = vunpack.c.l.b16 %v705
        %v970 = vunpack.c.l.b16 %v706
        %v971 = vunpack.c.l.b16 %v707
        %v972 = vunpack.c.l.b16 %v708
        %v973 = vunpack.c.l.b16 %v709
        %v974 = vunpack.c.l.b16 %v710
        %v975 = vunpack.c.l.b16 %v711
        %v976 = vunpack.c.l.b16 %v712
        %v977 = vunpack.c.l.b16 %v713
        %v978 = vunpack.c.l.b16 %v714
        %v979 = vunpack.c.l.b16 %v715
        %v980 = vunpack.c.l.b16 %v716
        %v981 = vunpack.c.l.b16 %v717
        %v982 = vunpack.c.l.b16 %v718
        %v983 = vunpack.c.l.b16 %v719
        %v984 = vunpack.c.l.b16 %v720
        %v985 = vunpack.c.l.b16 %v721
        %v986 = vunpack.c.l.b16 %v722
        %v987 = vunpack.c.l.b16 %v723
        %v988 = vunpack.c.l.b16 %v724
        %v989 = vunpack.c.l.b16 %v725
        %v990 = vunpack.c.l.b16 %v726
        %v991 = vunpack.c.l.b16 %v727
        %v992 = vpack.c.b16 %v865, %v864
        %v993 = vpack.c.b16 %v867, %v866
        %v994 = vpack.c.b16 %v869, %v868
        %v995 = vpack.c.b16 %v871, %v870
        %v996 = vpack.c.b16 %v873, %v872
        %v997 = vpack.c.b16 %v875, %v874
        %v998 = vpack.c.b16 %v877, %v876
        %v999 = vpack.c.b16 %v879, %v878
        %v1000 = vpack.c.b16 %v881, %v880
        %v1001 = vpack.c.b16 %v883, %v882
        %v1002 = vpack.c.b16 %v885, %v884
        %v1003 = vpack.c.b16 %v887, %v886
        %v1004 = vpack.c.b16 %v889, %v888
        %v1005 = vpack.c.b16 %v891, %v890
        %v1006 = vpack.c.b16 %v893, %v892
        %v1007 = vpack.c.b16 %v895, %v894
        %v1008 = vpack.c.b16 %v897, %v896
        %v1009 = vpack.c.b16 %v899, %v898
        %v1010 = vpack.c.b16 %v901, %v900
        %v1011 = vpack.c.b16 %v903, %v902
        %v1012 = vpack.c.b16 %v905, %v904
        %v1013 = vpack.c.b16 %v907, %v906
        %v1014 = vpack.c.b16 %v909, %v908
        %v1015 = vpack.c.b16 %v911, %v910
        %v1016 = vpack.c.b16 %v913, %v912
        %v1017 = vpack.c.b16 %v915, %v914
        %v1018 = vpack.c.b16 %v917, %v916
        %v1019 = vpack.c.b16 %v919, %v918
        %v1020 = vpack.c.b16 %v921, %v920
        %v1021 = vpack.c.b16 %v923, %v922
        %v1022 = vpack.c.b16 %v925, %v924
        %v1023 = vpack.c.b16 %v927, %v926
        %v1024 = vpack.c.b16 %v929, %v928
        %v1025 = vpack.c.b16 %v931, %v930
        %v1026 = vpack.c.b16 %v933, %v932
        %v1027 = vpack.c.b16 %v935, %v934
        %v1028 = vpack.c.b16 %v937, %v936
        %v1029 = vpack.c.b16 %v939, %v938
        %v1030 = vpack.c.b16 %v941, %v940
        %v1031 = vpack.c.b16 %v943, %v942
        %v1032 = vpack.c.b16 %v945, %v944
        %v1033 = vpack.c.b16 %v947, %v946
        %v1034 = vpack.c.b16 %v949, %v948
        %v1035 = vpack.c.b16 %v951, %v950
        %v1036 = vpack.c.b16 %v953, %v952
        %v1037 = vpack.c.b16 %v955, %v954
        %v1038 = vpack.c.b16 %v957, %v956
        %v1039 = vpack.c.b16 %v959, %v958
        %v1040 = vpack.c.b16 %v961, %v960
        %v1041 = vpack.c.b16 %v963, %v962
        %v1042 = vpack.c.b16 %v965, %v964
        %v1043 = vpack.c.b16 %v967, %v966
        %v1044 = vpack.c.b16 %v969, %v968
        %v1045 = vpack.c.b16 %v971, %v970
        %v1046 = vpack.c.b16 %v973, %v972
        %v1047 = vpack.c.b16 %v975, %v974
        %v1048 = vpack.c.b16 %v977, %v976
        %v1049 = vpack.c.b16 %v979, %v978
        %v1050 = vpack.c.b16 %v981, %v980
        %v1051 = vpack.c.b16 %v983, %v982
        %v1052 = vpack.c.b16 %v985, %v984
        %v1053 = vpack.c.b16 %v987, %v986
        %v1054 = vpack.c.b16 %v989, %v988
        %v1055 = vpack.c.b16 %v991, %v990
        %v1060 = vunpack.c.l.b16 %v728
        %v1061 = vunpack.c.l.b16 %v729
        %v1062 = vunpack.c.l.b16 %v730
        %v1063 = vunpack.c.l.b16 %v731
        %v1064 = vpack.c.b16 %v1061, %v1060
        %v1065 = vpack.c.b16 %v1063, %v1062
        %vm1068 = vcmask 261120
        %v1070 = vsel %vm1068, %v992, 0
        %v1073 = vsel %vm1068, %v993, 0
        %v1076 = vsel %vm1068, %v994, 0
        %v1079 = vsel %vm1068, %v995, 0
        %v1082 = vsel %vm1068, %v996, 0
        %v1085 = vsel %vm1068, %v997, 0
        %v1088 = vsel %vm1068, %v998, 0
        %v1091 = vsel %vm1068, %v999, 0
        %v1094 = vsel %vm1068, %v1000, 0
        %v1097 = vsel %vm1068, %v1001, 0
        %v1100 = vsel %vm1068, %v1002, 0
        %v1103 = vsel %vm1068, %v1003, 0
        %v1106 = vsel %vm1068, %v1004, 0
        %v1109 = vsel %vm1068, %v1005, 0
        %v1112 = vsel %vm1068, %v1006, 0
        %v1115 = vsel %vm1068, %v1007, 0
        %v1118 = vsel %vm1068, %v1008, 0
        %v1121 = vsel %vm1068, %v1009, 0
        %v1124 = vsel %vm1068, %v1010, 0
        %v1127 = vsel %vm1068, %v1011, 0
        %v1130 = vsel %vm1068, %v1012, 0
        %v1133 = vsel %vm1068, %v1013, 0
        %v1136 = vsel %vm1068, %v1014, 0
        %v1139 = vsel %vm1068, %v1015, 0
        %v1142 = vsel %vm1068, %v1016, 0
        %v1145 = vsel %vm1068, %v1017, 0
        %v1148 = vsel %vm1068, %v1018, 0
        %v1151 = vsel %vm1068, %v1019, 0
        %v1154 = vsel %vm1068, %v1020, 0
        %v1157 = vsel %vm1068, %v1021, 0
        %v1160 = vsel %vm1068, %v1022, 0
        %v1163 = vsel %vm1068, %v1023, 0
        %v1166 = vsel %vm1068, %v1024, 0
        %v1169 = vsel %vm1068, %v1025, 0
        %v1172 = vsel %vm1068, %v1026, 0
        %v1175 = vsel %vm1068, %v1027, 0
        %v1178 = vsel %vm1068, %v1028, 0
        %v1181 = vsel %vm1068, %v1029, 0
        %v1184 = vsel %vm1068, %v1030, 0
        %v1187 = vsel %vm1068, %v1031, 0
        %v1190 = vsel %vm1068, %v1032, 0
        %v1193 = vsel %vm1068, %v1033, 0
        %v1196 = vsel %vm1068, %v1034, 0
        %v1199 = vsel %vm1068, %v1035, 0
        %v1202 = vsel %vm1068, %v1036, 0
        %v1205 = vsel %vm1068, %v1037, 0
        %v1208 = vsel %vm1068, %v1038, 0
        %v1211 = vsel %vm1068, %v1039, 0
        %v1214 = vsel %vm1068, %v1040, 0
        %v1217 = vsel %vm1068, %v1041, 0
        %v1220 = vsel %vm1068, %v1042, 0
        %v1223 = vsel %vm1068, %v1043, 0
        %v1226 = vsel %vm1068, %v1044, 0
        %v1229 = vsel %vm1068, %v1045, 0
        %v1232 = vsel %vm1068, %v1046, 0
        %v1235 = vsel %vm1068, %v1047, 0
        %v1238 = vsel %vm1068, %v1048, 0
        %v1241 = vsel %vm1068, %v1049, 0
        %v1244 = vsel %vm1068, %v1050, 0
        %v1247 = vsel %vm1068, %v1051, 0
        %v1250 = vsel %vm1068, %v1052, 0
        %v1253 = vsel %vm1068, %v1053, 0
        %v1256 = vsel %vm1068, %v1054, 0
        %v1259 = vsel %vm1068, %v1055, 0
        %1261 = vmatpush.bf16.msra.mxu0 0
        %1262 = vmatpush.bf16.msra.mxu0 0
        %1263 = vmatpush.bf16.msra.mxu0 0
        %1264 = vmatpush.bf16.msra.mxu0 0
        %1265 = vmatpush.bf16.msra.mxu0 0
        %1266 = vmatpush.bf16.msra.mxu0 0
        %1267 = vmatpush.bf16.msra.mxu0 %v1065
        %1268 = vmatpush.bf16.msra.mxu0 %v1064
        %1269 = vmatmul.bf16.gmra.mxu0 %v1070
        %v1270 = vpop.f32.mrf.mxu0
        %v1271 = vadd.f32 %v734, %v1270
        %v1272 = vpop.f32.mrf.mxu0
        %v1273 = vadd.f32 %v734, %v1272
        %1274 = vmatmul.bf16.gmra.mxu0 %v1073
        %v1275 = vpop.f32.mrf.mxu0
        %v1276 = vadd.f32 %v734, %v1275
        %v1277 = vpop.f32.mrf.mxu0
        %v1278 = vadd.f32 %v734, %v1277
        %1279 = vmatmul.bf16.gmra.mxu0 %v1076
        %v1280 = vpop.f32.mrf.mxu0
        %v1281 = vadd.f32 %v734, %v1280
        %v1282 = vpop.f32.mrf.mxu0
        %v1283 = vadd.f32 %v734, %v1282
        %1284 = vmatmul.bf16.gmra.mxu0 %v1079
        %v1285 = vpop.f32.mrf.mxu0
        %v1286 = vadd.f32 %v734, %v1285
        %v1287 = vpop.f32.mrf.mxu0
        %v1288 = vadd.f32 %v734, %v1287
        %1289 = vmatmul.bf16.gmra.mxu0 %v1082
        %v1290 = vpop.f32.mrf.mxu0
        %v1291 = vadd.f32 %v734, %v1290
        %v1292 = vpop.f32.mrf.mxu0
        %v1293 = vadd.f32 %v734, %v1292
        %1294 = vmatmul.bf16.gmra.mxu0 %v1085
        %v1295 = vpop.f32.mrf.mxu0
        %v1296 = vadd.f32 %v734, %v1295
        %v1297 = vpop.f32.mrf.mxu0
        %v1298 = vadd.f32 %v734, %v1297
        %1299 = vmatmul.bf16.gmra.mxu0 %v1088
        %v1300 = vpop.f32.mrf.mxu0
        %v1301 = vadd.f32 %v734, %v1300
        %v1302 = vpop.f32.mrf.mxu0
        %v1303 = vadd.f32 %v734, %v1302
        %1304 = vmatmul.bf16.gmra.mxu0 %v1091
        %v1305 = vpop.f32.mrf.mxu0
        %v1306 = vadd.f32 %v734, %v1305
        %v1307 = vpop.f32.mrf.mxu0
        %v1308 = vadd.f32 %v734, %v1307
        %1309 = vmatmul.bf16.gmra.mxu0 %v1094
        %v1310 = vpop.f32.mrf.mxu0
        %v1311 = vadd.f32 %v734, %v1310
        %v1312 = vpop.f32.mrf.mxu0
        %v1313 = vadd.f32 %v734, %v1312
        %1314 = vmatmul.bf16.gmra.mxu0 %v1097
        %v1315 = vpop.f32.mrf.mxu0
        %v1316 = vadd.f32 %v734, %v1315
        %v1317 = vpop.f32.mrf.mxu0
        %v1318 = vadd.f32 %v734, %v1317
        %1319 = vmatmul.bf16.gmra.mxu0 %v1100
        %v1320 = vpop.f32.mrf.mxu0
        %v1321 = vadd.f32 %v734, %v1320
        %v1322 = vpop.f32.mrf.mxu0
        %v1323 = vadd.f32 %v734, %v1322
        %1324 = vmatmul.bf16.gmra.mxu0 %v1103
        %v1325 = vpop.f32.mrf.mxu0
        %v1326 = vadd.f32 %v734, %v1325
        %v1327 = vpop.f32.mrf.mxu0
        %v1328 = vadd.f32 %v734, %v1327
        %1329 = vmatmul.bf16.gmra.mxu0 %v1106
        %v1330 = vpop.f32.mrf.mxu0
        %v1331 = vadd.f32 %v734, %v1330
        %v1332 = vpop.f32.mrf.mxu0
        %v1333 = vadd.f32 %v734, %v1332
        %1334 = vmatmul.bf16.gmra.mxu0 %v1109
        %v1335 = vpop.f32.mrf.mxu0
        %v1336 = vadd.f32 %v734, %v1335
        %v1337 = vpop.f32.mrf.mxu0
        %v1338 = vadd.f32 %v734, %v1337
        %1339 = vmatmul.bf16.gmra.mxu0 %v1112
        %v1340 = vpop.f32.mrf.mxu0
        %v1341 = vadd.f32 %v734, %v1340
        %v1342 = vpop.f32.mrf.mxu0
        %v1343 = vadd.f32 %v734, %v1342
        %1344 = vmatmul.bf16.gmra.mxu0 %v1115
        %v1345 = vpop.f32.mrf.mxu0
        %v1346 = vadd.f32 %v734, %v1345
        %v1347 = vpop.f32.mrf.mxu0
        %v1348 = vadd.f32 %v734, %v1347
        %1349 = vmatmul.bf16.gmra.mxu0 %v1118
        %v1350 = vpop.f32.mrf.mxu0
        %v1351 = vadd.f32 %v734, %v1350
        %v1352 = vpop.f32.mrf.mxu0
        %v1353 = vadd.f32 %v734, %v1352
        %1354 = vmatmul.bf16.gmra.mxu0 %v1121
        %v1355 = vpop.f32.mrf.mxu0
        %v1356 = vadd.f32 %v734, %v1355
        %v1357 = vpop.f32.mrf.mxu0
        %v1358 = vadd.f32 %v734, %v1357
        %1359 = vmatmul.bf16.gmra.mxu0 %v1124
        %v1360 = vpop.f32.mrf.mxu0
        %v1361 = vadd.f32 %v734, %v1360
        %v1362 = vpop.f32.mrf.mxu0
        %v1363 = vadd.f32 %v734, %v1362
        %1364 = vmatmul.bf16.gmra.mxu0 %v1127
        %v1365 = vpop.f32.mrf.mxu0
        %v1366 = vadd.f32 %v734, %v1365
        %v1367 = vpop.f32.mrf.mxu0
        %v1368 = vadd.f32 %v734, %v1367
        %1369 = vmatmul.bf16.gmra.mxu0 %v1130
        %v1370 = vpop.f32.mrf.mxu0
        %v1371 = vadd.f32 %v734, %v1370
        %v1372 = vpop.f32.mrf.mxu0
        %v1373 = vadd.f32 %v734, %v1372
        %1374 = vmatmul.bf16.gmra.mxu0 %v1133
        %v1375 = vpop.f32.mrf.mxu0
        %v1376 = vadd.f32 %v734, %v1375
        %v1377 = vpop.f32.mrf.mxu0
        %v1378 = vadd.f32 %v734, %v1377
        %1379 = vmatmul.bf16.gmra.mxu0 %v1136
        %v1380 = vpop.f32.mrf.mxu0
        %v1381 = vadd.f32 %v734, %v1380
        %v1382 = vpop.f32.mrf.mxu0
        %v1383 = vadd.f32 %v734, %v1382
        %1384 = vmatmul.bf16.gmra.mxu0 %v1139
        %v1385 = vpop.f32.mrf.mxu0
        %v1386 = vadd.f32 %v734, %v1385
        %v1387 = vpop.f32.mrf.mxu0
        %v1388 = vadd.f32 %v734, %v1387
        %1389 = vmatmul.bf16.gmra.mxu0 %v1142
        %v1390 = vpop.f32.mrf.mxu0
        %v1391 = vadd.f32 %v734, %v1390
        %v1392 = vpop.f32.mrf.mxu0
        %v1393 = vadd.f32 %v734, %v1392
        %1394 = vmatmul.bf16.gmra.mxu0 %v1145
        %v1395 = vpop.f32.mrf.mxu0
        %v1396 = vadd.f32 %v734, %v1395
        %v1397 = vpop.f32.mrf.mxu0
        %v1398 = vadd.f32 %v734, %v1397
        %1399 = vmatmul.bf16.gmra.mxu0 %v1148
        %v1400 = vpop.f32.mrf.mxu0
        %v1401 = vadd.f32 %v734, %v1400
        %v1402 = vpop.f32.mrf.mxu0
        %v1403 = vadd.f32 %v734, %v1402
        %1404 = vmatmul.bf16.gmra.mxu0 %v1151
        %v1405 = vpop.f32.mrf.mxu0
        %v1406 = vadd.f32 %v734, %v1405
        %v1407 = vpop.f32.mrf.mxu0
        %v1408 = vadd.f32 %v734, %v1407
        %1409 = vmatmul.bf16.gmra.mxu0 %v1154
        %v1410 = vpop.f32.mrf.mxu0
        %v1411 = vadd.f32 %v734, %v1410
        %v1412 = vpop.f32.mrf.mxu0
        %v1413 = vadd.f32 %v734, %v1412
        %1414 = vmatmul.bf16.gmra.mxu0 %v1157
        %v1415 = vpop.f32.mrf.mxu0
        %v1416 = vadd.f32 %v734, %v1415
        %v1417 = vpop.f32.mrf.mxu0
        %v1418 = vadd.f32 %v734, %v1417
        %1419 = vmatmul.bf16.gmra.mxu0 %v1160
        %v1420 = vpop.f32.mrf.mxu0
        %v1421 = vadd.f32 %v734, %v1420
        %v1422 = vpop.f32.mrf.mxu0
        %v1423 = vadd.f32 %v734, %v1422
        %1424 = vmatmul.bf16.gmra.mxu0 %v1163
        %v1425 = vpop.f32.mrf.mxu0
        %v1426 = vadd.f32 %v734, %v1425
        %v1427 = vpop.f32.mrf.mxu0
        %v1428 = vadd.f32 %v734, %v1427
        %1429 = vmatmul.bf16.gmra.mxu0 %v1166
        %v1430 = vpop.f32.mrf.mxu0
        %v1431 = vadd.f32 %v734, %v1430
        %v1432 = vpop.f32.mrf.mxu0
        %v1433 = vadd.f32 %v734, %v1432
        %1434 = vmatmul.bf16.gmra.mxu0 %v1169
        %v1435 = vpop.f32.mrf.mxu0
        %v1436 = vadd.f32 %v734, %v1435
        %v1437 = vpop.f32.mrf.mxu0
        %v1438 = vadd.f32 %v734, %v1437
        %1439 = vmatmul.bf16.gmra.mxu0 %v1172
        %v1440 = vpop.f32.mrf.mxu0
        %v1441 = vadd.f32 %v734, %v1440
        %v1442 = vpop.f32.mrf.mxu0
        %v1443 = vadd.f32 %v734, %v1442
        %1444 = vmatmul.bf16.gmra.mxu0 %v1175
        %v1445 = vpop.f32.mrf.mxu0
        %v1446 = vadd.f32 %v734, %v1445
        %v1447 = vpop.f32.mrf.mxu0
        %v1448 = vadd.f32 %v734, %v1447
        %1449 = vmatmul.bf16.gmra.mxu0 %v1178
        %v1450 = vpop.f32.mrf.mxu0
        %v1451 = vadd.f32 %v734, %v1450
        %v1452 = vpop.f32.mrf.mxu0
        %v1453 = vadd.f32 %v734, %v1452
        %1454 = vmatmul.bf16.gmra.mxu0 %v1181
        %v1455 = vpop.f32.mrf.mxu0
        %v1456 = vadd.f32 %v734, %v1455
        %v1457 = vpop.f32.mrf.mxu0
        %v1458 = vadd.f32 %v734, %v1457
        %1459 = vmatmul.bf16.gmra.mxu0 %v1184
        %v1460 = vpop.f32.mrf.mxu0
        %v1461 = vadd.f32 %v734, %v1460
        %v1462 = vpop.f32.mrf.mxu0
        %v1463 = vadd.f32 %v734, %v1462
        %1464 = vmatmul.bf16.gmra.mxu0 %v1187
        %v1465 = vpop.f32.mrf.mxu0
        %v1466 = vadd.f32 %v734, %v1465
        %v1467 = vpop.f32.mrf.mxu0
        %v1468 = vadd.f32 %v734, %v1467
        %1469 = vmatmul.bf16.gmra.mxu0 %v1190
        %v1470 = vpop.f32.mrf.mxu0
        %v1471 = vadd.f32 %v734, %v1470
        %v1472 = vpop.f32.mrf.mxu0
        %v1473 = vadd.f32 %v734, %v1472
        %1474 = vmatmul.bf16.gmra.mxu0 %v1193
        %v1475 = vpop.f32.mrf.mxu0
        %v1476 = vadd.f32 %v734, %v1475
        %v1477 = vpop.f32.mrf.mxu0
        %v1478 = vadd.f32 %v734, %v1477
        %1479 = vmatmul.bf16.gmra.mxu0 %v1196
        %v1480 = vpop.f32.mrf.mxu0
        %v1481 = vadd.f32 %v734, %v1480
        %v1482 = vpop.f32.mrf.mxu0
        %v1483 = vadd.f32 %v734, %v1482
        %1484 = vmatmul.bf16.gmra.mxu0 %v1199
        %v1485 = vpop.f32.mrf.mxu0
        %v1486 = vadd.f32 %v734, %v1485
        %v1487 = vpop.f32.mrf.mxu0
        %v1488 = vadd.f32 %v734, %v1487
        %1489 = vmatmul.bf16.gmra.mxu0 %v1202
        %v1490 = vpop.f32.mrf.mxu0
        %v1491 = vadd.f32 %v734, %v1490
        %v1492 = vpop.f32.mrf.mxu0
        %v1493 = vadd.f32 %v734, %v1492
        %1494 = vmatmul.bf16.gmra.mxu0 %v1205
        %v1495 = vpop.f32.mrf.mxu0
        %v1496 = vadd.f32 %v734, %v1495
        %v1497 = vpop.f32.mrf.mxu0
        %v1498 = vadd.f32 %v734, %v1497
        %1499 = vmatmul.bf16.gmra.mxu0 %v1208
        %v1500 = vpop.f32.mrf.mxu0
        %v1501 = vadd.f32 %v734, %v1500
        %v1502 = vpop.f32.mrf.mxu0
        %v1503 = vadd.f32 %v734, %v1502
        %1504 = vmatmul.bf16.gmra.mxu0 %v1211
        %v1505 = vpop.f32.mrf.mxu0
        %v1506 = vadd.f32 %v734, %v1505
        %v1507 = vpop.f32.mrf.mxu0
        %v1508 = vadd.f32 %v734, %v1507
        %1509 = vmatmul.bf16.gmra.mxu0 %v1214
        %v1510 = vpop.f32.mrf.mxu0
        %v1511 = vadd.f32 %v734, %v1510
        %v1512 = vpop.f32.mrf.mxu0
        %v1513 = vadd.f32 %v734, %v1512
        %1514 = vmatmul.bf16.gmra.mxu0 %v1217
        %v1515 = vpop.f32.mrf.mxu0
        %v1516 = vadd.f32 %v734, %v1515
        %v1517 = vpop.f32.mrf.mxu0
        %v1518 = vadd.f32 %v734, %v1517
        %1519 = vmatmul.bf16.gmra.mxu0 %v1220
        %v1520 = vpop.f32.mrf.mxu0
        %v1521 = vadd.f32 %v734, %v1520
        %v1522 = vpop.f32.mrf.mxu0
        %v1523 = vadd.f32 %v734, %v1522
        %1524 = vmatmul.bf16.gmra.mxu0 %v1223
        %v1525 = vpop.f32.mrf.mxu0
        %v1526 = vadd.f32 %v734, %v1525
        %v1527 = vpop.f32.mrf.mxu0
        %v1528 = vadd.f32 %v734, %v1527
        %1529 = vmatmul.bf16.gmra.mxu0 %v1226
        %v1530 = vpop.f32.mrf.mxu0
        %v1531 = vadd.f32 %v734, %v1530
        %v1532 = vpop.f32.mrf.mxu0
        %v1533 = vadd.f32 %v734, %v1532
        %1534 = vmatmul.bf16.gmra.mxu0 %v1229
        %v1535 = vpop.f32.mrf.mxu0
        %v1536 = vadd.f32 %v734, %v1535
        %v1537 = vpop.f32.mrf.mxu0
        %v1538 = vadd.f32 %v734, %v1537
        %1539 = vmatmul.bf16.gmra.mxu0 %v1232
        %v1540 = vpop.f32.mrf.mxu0
        %v1541 = vadd.f32 %v734, %v1540
        %v1542 = vpop.f32.mrf.mxu0
        %v1543 = vadd.f32 %v734, %v1542
        %1544 = vmatmul.bf16.gmra.mxu0 %v1235
        %v1545 = vpop.f32.mrf.mxu0
        %v1546 = vadd.f32 %v734, %v1545
        %v1547 = vpop.f32.mrf.mxu0
        %v1548 = vadd.f32 %v734, %v1547
        %1549 = vmatmul.bf16.gmra.mxu0 %v1238
        %v1550 = vpop.f32.mrf.mxu0
        %v1551 = vadd.f32 %v734, %v1550
        %v1552 = vpop.f32.mrf.mxu0
        %v1553 = vadd.f32 %v734, %v1552
        %1554 = vmatmul.bf16.gmra.mxu0 %v1241
        %v1555 = vpop.f32.mrf.mxu0
        %v1556 = vadd.f32 %v734, %v1555
        %v1557 = vpop.f32.mrf.mxu0
        %v1558 = vadd.f32 %v734, %v1557
        %1559 = vmatmul.bf16.gmra.mxu0 %v1244
        %v1560 = vpop.f32.mrf.mxu0
        %v1561 = vadd.f32 %v734, %v1560
        %v1562 = vpop.f32.mrf.mxu0
        %v1563 = vadd.f32 %v734, %v1562
        %1564 = vmatmul.bf16.gmra.mxu0 %v1247
        %v1565 = vpop.f32.mrf.mxu0
        %v1566 = vadd.f32 %v734, %v1565
        %v1567 = vpop.f32.mrf.mxu0
        %v1568 = vadd.f32 %v734, %v1567
        %1569 = vmatmul.bf16.gmra.mxu0 %v1250
        %v1570 = vpop.f32.mrf.mxu0
        %v1571 = vadd.f32 %v734, %v1570
        %v1572 = vpop.f32.mrf.mxu0
        %v1573 = vadd.f32 %v734, %v1572
        %1574 = vmatmul.bf16.gmra.mxu0 %v1253
        %v1575 = vpop.f32.mrf.mxu0
        %v1576 = vadd.f32 %v734, %v1575
        %v1577 = vpop.f32.mrf.mxu0
        %v1578 = vadd.f32 %v734, %v1577
        %1579 = vmatmul.bf16.gmra.mxu0 %v1256
        %v1580 = vpop.f32.mrf.mxu0
        %v1581 = vadd.f32 %v734, %v1580
        %v1582 = vpop.f32.mrf.mxu0
        %v1583 = vadd.f32 %v734, %v1582
        %1584 = vmatmul.bf16.gmra.mxu0 %v1259
        %v1585 = vpop.f32.mrf.mxu0
        %v1586 = vadd.f32 %v734, %v1585
        %v1587 = vpop.f32.mrf.mxu0
        %v1588 = vadd.f32 %v734, %v1587
        %1589 = vdwg.mxu0
        %v1590 = vmax.f32 %v1271, 0.0
        %v1591 = vmax.f32 %v1273, 0.0
        %v1592 = vmax.f32 %v1276, 0.0
        %v1593 = vmax.f32 %v1278, 0.0
        %v1594 = vmax.f32 %v1281, 0.0
        %v1595 = vmax.f32 %v1283, 0.0
        %v1596 = vmax.f32 %v1286, 0.0
        %v1597 = vmax.f32 %v1288, 0.0
        %v1598 = vmax.f32 %v1291, 0.0
        %v1599 = vmax.f32 %v1293, 0.0
        %v1600 = vmax.f32 %v1296, 0.0
        %v1601 = vmax.f32 %v1298, 0.0
        %v1602 = vmax.f32 %v1301, 0.0
        %v1603 = vmax.f32 %v1303, 0.0
        %v1604 = vmax.f32 %v1306, 0.0
        %v1605 = vmax.f32 %v1308, 0.0
        %v1606 = vmax.f32 %v1311, 0.0
        %v1607 = vmax.f32 %v1313, 0.0
        %v1608 = vmax.f32 %v1316, 0.0
        %v1609 = vmax.f32 %v1318, 0.0
        %v1610 = vmax.f32 %v1321, 0.0
        %v1611 = vmax.f32 %v1323, 0.0
        %v1612 = vmax.f32 %v1326, 0.0
        %v1613 = vmax.f32 %v1328, 0.0
        %v1614 = vmax.f32 %v1331, 0.0
        %v1615 = vmax.f32 %v1333, 0.0
        %v1616 = vmax.f32 %v1336, 0.0
        %v1617 = vmax.f32 %v1338, 0.0
        %v1618 = vmax.f32 %v1341, 0.0
        %v1619 = vmax.f32 %v1343, 0.0
        %v1620 = vmax.f32 %v1346, 0.0
        %v1621 = vmax.f32 %v1348, 0.0
        %v1622 = vmax.f32 %v1351, 0.0
        %v1623 = vmax.f32 %v1353, 0.0
        %v1624 = vmax.f32 %v1356, 0.0
        %v1625 = vmax.f32 %v1358, 0.0
        %v1626 = vmax.f32 %v1361, 0.0
        %v1627 = vmax.f32 %v1363, 0.0
        %v1628 = vmax.f32 %v1366, 0.0
        %v1629 = vmax.f32 %v1368, 0.0
        %v1630 = vmax.f32 %v1371, 0.0
        %v1631 = vmax.f32 %v1373, 0.0
        %v1632 = vmax.f32 %v1376, 0.0
        %v1633 = vmax.f32 %v1378, 0.0
        %v1634 = vmax.f32 %v1381, 0.0
        %v1635 = vmax.f32 %v1383, 0.0
        %v1636 = vmax.f32 %v1386, 0.0
        %v1637 = vmax.f32 %v1388, 0.0
        %v1638 = vmax.f32 %v1391, 0.0
        %v1639 = vmax.f32 %v1393, 0.0
        %v1640 = vmax.f32 %v1396, 0.0
        %v1641 = vmax.f32 %v1398, 0.0
        %v1642 = vmax.f32 %v1401, 0.0
        %v1643 = vmax.f32 %v1403, 0.0
        %v1644 = vmax.f32 %v1406, 0.0
        %v1645 = vmax.f32 %v1408, 0.0
        %v1646 = vmax.f32 %v1411, 0.0
        %v1647 = vmax.f32 %v1413, 0.0
        %v1648 = vmax.f32 %v1416, 0.0
        %v1649 = vmax.f32 %v1418, 0.0
        %v1650 = vmax.f32 %v1421, 0.0
        %v1651 = vmax.f32 %v1423, 0.0
        %v1652 = vmax.f32 %v1426, 0.0
        %v1653 = vmax.f32 %v1428, 0.0
        %v1654 = vmax.f32 %v1431, 0.0
        %v1655 = vmax.f32 %v1433, 0.0
        %v1656 = vmax.f32 %v1436, 0.0
        %v1657 = vmax.f32 %v1438, 0.0
        %v1658 = vmax.f32 %v1441, 0.0
        %v1659 = vmax.f32 %v1443, 0.0
        %v1660 = vmax.f32 %v1446, 0.0
        %v1661 = vmax.f32 %v1448, 0.0
        %v1662 = vmax.f32 %v1451, 0.0
        %v1663 = vmax.f32 %v1453, 0.0
        %v1664 = vmax.f32 %v1456, 0.0
        %v1665 = vmax.f32 %v1458, 0.0
        %v1666 = vmax.f32 %v1461, 0.0
        %v1667 = vmax.f32 %v1463, 0.0
        %v1668 = vmax.f32 %v1466, 0.0
        %v1669 = vmax.f32 %v1468, 0.0
        %v1670 = vmax.f32 %v1471, 0.0
        %v1671 = vmax.f32 %v1473, 0.0
        %v1672 = vmax.f32 %v1476, 0.0
        %v1673 = vmax.f32 %v1478, 0.0
        %v1674 = vmax.f32 %v1481, 0.0
        %v1675 = vmax.f32 %v1483, 0.0
        %v1676 = vmax.f32 %v1486, 0.0
        %v1677 = vmax.f32 %v1488, 0.0
        %v1678 = vmax.f32 %v1491, 0.0
        %v1679 = vmax.f32 %v1493, 0.0
        %v1680 = vmax.f32 %v1496, 0.0
        %v1681 = vmax.f32 %v1498, 0.0
        %v1682 = vmax.f32 %v1501, 0.0
        %v1683 = vmax.f32 %v1503, 0.0
        %v1684 = vmax.f32 %v1506, 0.0
        %v1685 = vmax.f32 %v1508, 0.0
        %v1686 = vmax.f32 %v1511, 0.0
        %v1687 = vmax.f32 %v1513, 0.0
        %v1688 = vmax.f32 %v1516, 0.0
        %v1689 = vmax.f32 %v1518, 0.0
        %v1690 = vmax.f32 %v1521, 0.0
        %v1691 = vmax.f32 %v1523, 0.0
        %v1692 = vmax.f32 %v1526, 0.0
        %v1693 = vmax.f32 %v1528, 0.0
        %v1694 = vmax.f32 %v1531, 0.0
        %v1695 = vmax.f32 %v1533, 0.0
        %v1696 = vmax.f32 %v1536, 0.0
        %v1697 = vmax.f32 %v1538, 0.0
        %v1698 = vmax.f32 %v1541, 0.0
        %v1699 = vmax.f32 %v1543, 0.0
        %v1700 = vmax.f32 %v1546, 0.0
        %v1701 = vmax.f32 %v1548, 0.0
        %v1702 = vmax.f32 %v1551, 0.0
        %v1703 = vmax.f32 %v1553, 0.0
        %v1704 = vmax.f32 %v1556, 0.0
        %v1705 = vmax.f32 %v1558, 0.0
        %v1706 = vmax.f32 %v1561, 0.0
        %v1707 = vmax.f32 %v1563, 0.0
        %v1708 = vmax.f32 %v1566, 0.0
        %v1709 = vmax.f32 %v1568, 0.0
        %v1710 = vmax.f32 %v1571, 0.0
        %v1711 = vmax.f32 %v1573, 0.0
        %v1712 = vmax.f32 %v1576, 0.0
        %v1713 = vmax.f32 %v1578, 0.0
        %v1714 = vmax.f32 %v1581, 0.0
        %v1715 = vmax.f32 %v1583, 0.0
        %v1716 = vmax.f32 %v1586, 0.0
        %v1717 = vmax.f32 %v1588, 0.0
        %v1718 = vpack.c.bf16 %v1591, %v1590
        %v1719 = vpack.c.bf16 %v1593, %v1592
        %v1720 = vpack.c.bf16 %v1595, %v1594
        %v1721 = vpack.c.bf16 %v1597, %v1596
        %v1722 = vpack.c.bf16 %v1599, %v1598
        %v1723 = vpack.c.bf16 %v1601, %v1600
        %v1724 = vpack.c.bf16 %v1603, %v1602
        %v1725 = vpack.c.bf16 %v1605, %v1604
        %v1726 = vpack.c.bf16 %v1607, %v1606
        %v1727 = vpack.c.bf16 %v1609, %v1608
        %v1728 = vpack.c.bf16 %v1611, %v1610
        %v1729 = vpack.c.bf16 %v1613, %v1612
        %v1730 = vpack.c.bf16 %v1615, %v1614
        %v1731 = vpack.c.bf16 %v1617, %v1616
        %v1732 = vpack.c.bf16 %v1619, %v1618
        %v1733 = vpack.c.bf16 %v1621, %v1620
        %v1734 = vpack.c.bf16 %v1623, %v1622
        %v1735 = vpack.c.bf16 %v1625, %v1624
        %v1736 = vpack.c.bf16 %v1627, %v1626
        %v1737 = vpack.c.bf16 %v1629, %v1628
        %v1738 = vpack.c.bf16 %v1631, %v1630
        %v1739 = vpack.c.bf16 %v1633, %v1632
        %v1740 = vpack.c.bf16 %v1635, %v1634
        %v1741 = vpack.c.bf16 %v1637, %v1636
        %v1742 = vpack.c.bf16 %v1639, %v1638
        %v1743 = vpack.c.bf16 %v1641, %v1640
        %v1744 = vpack.c.bf16 %v1643, %v1642
        %v1745 = vpack.c.bf16 %v1645, %v1644
        %v1746 = vpack.c.bf16 %v1647, %v1646
        %v1747 = vpack.c.bf16 %v1649, %v1648
        %v1748 = vpack.c.bf16 %v1651, %v1650
        %v1749 = vpack.c.bf16 %v1653, %v1652
        %v1750 = vpack.c.bf16 %v1655, %v1654
        %v1751 = vpack.c.bf16 %v1657, %v1656
        %v1752 = vpack.c.bf16 %v1659, %v1658
        %v1753 = vpack.c.bf16 %v1661, %v1660
        %v1754 = vpack.c.bf16 %v1663, %v1662
        %v1755 = vpack.c.bf16 %v1665, %v1664
        %v1756 = vpack.c.bf16 %v1667, %v1666
        %v1757 = vpack.c.bf16 %v1669, %v1668
        %v1758 = vpack.c.bf16 %v1671, %v1670
        %v1759 = vpack.c.bf16 %v1673, %v1672
        %v1760 = vpack.c.bf16 %v1675, %v1674
        %v1761 = vpack.c.bf16 %v1677, %v1676
        %v1762 = vpack.c.bf16 %v1679, %v1678
        %v1763 = vpack.c.bf16 %v1681, %v1680
        %v1764 = vpack.c.bf16 %v1683, %v1682
        %v1765 = vpack.c.bf16 %v1685, %v1684
        %v1766 = vpack.c.bf16 %v1687, %v1686
        %v1767 = vpack.c.bf16 %v1689, %v1688
        %v1768 = vpack.c.bf16 %v1691, %v1690
        %v1769 = vpack.c.bf16 %v1693, %v1692
        %v1770 = vpack.c.bf16 %v1695, %v1694
        %v1771 = vpack.c.bf16 %v1697, %v1696
        %v1772 = vpack.c.bf16 %v1699, %v1698
        %v1773 = vpack.c.bf16 %v1701, %v1700
        %v1774 = vpack.c.bf16 %v1703, %v1702
        %v1775 = vpack.c.bf16 %v1705, %v1704
        %v1776 = vpack.c.bf16 %v1707, %v1706
        %v1777 = vpack.c.bf16 %v1709, %v1708
        %v1778 = vpack.c.bf16 %v1711, %v1710
        %v1779 = vpack.c.bf16 %v1713, %v1712
        %v1780 = vpack.c.bf16 %v1715, %v1714
        %v1781 = vpack.c.bf16 %v1717, %v1716
        %v1782 = vld [vmem:[%s1] sm:$0xff]
        %1784 = vst [vmem:[#allocation1] ss:$9 sm:$0xff] %v1782
        %v1785 = vld [vmem:[#allocation1] sm:$0xff]
        %v1786 = vld [vmem:[#allocation1 + $0x9] sm:$0xff]
        %v1787 = vld [vmem:[#allocation1 + $0x12] sm:$0xff]
        %v1788 = vld [vmem:[#allocation1 + $0x1b] sm:$0xff]
        %v1789 = vld [vmem:[#allocation1 + $0x24] sm:$0xff]
        %v1790 = vld [vmem:[#allocation1 + $0x2d] sm:$0xff]
        %v1791 = vld [vmem:[#allocation1 + $0x36] sm:$0xff]
        %v1792 = vld [vmem:[#allocation1 + $0x3f] sm:$0xff]
        %1801 = vmatpush.bf16.msra.mxu0 %v1725
        %1802 = vmatpush.bf16.msra.mxu0 %v1724
        %1803 = vmatpush.bf16.msra.mxu0 %v1723
        %1804 = vmatpush.bf16.msra.mxu0 %v1722
        %1805 = vmatpush.bf16.msra.mxu0 %v1721
        %1806 = vmatpush.bf16.msra.mxu0 %v1720
        %1807 = vmatpush.bf16.msra.mxu0 %v1719
        %1808 = vmatpush.bf16.msra.mxu0 %v1718
        %1809 = vmatmul.bf16.gmra.mxu0 %v1785
        %v1810 = vpop.f32.mrf.mxu0
        %v1811 = vadd.f32 0.0, %v1810
        %v1812 = vpop.f32.mrf.mxu0
        %1813 = vdwg.mxu0
        %1814 = vmatpush.bf16.msra.mxu0 %v1733
        %1815 = vmatpush.bf16.msra.mxu0 %v1732
        %1816 = vmatpush.bf16.msra.mxu0 %v1731
        %1817 = vmatpush.bf16.msra.mxu0 %v1730
        %1818 = vmatpush.bf16.msra.mxu0 %v1729
        %1819 = vmatpush.bf16.msra.mxu0 %v1728
        %1820 = vmatpush.bf16.msra.mxu0 %v1727
        %1821 = vmatpush.bf16.msra.mxu0 %v1726
        %1822 = vmatmul.bf16.gmra.mxu0 %v1786
        %v1823 = vpop.f32.mrf.mxu0
        %v1824 = vadd.f32 %v1811, %v1823
        %v1825 = vpop.f32.mrf.mxu0
        %1826 = vdwg.mxu0
        %1827 = vmatpush.bf16.msra.mxu0 %v1741
        %1828 = vmatpush.bf16.msra.mxu0 %v1740
        %1829 = vmatpush.bf16.msra.mxu0 %v1739
        %1830 = vmatpush.bf16.msra.mxu0 %v1738
        %1831 = vmatpush.bf16.msra.mxu0 %v1737
        %1832 = vmatpush.bf16.msra.mxu0 %v1736
        %1833 = vmatpush.bf16.msra.mxu0 %v1735
        %1834 = vmatpush.bf16.msra.mxu0 %v1734
        %1835 = vmatmul.bf16.gmra.mxu0 %v1787
        %v1836 = vpop.f32.mrf.mxu0
        %v1837 = vadd.f32 %v1824, %v1836
        %v1838 = vpop.f32.mrf.mxu0
        %1839 = vdwg.mxu0
        %1840 = vmatpush.bf16.msra.mxu0 %v1749
        %1841 = vmatpush.bf16.msra.mxu0 %v1748
        %1842 = vmatpush.bf16.msra.mxu0 %v1747
        %1843 = vmatpush.bf16.msra.mxu0 %v1746
        %1844 = vmatpush.bf16.msra.mxu0 %v1745
        %1845 = vmatpush.bf16.msra.mxu0 %v1744
        %1846 = vmatpush.bf16.msra.mxu0 %v1743
        %1847 = vmatpush.bf16.msra.mxu0 %v1742
        %1848 = vmatmul.bf16.gmra.mxu0 %v1788
        %v1849 = vpop.f32.mrf.mxu0
        %v1850 = vadd.f32 %v1837, %v1849
        %v1851 = vpop.f32.mrf.mxu0
        %1852 = vdwg.mxu0
        %1853 = vmatpush.bf16.msra.mxu0 %v1757
        %1854 = vmatpush.bf16.msra.mxu0 %v1756
        %1855 = vmatpush.bf16.msra.mxu0 %v1755
        %1856 = vmatpush.bf16.msra.mxu0 %v1754
        %1857 = vmatpush.bf16.msra.mxu0 %v1753
        %1858 = vmatpush.bf16.msra.mxu0 %v1752
        %1859 = vmatpush.bf16.msra.mxu0 %v1751
        %1860 = vmatpush.bf16.msra.mxu0 %v1750
        %1861 = vmatmul.bf16.gmra.mxu0 %v1789
        %v1862 = vpop.f32.mrf.mxu0
        %v1863 = vadd.f32 %v1850, %v1862
        %v1864 = vpop.f32.mrf.mxu0
        %1865 = vdwg.mxu0
        %1866 = vmatpush.bf16.msra.mxu0 %v1765
        %1867 = vmatpush.bf16.msra.mxu0 %v1764
        %1868 = vmatpush.bf16.msra.mxu0 %v1763
        %1869 = vmatpush.bf16.msra.mxu0 %v1762
        %1870 = vmatpush.bf16.msra.mxu0 %v1761
        %1871 = vmatpush.bf16.msra.mxu0 %v1760
        %1872 = vmatpush.bf16.msra.mxu0 %v1759
        %1873 = vmatpush.bf16.msra.mxu0 %v1758
        %1874 = vmatmul.bf16.gmra.mxu0 %v1790
        %v1875 = vpop.f32.mrf.mxu0
        %v1876 = vadd.f32 %v1863, %v1875
        %v1877 = vpop.f32.mrf.mxu0
        %1878 = vdwg.mxu0
        %1879 = vmatpush.bf16.msra.mxu0 %v1773
        %1880 = vmatpush.bf16.msra.mxu0 %v1772
        %1881 = vmatpush.bf16.msra.mxu0 %v1771
        %1882 = vmatpush.bf16.msra.mxu0 %v1770
        %1883 = vmatpush.bf16.msra.mxu0 %v1769
        %1884 = vmatpush.bf16.msra.mxu0 %v1768
        %1885 = vmatpush.bf16.msra.mxu0 %v1767
        %1886 = vmatpush.bf16.msra.mxu0 %v1766
        %1887 = vmatmul.bf16.gmra.mxu0 %v1791
        %v1888 = vpop.f32.mrf.mxu0
        %v1889 = vadd.f32 %v1876, %v1888
        %v1890 = vpop.f32.mrf.mxu0
        %1891 = vdwg.mxu0
        %1892 = vmatpush.bf16.msra.mxu0 %v1781
        %1893 = vmatpush.bf16.msra.mxu0 %v1780
        %1894 = vmatpush.bf16.msra.mxu0 %v1779
        %1895 = vmatpush.bf16.msra.mxu0 %v1778
        %1896 = vmatpush.bf16.msra.mxu0 %v1777
        %1897 = vmatpush.bf16.msra.mxu0 %v1776
        %1898 = vmatpush.bf16.msra.mxu0 %v1775
        %1899 = vmatpush.bf16.msra.mxu0 %v1774
        %1900 = vmatmul.bf16.gmra.mxu0 %v1792
        %v1901 = vpop.f32.mrf.mxu0
        %v1902 = vadd.f32 %v1889, %v1901
        %v1903 = vpop.f32.mrf.mxu0
        %1904 = vdwg.mxu0
        %v1905 = vld [vmem:[%s2] sm:$0xff]
        %1907 = vst [vmem:[#allocation1] ss:$9 sm:$0xff] %v1905
        %v1908 = vld [vmem:[#allocation1] sm:$0xff]
        %v1909 = vld [vmem:[#allocation1 + $0x9] sm:$0xff]
        %v1910 = vld [vmem:[#allocation1 + $0x12] sm:$0xff]
        %v1911 = vld [vmem:[#allocation1 + $0x1b] sm:$0xff]
        %v1912 = vld [vmem:[#allocation1 + $0x24] sm:$0xff]
        %v1913 = vld [vmem:[#allocation1 + $0x2d] sm:$0xff]
        %v1914 = vld [vmem:[#allocation1 + $0x36] sm:$0xff]
        %v1915 = vld [vmem:[#allocation1 + $0x3f] sm:$0xff]
        %1924 = vmatpush.bf16.msra.mxu0 %v1725
        %1925 = vmatpush.bf16.msra.mxu0 %v1724
        %1926 = vmatpush.bf16.msra.mxu0 %v1723
        %1927 = vmatpush.bf16.msra.mxu0 %v1722
        %1928 = vmatpush.bf16.msra.mxu0 %v1721
        %1929 = vmatpush.bf16.msra.mxu0 %v1720
        %1930 = vmatpush.bf16.msra.mxu0 %v1719
        %1931 = vmatpush.bf16.msra.mxu0 %v1718
        %1932 = vmatmul.bf16.gmra.mxu0 %v1908
        %v1933 = vpop.f32.mrf.mxu0
        %v1934 = vadd.f32 0.0, %v1933
        %v1935 = vpop.f32.mrf.mxu0
        %1936 = vdwg.mxu0
        %1937 = vmatpush.bf16.msra.mxu0 %v1733
        %1938 = vmatpush.bf16.msra.mxu0 %v1732
        %1939 = vmatpush.bf16.msra.mxu0 %v1731
        %1940 = vmatpush.bf16.msra.mxu0 %v1730
        %1941 = vmatpush.bf16.msra.mxu0 %v1729
        %1942 = vmatpush.bf16.msra.mxu0 %v1728
        %1943 = vmatpush.bf16.msra.mxu0 %v1727
        %1944 = vmatpush.bf16.msra.mxu0 %v1726
        %1945 = vmatmul.bf16.gmra.mxu0 %v1909
        %v1946 = vpop.f32.mrf.mxu0
        %v1947 = vadd.f32 %v1934, %v1946
        %v1948 = vpop.f32.mrf.mxu0
        %1949 = vdwg.mxu0
        %1950 = vmatpush.bf16.msra.mxu0 %v1741
        %1951 = vmatpush.bf16.msra.mxu0 %v1740
        %1952 = vmatpush.bf16.msra.mxu0 %v1739
        %1953 = vmatpush.bf16.msra.mxu0 %v1738
        %1954 = vmatpush.bf16.msra.mxu0 %v1737
        %1955 = vmatpush.bf16.msra.mxu0 %v1736
        %1956 = vmatpush.bf16.msra.mxu0 %v1735
        %1957 = vmatpush.bf16.msra.mxu0 %v1734
        %1958 = vmatmul.bf16.gmra.mxu0 %v1910
        %v1959 = vpop.f32.mrf.mxu0
        %v1960 = vadd.f32 %v1947, %v1959
        %v1961 = vpop.f32.mrf.mxu0
        %1962 = vdwg.mxu0
        %1963 = vmatpush.bf16.msra.mxu0 %v1749
        %1964 = vmatpush.bf16.msra.mxu0 %v1748
        %1965 = vmatpush.bf16.msra.mxu0 %v1747
        %1966 = vmatpush.bf16.msra.mxu0 %v1746
        %1967 = vmatpush.bf16.msra.mxu0 %v1745
        %1968 = vmatpush.bf16.msra.mxu0 %v1744
        %1969 = vmatpush.bf16.msra.mxu0 %v1743
        %1970 = vmatpush.bf16.msra.mxu0 %v1742
        %1971 = vmatmul.bf16.gmra.mxu0 %v1911
        %v1972 = vpop.f32.mrf.mxu0
        %v1973 = vadd.f32 %v1960, %v1972
        %v1974 = vpop.f32.mrf.mxu0
        %1975 = vdwg.mxu0
        %1976 = vmatpush.bf16.msra.mxu0 %v1757
        %1977 = vmatpush.bf16.msra.mxu0 %v1756
        %1978 = vmatpush.bf16.msra.mxu0 %v1755
        %1979 = vmatpush.bf16.msra.mxu0 %v1754
        %1980 = vmatpush.bf16.msra.mxu0 %v1753
        %1981 = vmatpush.bf16.msra.mxu0 %v1752
        %1982 = vmatpush.bf16.msra.mxu0 %v1751
        %1983 = vmatpush.bf16.msra.mxu0 %v1750
        %1984 = vmatmul.bf16.gmra.mxu0 %v1912
        %v1985 = vpop.f32.mrf.mxu0
        %v1986 = vadd.f32 %v1973, %v1985
        %v1987 = vpop.f32.mrf.mxu0
        %1988 = vdwg.mxu0
        %1989 = vmatpush.bf16.msra.mxu0 %v1765
        %1990 = vmatpush.bf16.msra.mxu0 %v1764
        %1991 = vmatpush.bf16.msra.mxu0 %v1763
        %1992 = vmatpush.bf16.msra.mxu0 %v1762
        %1993 = vmatpush.bf16.msra.mxu0 %v1761
        %1994 = vmatpush.bf16.msra.mxu0 %v1760
        %1995 = vmatpush.bf16.msra.mxu0 %v1759
        %1996 = vmatpush.bf16.msra.mxu0 %v1758
        %1997 = vmatmul.bf16.gmra.mxu0 %v1913
        %v1998 = vpop.f32.mrf.mxu0
        %v1999 = vadd.f32 %v1986, %v1998
        %v2000 = vpop.f32.mrf.mxu0
        %2001 = vdwg.mxu0
        %2002 = vmatpush.bf16.msra.mxu0 %v1773
        %2003 = vmatpush.bf16.msra.mxu0 %v1772
        %2004 = vmatpush.bf16.msra.mxu0 %v1771
        %2005 = vmatpush.bf16.msra.mxu0 %v1770
        %2006 = vmatpush.bf16.msra.mxu0 %v1769
        %2007 = vmatpush.bf16.msra.mxu0 %v1768
        %2008 = vmatpush.bf16.msra.mxu0 %v1767
        %2009 = vmatpush.bf16.msra.mxu0 %v1766
        %2010 = vmatmul.bf16.gmra.mxu0 %v1914
        %v2011 = vpop.f32.mrf.mxu0
        %v2012 = vadd.f32 %v1999, %v2011
        %v2013 = vpop.f32.mrf.mxu0
        %2014 = vdwg.mxu0
        %2015 = vmatpush.bf16.msra.mxu0 %v1781
        %2016 = vmatpush.bf16.msra.mxu0 %v1780
        %2017 = vmatpush.bf16.msra.mxu0 %v1779
        %2018 = vmatpush.bf16.msra.mxu0 %v1778
        %2019 = vmatpush.bf16.msra.mxu0 %v1777
        %2020 = vmatpush.bf16.msra.mxu0 %v1776
        %2021 = vmatpush.bf16.msra.mxu0 %v1775
        %2022 = vmatpush.bf16.msra.mxu0 %v1774
        %2023 = vmatmul.bf16.gmra.mxu0 %v1915
        %v2024 = vpop.f32.mrf.mxu0
        %v2025 = vadd.f32 %v2012, %v2024
        %v2026 = vpop.f32.mrf.mxu0
        %2027 = vdwg.mxu0
        %v2028 = vpack.c.bf16 %v1902, %v1902
        %v2029 = vld [vmem:[%s5] sm:$0xff]
        %v2030 = vld [vmem:[%s5 + $0x8] sm:$0xff]
        %v2031 = vld [vmem:[%s5 + $0x10] sm:$0xff]
        %v2032 = vld [vmem:[%s5 + $0x18] sm:$0xff]
        %v2033 = vld [vmem:[%s5 + $0x20] sm:$0xff]
        %v2034 = vld [vmem:[%s5 + $0x28] sm:$0xff]
        %v2035 = vld [vmem:[%s5 + $0x30] sm:$0xff]
        %v2036 = vld [vmem:[%s5 + $0x38] sm:$0xff]
        %v2037 = vld [vmem:[%s5 + $0x40] sm:$0xff]
        %v2038 = vld [vmem:[%s5 + $0x48] sm:$0xff]
        %v2039 = vld [vmem:[%s5 + $0x50] sm:$0xff]
        %v2040 = vld [vmem:[%s5 + $0x58] sm:$0xff]
        %v2041 = vld [vmem:[%s5 + $0x60] sm:$0xff]
        %v2042 = vld [vmem:[%s5 + $0x68] sm:$0xff]
        %v2043 = vld [vmem:[%s5 + $0x70] sm:$0xff]
        %v2044 = vld [vmem:[%s5 + $0x78] sm:$0xff]
        %v2045 = vld [vmem:[%s6] sm:$0xff]
        %v2047 = vperm.slane %v2045, 0
        %v2048 = vperm.slane %v2045, 1
        %v2049 = vperm.slane %v2045, 2
        %v2050 = vperm.slane %v2045, 3
        %v2051 = vperm.slane %v2045, 4
        %v2052 = vperm.slane %v2045, 5
        %v2053 = vperm.slane %v2045, 6
        %v2054 = vperm.slane %v2045, 7
        %v2079 = vunpack.c.l.b16 %v2029
        %v2080 = vunpack.c.h.b16 %v2029
        %v2081 = vunpack.c.l.b16 %v2030
        %v2082 = vunpack.c.h.b16 %v2030
        %v2083 = vunpack.c.l.b16 %v2031
        %v2084 = vunpack.c.h.b16 %v2031
        %v2085 = vunpack.c.l.b16 %v2032
        %v2086 = vunpack.c.h.b16 %v2032
        %v2087 = vunpack.c.l.b16 %v2033
        %v2088 = vunpack.c.h.b16 %v2033
        %v2089 = vunpack.c.l.b16 %v2034
        %v2090 = vunpack.c.h.b16 %v2034
        %v2091 = vunpack.c.l.b16 %v2035
        %v2092 = vunpack.c.h.b16 %v2035
        %v2093 = vunpack.c.l.b16 %v2036
        %v2094 = vunpack.c.h.b16 %v2036
        %v2095 = vunpack.c.l.b16 %v2037
        %v2096 = vunpack.c.h.b16 %v2037
        %v2097 = vunpack.c.l.b16 %v2038
        %v2098 = vunpack.c.h.b16 %v2038
        %v2099 = vunpack.c.l.b16 %v2039
        %v2100 = vunpack.c.h.b16 %v2039
        %v2101 = vunpack.c.l.b16 %v2040
        %v2102 = vunpack.c.h.b16 %v2040
        %v2103 = vunpack.c.l.b16 %v2041
        %v2104 = vunpack.c.h.b16 %v2041
        %v2105 = vunpack.c.l.b16 %v2042
        %v2106 = vunpack.c.h.b16 %v2042
        %v2107 = vunpack.c.l.b16 %v2043
        %v2108 = vunpack.c.h.b16 %v2043
        %v2109 = vunpack.c.l.b16 %v2044
        %v2110 = vunpack.c.h.b16 %v2044
        %v2111 = vpack.c.b16 %v2087, %v2079
        %v2112 = vpack.c.b16 %v2088, %v2080
        %v2113 = vpack.c.b16 %v2089, %v2081
        %v2114 = vpack.c.b16 %v2090, %v2082
        %v2115 = vpack.c.b16 %v2091, %v2083
        %v2116 = vpack.c.b16 %v2092, %v2084
        %v2117 = vpack.c.b16 %v2093, %v2085
        %v2118 = vpack.c.b16 %v2094, %v2086
        %v2119 = vpack.c.b16 %v2103, %v2095
        %v2120 = vpack.c.b16 %v2104, %v2096
        %v2121 = vpack.c.b16 %v2105, %v2097
        %v2122 = vpack.c.b16 %v2106, %v2098
        %v2123 = vpack.c.b16 %v2107, %v2099
        %v2124 = vpack.c.b16 %v2108, %v2100
        %v2125 = vpack.c.b16 %v2109, %v2101
        %v2126 = vpack.c.b16 %v2110, %v2102
        %v2144 = vsel %vm1068, %v2028, 0
        %2146 = vmatpush.bf16.msra.mxu0 0
        %2147 = vmatpush.bf16.msra.mxu0 0
        %2148 = vmatpush.bf16.msra.mxu0 0
        %2149 = vmatpush.bf16.msra.mxu0 0
        %2150 = vmatpush.bf16.msra.mxu0 0
        %2151 = vmatpush.bf16.msra.mxu0 0
        %2152 = vmatpush.bf16.msra.mxu0 %v2119
        %2153 = vmatpush.bf16.msra.mxu0 %v2111
        %2154 = vmatmul.bf16.gmra.mxu0 %v2144
        %v2155 = vpop.f32.mrf.mxu0
        %v2156 = vadd.f32 %v2047, %v2155
        %v2157 = vpop.f32.mrf.mxu0
        %2158 = vdwg.mxu0
        %2159 = vmatpush.bf16.msra.mxu0 0
        %2160 = vmatpush.bf16.msra.mxu0 0
        %2161 = vmatpush.bf16.msra.mxu0 0
        %2162 = vmatpush.bf16.msra.mxu0 0
        %2163 = vmatpush.bf16.msra.mxu0 0
        %2164 = vmatpush.bf16.msra.mxu0 0
        %2165 = vmatpush.bf16.msra.mxu0 %v2120
        %2166 = vmatpush.bf16.msra.mxu0 %v2112
        %2167 = vmatmul.bf16.gmra.mxu0 %v2144
        %v2168 = vpop.f32.mrf.mxu0
        %v2169 = vadd.f32 %v2048, %v2168
        %v2170 = vpop.f32.mrf.mxu0
        %2171 = vdwg.mxu0
        %2172 = vmatpush.bf16.msra.mxu0 0
        %2173 = vmatpush.bf16.msra.mxu0 0
        %2174 = vmatpush.bf16.msra.mxu0 0
        %2175 = vmatpush.bf16.msra.mxu0 0
        %2176 = vmatpush.bf16.msra.mxu0 0
        %2177 = vmatpush.bf16.msra.mxu0 0
        %2178 = vmatpush.bf16.msra.mxu0 %v2121
        %2179 = vmatpush.bf16.msra.mxu0 %v2113
        %2180 = vmatmul.bf16.gmra.mxu0 %v2144
        %v2181 = vpop.f32.mrf.mxu0
        %v2182 = vadd.f32 %v2049, %v2181
        %v2183 = vpop.f32.mrf.mxu0
        %2184 = vdwg.mxu0
        %2185 = vmatpush.bf16.msra.mxu0 0
        %2186 = vmatpush.bf16.msra.mxu0 0
        %2187 = vmatpush.bf16.msra.mxu0 0
        %2188 = vmatpush.bf16.msra.mxu0 0
        %2189 = vmatpush.bf16.msra.mxu0 0
        %2190 = vmatpush.bf16.msra.mxu0 0
        %2191 = vmatpush.bf16.msra.mxu0 %v2122
        %2192 = vmatpush.bf16.msra.mxu0 %v2114
        %2193 = vmatmul.bf16.gmra.mxu0 %v2144
        %v2194 = vpop.f32.mrf.mxu0
        %v2195 = vadd.f32 %v2050, %v2194
        %v2196 = vpop.f32.mrf.mxu0
        %2197 = vdwg.mxu0
        %2198 = vmatpush.bf16.msra.mxu0 0
        %2199 = vmatpush.bf16.msra.mxu0 0
        %2200 = vmatpush.bf16.msra.mxu0 0
        %2201 = vmatpush.bf16.msra.mxu0 0
        %2202 = vmatpush.bf16.msra.mxu0 0
        %2203 = vmatpush.bf16.msra.mxu0 0
        %2204 = vmatpush.bf16.msra.mxu0 %v2123
        %2205 = vmatpush.bf16.msra.mxu0 %v2115
        %2206 = vmatmul.bf16.gmra.mxu0 %v2144
        %v2207 = vpop.f32.mrf.mxu0
        %v2208 = vadd.f32 %v2051, %v2207
        %v2209 = vpop.f32.mrf.mxu0
        %2210 = vdwg.mxu0
        %2211 = vmatpush.bf16.msra.mxu0 0
        %2212 = vmatpush.bf16.msra.mxu0 0
        %2213 = vmatpush.bf16.msra.mxu0 0
        %2214 = vmatpush.bf16.msra.mxu0 0
        %2215 = vmatpush.bf16.msra.mxu0 0
        %2216 = vmatpush.bf16.msra.mxu0 0
        %2217 = vmatpush.bf16.msra.mxu0 %v2124
        %2218 = vmatpush.bf16.msra.mxu0 %v2116
        %2219 = vmatmul.bf16.gmra.mxu0 %v2144
        %v2220 = vpop.f32.mrf.mxu0
        %v2221 = vadd.f32 %v2052, %v2220
        %v2222 = vpop.f32.mrf.mxu0
        %2223 = vdwg.mxu0
        %2224 = vmatpush.bf16.msra.mxu0 0
        %2225 = vmatpush.bf16.msra.mxu0 0
        %2226 = vmatpush.bf16.msra.mxu0 0
        %2227 = vmatpush.bf16.msra.mxu0 0
        %2228 = vmatpush.bf16.msra.mxu0 0
        %2229 = vmatpush.bf16.msra.mxu0 0
        %2230 = vmatpush.bf16.msra.mxu0 %v2125
        %2231 = vmatpush.bf16.msra.mxu0 %v2117
        %2232 = vmatmul.bf16.gmra.mxu0 %v2144
        %v2233 = vpop.f32.mrf.mxu0
        %v2234 = vadd.f32 %v2053, %v2233
        %v2235 = vpop.f32.mrf.mxu0
        %2236 = vdwg.mxu0
        %2237 = vmatpush.bf16.msra.mxu0 0
        %2238 = vmatpush.bf16.msra.mxu0 0
        %2239 = vmatpush.bf16.msra.mxu0 0
        %2240 = vmatpush.bf16.msra.mxu0 0
        %2241 = vmatpush.bf16.msra.mxu0 0
        %2242 = vmatpush.bf16.msra.mxu0 0
        %2243 = vmatpush.bf16.msra.mxu0 %v2126
        %2244 = vmatpush.bf16.msra.mxu0 %v2118
        %2245 = vmatmul.bf16.gmra.mxu0 %v2144
        %v2246 = vpop.f32.mrf.mxu0
        %v2247 = vadd.f32 %v2054, %v2246
        %v2248 = vpop.f32.mrf.mxu0
        %2249 = vdwg.mxu0
        %v2250 = vpack.c.bf16 %v2025, %v2025
        %v2252 = vsel %vm1068, %v2250, 0
        %2254 = vmatpush.bf16.msra.mxu0 0
        %2255 = vmatpush.bf16.msra.mxu0 0
        %2256 = vmatpush.bf16.msra.mxu0 0
        %2257 = vmatpush.bf16.msra.mxu0 0
        %2258 = vmatpush.bf16.msra.mxu0 0
        %2259 = vmatpush.bf16.msra.mxu0 0
        %2260 = vmatpush.bf16.msra.mxu0 %v2119
        %2261 = vmatpush.bf16.msra.mxu0 %v2111
        %2262 = vmatmul.bf16.gmra.mxu0 %v2252
        %v2263 = vpop.f32.mrf.mxu0
        %v2264 = vadd.f32 %v2047, %v2263
        %v2265 = vpop.f32.mrf.mxu0
        %2266 = vdwg.mxu0
        %2267 = vmatpush.bf16.msra.mxu0 0
        %2268 = vmatpush.bf16.msra.mxu0 0
        %2269 = vmatpush.bf16.msra.mxu0 0
        %2270 = vmatpush.bf16.msra.mxu0 0
        %2271 = vmatpush.bf16.msra.mxu0 0
        %2272 = vmatpush.bf16.msra.mxu0 0
        %2273 = vmatpush.bf16.msra.mxu0 %v2120
        %2274 = vmatpush.bf16.msra.mxu0 %v2112
        %2275 = vmatmul.bf16.gmra.mxu0 %v2252
        %v2276 = vpop.f32.mrf.mxu0
        %v2277 = vadd.f32 %v2048, %v2276
        %v2278 = vpop.f32.mrf.mxu0
        %2279 = vdwg.mxu0
        %2280 = vmatpush.bf16.msra.mxu0 0
        %2281 = vmatpush.bf16.msra.mxu0 0
        %2282 = vmatpush.bf16.msra.mxu0 0
        %2283 = vmatpush.bf16.msra.mxu0 0
        %2284 = vmatpush.bf16.msra.mxu0 0
        %2285 = vmatpush.bf16.msra.mxu0 0
        %2286 = vmatpush.bf16.msra.mxu0 %v2121
        %2287 = vmatpush.bf16.msra.mxu0 %v2113
        %2288 = vmatmul.bf16.gmra.mxu0 %v2252
        %v2289 = vpop.f32.mrf.mxu0
        %v2290 = vadd.f32 %v2049, %v2289
        %v2291 = vpop.f32.mrf.mxu0
        %2292 = vdwg.mxu0
        %2293 = vmatpush.bf16.msra.mxu0 0
        %2294 = vmatpush.bf16.msra.mxu0 0
        %2295 = vmatpush.bf16.msra.mxu0 0
        %2296 = vmatpush.bf16.msra.mxu0 0
        %2297 = vmatpush.bf16.msra.mxu0 0
        %2298 = vmatpush.bf16.msra.mxu0 0
        %2299 = vmatpush.bf16.msra.mxu0 %v2122
        %2300 = vmatpush.bf16.msra.mxu0 %v2114
        %2301 = vmatmul.bf16.gmra.mxu0 %v2252
        %v2302 = vpop.f32.mrf.mxu0
        %v2303 = vadd.f32 %v2050, %v2302
        %v2304 = vpop.f32.mrf.mxu0
        %2305 = vdwg.mxu0
        %2306 = vmatpush.bf16.msra.mxu0 0
        %2307 = vmatpush.bf16.msra.mxu0 0
        %2308 = vmatpush.bf16.msra.mxu0 0
        %2309 = vmatpush.bf16.msra.mxu0 0
        %2310 = vmatpush.bf16.msra.mxu0 0
        %2311 = vmatpush.bf16.msra.mxu0 0
        %2312 = vmatpush.bf16.msra.mxu0 %v2123
        %2313 = vmatpush.bf16.msra.mxu0 %v2115
        %2314 = vmatmul.bf16.gmra.mxu0 %v2252
        %v2315 = vpop.f32.mrf.mxu0
        %v2316 = vadd.f32 %v2051, %v2315
        %v2317 = vpop.f32.mrf.mxu0
        %2318 = vdwg.mxu0
        %2319 = vmatpush.bf16.msra.mxu0 0
        %2320 = vmatpush.bf16.msra.mxu0 0
        %2321 = vmatpush.bf16.msra.mxu0 0
        %2322 = vmatpush.bf16.msra.mxu0 0
        %2323 = vmatpush.bf16.msra.mxu0 0
        %2324 = vmatpush.bf16.msra.mxu0 0
        %2325 = vmatpush.bf16.msra.mxu0 %v2124
        %2326 = vmatpush.bf16.msra.mxu0 %v2116
        %2327 = vmatmul.bf16.gmra.mxu0 %v2252
        %v2328 = vpop.f32.mrf.mxu0
        %v2329 = vadd.f32 %v2052, %v2328
        %v2330 = vpop.f32.mrf.mxu0
        %2331 = vdwg.mxu0
        %2332 = vmatpush.bf16.msra.mxu0 0
        %2333 = vmatpush.bf16.msra.mxu0 0
        %2334 = vmatpush.bf16.msra.mxu0 0
        %2335 = vmatpush.bf16.msra.mxu0 0
        %2336 = vmatpush.bf16.msra.mxu0 0
        %2337 = vmatpush.bf16.msra.mxu0 0
        %2338 = vmatpush.bf16.msra.mxu0 %v2125
        %2339 = vmatpush.bf16.msra.mxu0 %v2117
        %2340 = vmatmul.bf16.gmra.mxu0 %v2252
        %v2341 = vpop.f32.mrf.mxu0
        %v2342 = vadd.f32 %v2053, %v2341
        %v2343 = vpop.f32.mrf.mxu0
        %2344 = vdwg.mxu0
        %2345 = vmatpush.bf16.msra.mxu0 0
        %2346 = vmatpush.bf16.msra.mxu0 0
        %2347 = vmatpush.bf16.msra.mxu0 0
        %2348 = vmatpush.bf16.msra.mxu0 0
        %2349 = vmatpush.bf16.msra.mxu0 0
        %2350 = vmatpush.bf16.msra.mxu0 0
        %2351 = vmatpush.bf16.msra.mxu0 %v2126
        %2352 = vmatpush.bf16.msra.mxu0 %v2118
        %2353 = vmatmul.bf16.gmra.mxu0 %v2252
        %v2354 = vpop.f32.mrf.mxu0
        %v2355 = vadd.f32 %v2054, %v2354
        %v2356 = vpop.f32.mrf.mxu0
        %2357 = vdwg.mxu0
        %v2358 = vpack.c.bf16 %v2169, %v2156
        %v2359 = vpack.c.bf16 %v2195, %v2182
        %v2360 = vpack.c.bf16 %v2221, %v2208
        %v2361 = vpack.c.bf16 %v2247, %v2234
        %v2366 = vrot.slane %v2358, 3
        %v2367 = vrot.slane %v2359, 6
        %v2368 = vrot.slane %v2359, 1
        %v2369 = vrot.slane %v2360, 4
        %v2370 = vrot.slane %v2360, 7
        %v2371 = vrot.slane %v2361, 2
        %v2372 = vrot.slane %v2361, 5
        %vm2373 = vcmask 1040384
        %v2376 = vsel %vm2373, %v2358, %v2366
        %vm2377 = vcmask 1042434
        %v2380 = vsel %vm2377, %v2367, %v2368
        %vm2381 = vcmask 1041408
        %v2382 = vsel %vm2381, %v2376, %v2380
        %vm2383 = vcmask 1044484
        %v2386 = vsel %vm2383, %v2369, %v2370
        %vm2387 = vcmask 1046534
        %v2390 = vsel %vm2387, %v2371, %v2372
        %vm2391 = vcmask 1045508
        %v2392 = vsel %vm2391, %v2386, %v2390
        %vm2393 = vcmask 1043456
        %v2394 = vsel %vm2393, %v2382, %v2392
        %2396 = vst [vmem:[#allocation2] sm:$0xff] %v2394
        %v2397 = vpack.c.bf16 %v2277, %v2264
        %v2398 = vpack.c.bf16 %v2303, %v2290
        %v2399 = vpack.c.bf16 %v2329, %v2316
        %v2400 = vpack.c.bf16 %v2355, %v2342
        %v2405 = vrot.slane %v2397, 3
        %v2406 = vrot.slane %v2398, 6
        %v2407 = vrot.slane %v2398, 1
        %v2408 = vrot.slane %v2399, 4
        %v2409 = vrot.slane %v2399, 7
        %v2410 = vrot.slane %v2400, 2
        %v2411 = vrot.slane %v2400, 5
        %v2414 = vsel %vm2373, %v2397, %v2405
        %v2417 = vsel %vm2377, %v2406, %v2407
        %v2418 = vsel %vm2381, %v2414, %v2417
        %v2421 = vsel %vm2383, %v2408, %v2409
        %v2424 = vsel %vm2387, %v2410, %v2411
        %v2425 = vsel %vm2391, %v2421, %v2424
        %v2426 = vsel %vm2393, %v2418, %v2425
        %2428 = vst [vmem:[#allocation2 + $0x8] sm:$0xff] %v2426
        %2429 = vst [vmem:[#allocation3] sm:$0xff] 0.0
      $region100: #{siamese_forward.1} parent=95 // pred_fallthru
        _
      %s2430 = smul.u32 %s32, 512
      %s2431 = sshra.s32 %s2430, 7
      %s2432 = sand.u32 %s2430, 127
      %s2433 = scalar_lea.vmem [#allocation2], %s2431
      %v2434 = vld [vmem:[%s2433] sm:$0xf]
      %v2435 = vld [vmem:[#allocation3] sm:$0xff]
      %v2436 = vld [vmem:[%s593] sm:$0xff]
      %v2437 = vld [vmem:[%s593 + $0x8] sm:$0xff]
      %v2438 = vld [vmem:[%s593 + $0x10] sm:$0xff]
      %v2439 = vld [vmem:[%s593 + $0x18] sm:$0xff]
      %v2440 = vld [vmem:[%s593 + $0x20] sm:$0xff]
      %v2441 = vld [vmem:[%s593 + $0x28] sm:$0xff]
      %v2442 = vld [vmem:[%s593 + $0x30] sm:$0xff]
      %v2443 = vld [vmem:[%s593 + $0x38] sm:$0xff]
      %v2444 = vld [vmem:[%s593 + $0x40] sm:$0xff]
      %v2445 = vld [vmem:[%s593 + $0x48] sm:$0xff]
      %v2446 = vld [vmem:[%s593 + $0x50] sm:$0xff]
      %v2447 = vld [vmem:[%s593 + $0x58] sm:$0xff]
      %v2448 = vld [vmem:[%s593 + $0x60] sm:$0xff]
      %v2449 = vld [vmem:[%s593 + $0x68] sm:$0xff]
      %v2450 = vld [vmem:[%s593 + $0x70] sm:$0xff]
      %v2451 = vld [vmem:[%s593 + $0x78] sm:$0xff]
      %v2452 = vld [vmem:[%s593 + $0x80] sm:$0xff]
      %v2453 = vld [vmem:[%s593 + $0x88] sm:$0xff]
      %v2454 = vld [vmem:[%s593 + $0x90] sm:$0xff]
      %v2455 = vld [vmem:[%s593 + $0x98] sm:$0xff]
      %v2456 = vld [vmem:[%s593 + $0xa0] sm:$0xff]
      %v2457 = vld [vmem:[%s593 + $0xa8] sm:$0xff]
      %v2458 = vld [vmem:[%s593 + $0xb0] sm:$0xff]
      %v2459 = vld [vmem:[%s593 + $0xb8] sm:$0xff]
      %v2460 = vld [vmem:[%s593 + $0xc0] sm:$0xff]
      %v2461 = vld [vmem:[%s593 + $0xc8] sm:$0xff]
      %v2462 = vld [vmem:[%s593 + $0xd0] sm:$0xff]
      %v2463 = vld [vmem:[%s593 + $0xd8] sm:$0xff]
      %v2464 = vld [vmem:[%s593 + $0xe0] sm:$0xff]
      %v2465 = vld [vmem:[%s593 + $0xe8] sm:$0xff]
      %v2466 = vld [vmem:[%s593 + $0xf0] sm:$0xff]
      %v2467 = vld [vmem:[%s593 + $0xf8] sm:$0xff]
      %v2468 = vld [vmem:[%s593 + $0x100] sm:$0xff]
      %v2469 = vld [vmem:[%s593 + $0x108] sm:$0xff]
      %v2470 = vld [vmem:[%s593 + $0x110] sm:$0xff]
      %v2471 = vld [vmem:[%s593 + $0x118] sm:$0xff]
      %v2472 = vld [vmem:[%s593 + $0x120] sm:$0xff]
      %v2473 = vld [vmem:[%s593 + $0x128] sm:$0xff]
      %v2474 = vld [vmem:[%s593 + $0x130] sm:$0xff]
      %v2475 = vld [vmem:[%s593 + $0x138] sm:$0xff]
      %v2476 = vld [vmem:[%s593 + $0x140] sm:$0xff]
      %v2477 = vld [vmem:[%s593 + $0x148] sm:$0xff]
      %v2478 = vld [vmem:[%s593 + $0x150] sm:$0xff]
      %v2479 = vld [vmem:[%s593 + $0x158] sm:$0xff]
      %v2480 = vld [vmem:[%s593 + $0x160] sm:$0xff]
      %v2481 = vld [vmem:[%s593 + $0x168] sm:$0xff]
      %v2482 = vld [vmem:[%s593 + $0x170] sm:$0xff]
      %v2483 = vld [vmem:[%s593 + $0x178] sm:$0xff]
      %v2484 = vld [vmem:[%s593 + $0x180] sm:$0xff]
      %v2485 = vld [vmem:[%s593 + $0x188] sm:$0xff]
      %v2486 = vld [vmem:[%s593 + $0x190] sm:$0xff]
      %v2487 = vld [vmem:[%s593 + $0x198] sm:$0xff]
      %v2488 = vld [vmem:[%s593 + $0x1a0] sm:$0xff]
      %v2489 = vld [vmem:[%s593 + $0x1a8] sm:$0xff]
      %v2490 = vld [vmem:[%s593 + $0x1b0] sm:$0xff]
      %v2491 = vld [vmem:[%s593 + $0x1b8] sm:$0xff]
      %v2492 = vld [vmem:[%s593 + $0x1c0] sm:$0xff]
      %v2493 = vld [vmem:[%s593 + $0x1c8] sm:$0xff]
      %v2494 = vld [vmem:[%s593 + $0x1d0] sm:$0xff]
      %v2495 = vld [vmem:[%s593 + $0x1d8] sm:$0xff]
      %v2496 = vld [vmem:[%s593 + $0x1e0] sm:$0xff]
      %v2497 = vld [vmem:[%s593 + $0x1e8] sm:$0xff]
      %v2498 = vld [vmem:[%s593 + $0x1f0] sm:$0xff]
      %v2499 = vld [vmem:[%s593 + $0x1f8] sm:$0xff]
      %v2500 = vld [vmem:[%s593 + $0x200] sm:$0xff]
      %v2501 = vld [vmem:[%s593 + $0x208] sm:$0xff]
      %v2502 = vld [vmem:[%s593 + $0x210] sm:$0xff]
      %v2503 = vld [vmem:[%s593 + $0x218] sm:$0xff]
      %v2504 = vld [vmem:[%s593 + $0x220] sm:$0xff]
      %v2505 = vld [vmem:[%s593 + $0x228] sm:$0xff]
      %v2506 = vld [vmem:[%s593 + $0x230] sm:$0xff]
      %v2507 = vld [vmem:[%s593 + $0x238] sm:$0xff]
      %v2508 = vld [vmem:[%s593 + $0x240] sm:$0xff]
      %v2509 = vld [vmem:[%s593 + $0x248] sm:$0xff]
      %v2510 = vld [vmem:[%s593 + $0x250] sm:$0xff]
      %v2511 = vld [vmem:[%s593 + $0x258] sm:$0xff]
      %v2512 = vld [vmem:[%s593 + $0x260] sm:$0xff]
      %v2513 = vld [vmem:[%s593 + $0x268] sm:$0xff]
      %v2514 = vld [vmem:[%s593 + $0x270] sm:$0xff]
      %v2515 = vld [vmem:[%s593 + $0x278] sm:$0xff]
      %v2516 = vld [vmem:[%s593 + $0x280] sm:$0xff]
      %v2517 = vld [vmem:[%s593 + $0x288] sm:$0xff]
      %v2518 = vld [vmem:[%s593 + $0x290] sm:$0xff]
      %v2519 = vld [vmem:[%s593 + $0x298] sm:$0xff]
      %v2520 = vld [vmem:[%s593 + $0x2a0] sm:$0xff]
      %v2521 = vld [vmem:[%s593 + $0x2a8] sm:$0xff]
      %v2522 = vld [vmem:[%s593 + $0x2b0] sm:$0xff]
      %v2523 = vld [vmem:[%s593 + $0x2b8] sm:$0xff]
      %v2524 = vld [vmem:[%s593 + $0x2c0] sm:$0xff]
      %v2525 = vld [vmem:[%s593 + $0x2c8] sm:$0xff]
      %v2526 = vld [vmem:[%s593 + $0x2d0] sm:$0xff]
      %v2527 = vld [vmem:[%s593 + $0x2d8] sm:$0xff]
      %v2528 = vld [vmem:[%s593 + $0x2e0] sm:$0xff]
      %v2529 = vld [vmem:[%s593 + $0x2e8] sm:$0xff]
      %v2530 = vld [vmem:[%s593 + $0x2f0] sm:$0xff]
      %v2531 = vld [vmem:[%s593 + $0x2f8] sm:$0xff]
      %v2532 = vld [vmem:[%s593 + $0x300] sm:$0xff]
      %v2533 = vld [vmem:[%s593 + $0x308] sm:$0xff]
      %v2534 = vld [vmem:[%s593 + $0x310] sm:$0xff]
      %v2535 = vld [vmem:[%s593 + $0x318] sm:$0xff]
      %v2536 = vld [vmem:[%s593 + $0x320] sm:$0xff]
      %v2537 = vld [vmem:[%s593 + $0x328] sm:$0xff]
      %v2538 = vld [vmem:[%s593 + $0x330] sm:$0xff]
      %v2539 = vld [vmem:[%s593 + $0x338] sm:$0xff]
      %v2540 = vld [vmem:[%s593 + $0x340] sm:$0xff]
      %v2541 = vld [vmem:[%s593 + $0x348] sm:$0xff]
      %v2542 = vld [vmem:[%s593 + $0x350] sm:$0xff]
      %v2543 = vld [vmem:[%s593 + $0x358] sm:$0xff]
      %v2544 = vld [vmem:[%s593 + $0x360] sm:$0xff]
      %v2545 = vld [vmem:[%s593 + $0x368] sm:$0xff]
      %v2546 = vld [vmem:[%s593 + $0x370] sm:$0xff]
      %v2547 = vld [vmem:[%s593 + $0x378] sm:$0xff]
      %v2548 = vld [vmem:[%s593 + $0x380] sm:$0xff]
      %v2549 = vld [vmem:[%s593 + $0x388] sm:$0xff]
      %v2550 = vld [vmem:[%s593 + $0x390] sm:$0xff]
      %v2551 = vld [vmem:[%s593 + $0x398] sm:$0xff]
      %v2552 = vld [vmem:[%s593 + $0x3a0] sm:$0xff]
      %v2553 = vld [vmem:[%s593 + $0x3a8] sm:$0xff]
      %v2554 = vld [vmem:[%s593 + $0x3b0] sm:$0xff]
      %v2555 = vld [vmem:[%s593 + $0x3b8] sm:$0xff]
      %v2556 = vld [vmem:[%s593 + $0x3c0] sm:$0xff]
      %v2557 = vld [vmem:[%s593 + $0x3c8] sm:$0xff]
      %v2558 = vld [vmem:[%s593 + $0x3d0] sm:$0xff]
      %v2559 = vld [vmem:[%s593 + $0x3d8] sm:$0xff]
      %v2560 = vld [vmem:[%s593 + $0x3e0] sm:$0xff]
      %v2561 = vld [vmem:[%s593 + $0x3e8] sm:$0xff]
      %v2562 = vld [vmem:[%s593 + $0x3f0] sm:$0xff]
      %v2563 = vld [vmem:[%s593 + $0x3f8] sm:$0xff]
      %2565 = vst [vmem:[#allocation1] ss:$9 sm:$0xff] %v2434
      %v2566 = vld [vmem:[#allocation1] sm:$0xff]
      %v2567 = vld [vmem:[#allocation1 + $0x9] sm:$0xff]
      %v2568 = vld [vmem:[#allocation1 + $0x12] sm:$0xff]
      %v2569 = vld [vmem:[#allocation1 + $0x1b] sm:$0xff]
      %v2702 = vunpack.c.l.b16 %v2436
      %v2703 = vunpack.c.h.b16 %v2436
      %v2704 = vunpack.c.l.b16 %v2437
      %v2705 = vunpack.c.h.b16 %v2437
      %v2706 = vunpack.c.l.b16 %v2438
      %v2707 = vunpack.c.h.b16 %v2438
      %v2708 = vunpack.c.l.b16 %v2439
      %v2709 = vunpack.c.h.b16 %v2439
      %v2710 = vunpack.c.l.b16 %v2440
      %v2711 = vunpack.c.h.b16 %v2440
      %v2712 = vunpack.c.l.b16 %v2441
      %v2713 = vunpack.c.h.b16 %v2441
      %v2714 = vunpack.c.l.b16 %v2442
      %v2715 = vunpack.c.h.b16 %v2442
      %v2716 = vunpack.c.l.b16 %v2443
      %v2717 = vunpack.c.h.b16 %v2443
      %v2718 = vunpack.c.l.b16 %v2444
      %v2719 = vunpack.c.h.b16 %v2444
      %v2720 = vunpack.c.l.b16 %v2445
      %v2721 = vunpack.c.h.b16 %v2445
      %v2722 = vunpack.c.l.b16 %v2446
      %v2723 = vunpack.c.h.b16 %v2446
      %v2724 = vunpack.c.l.b16 %v2447
      %v2725 = vunpack.c.h.b16 %v2447
      %v2726 = vunpack.c.l.b16 %v2448
      %v2727 = vunpack.c.h.b16 %v2448
      %v2728 = vunpack.c.l.b16 %v2449
      %v2729 = vunpack.c.h.b16 %v2449
      %v2730 = vunpack.c.l.b16 %v2450
      %v2731 = vunpack.c.h.b16 %v2450
      %v2732 = vunpack.c.l.b16 %v2451
      %v2733 = vunpack.c.h.b16 %v2451
      %v2734 = vunpack.c.l.b16 %v2452
      %v2735 = vunpack.c.h.b16 %v2452
      %v2736 = vunpack.c.l.b16 %v2453
      %v2737 = vunpack.c.h.b16 %v2453
      %v2738 = vunpack.c.l.b16 %v2454
      %v2739 = vunpack.c.h.b16 %v2454
      %v2740 = vunpack.c.l.b16 %v2455
      %v2741 = vunpack.c.h.b16 %v2455
      %v2742 = vunpack.c.l.b16 %v2456
      %v2743 = vunpack.c.h.b16 %v2456
      %v2744 = vunpack.c.l.b16 %v2457
      %v2745 = vunpack.c.h.b16 %v2457
      %v2746 = vunpack.c.l.b16 %v2458
      %v2747 = vunpack.c.h.b16 %v2458
      %v2748 = vunpack.c.l.b16 %v2459
      %v2749 = vunpack.c.h.b16 %v2459
      %v2750 = vunpack.c.l.b16 %v2460
      %v2751 = vunpack.c.h.b16 %v2460
      %v2752 = vunpack.c.l.b16 %v2461
      %v2753 = vunpack.c.h.b16 %v2461
      %v2754 = vunpack.c.l.b16 %v2462
      %v2755 = vunpack.c.h.b16 %v2462
      %v2756 = vunpack.c.l.b16 %v2463
      %v2757 = vunpack.c.h.b16 %v2463
      %v2758 = vunpack.c.l.b16 %v2464
      %v2759 = vunpack.c.h.b16 %v2464
      %v2760 = vunpack.c.l.b16 %v2465
      %v2761 = vunpack.c.h.b16 %v2465
      %v2762 = vunpack.c.l.b16 %v2466
      %v2763 = vunpack.c.h.b16 %v2466
      %v2764 = vunpack.c.l.b16 %v2467
      %v2765 = vunpack.c.h.b16 %v2467
      %v2766 = vunpack.c.l.b16 %v2468
      %v2767 = vunpack.c.h.b16 %v2468
      %v2768 = vunpack.c.l.b16 %v2469
      %v2769 = vunpack.c.h.b16 %v2469
      %v2770 = vunpack.c.l.b16 %v2470
      %v2771 = vunpack.c.h.b16 %v2470
      %v2772 = vunpack.c.l.b16 %v2471
      %v2773 = vunpack.c.h.b16 %v2471
      %v2774 = vunpack.c.l.b16 %v2472
      %v2775 = vunpack.c.h.b16 %v2472
      %v2776 = vunpack.c.l.b16 %v2473
      %v2777 = vunpack.c.h.b16 %v2473
      %v2778 = vunpack.c.l.b16 %v2474
      %v2779 = vunpack.c.h.b16 %v2474
      %v2780 = vunpack.c.l.b16 %v2475
      %v2781 = vunpack.c.h.b16 %v2475
      %v2782 = vunpack.c.l.b16 %v2476
      %v2783 = vunpack.c.h.b16 %v2476
      %v2784 = vunpack.c.l.b16 %v2477
      %v2785 = vunpack.c.h.b16 %v2477
      %v2786 = vunpack.c.l.b16 %v2478
      %v2787 = vunpack.c.h.b16 %v2478
      %v2788 = vunpack.c.l.b16 %v2479
      %v2789 = vunpack.c.h.b16 %v2479
      %v2790 = vunpack.c.l.b16 %v2480
      %v2791 = vunpack.c.h.b16 %v2480
      %v2792 = vunpack.c.l.b16 %v2481
      %v2793 = vunpack.c.h.b16 %v2481
      %v2794 = vunpack.c.l.b16 %v2482
      %v2795 = vunpack.c.h.b16 %v2482
      %v2796 = vunpack.c.l.b16 %v2483
      %v2797 = vunpack.c.h.b16 %v2483
      %v2798 = vunpack.c.l.b16 %v2484
      %v2799 = vunpack.c.h.b16 %v2484
      %v2800 = vunpack.c.l.b16 %v2485
      %v2801 = vunpack.c.h.b16 %v2485
      %v2802 = vunpack.c.l.b16 %v2486
      %v2803 = vunpack.c.h.b16 %v2486
      %v2804 = vunpack.c.l.b16 %v2487
      %v2805 = vunpack.c.h.b16 %v2487
      %v2806 = vunpack.c.l.b16 %v2488
      %v2807 = vunpack.c.h.b16 %v2488
      %v2808 = vunpack.c.l.b16 %v2489
      %v2809 = vunpack.c.h.b16 %v2489
      %v2810 = vunpack.c.l.b16 %v2490
      %v2811 = vunpack.c.h.b16 %v2490
      %v2812 = vunpack.c.l.b16 %v2491
      %v2813 = vunpack.c.h.b16 %v2491
      %v2814 = vunpack.c.l.b16 %v2492
      %v2815 = vunpack.c.h.b16 %v2492
      %v2816 = vunpack.c.l.b16 %v2493
      %v2817 = vunpack.c.h.b16 %v2493
      %v2818 = vunpack.c.l.b16 %v2494
      %v2819 = vunpack.c.h.b16 %v2494
      %v2820 = vunpack.c.l.b16 %v2495
      %v2821 = vunpack.c.h.b16 %v2495
      %v2822 = vunpack.c.l.b16 %v2496
      %v2823 = vunpack.c.h.b16 %v2496
      %v2824 = vunpack.c.l.b16 %v2497
      %v2825 = vunpack.c.h.b16 %v2497
      %v2826 = vunpack.c.l.b16 %v2498
      %v2827 = vunpack.c.h.b16 %v2498
      %v2828 = vunpack.c.l.b16 %v2499
      %v2829 = vunpack.c.h.b16 %v2499
      %v2830 = vunpack.c.l.b16 %v2500
      %v2831 = vunpack.c.h.b16 %v2500
      %v2832 = vunpack.c.l.b16 %v2501
      %v2833 = vunpack.c.h.b16 %v2501
      %v2834 = vunpack.c.l.b16 %v2502
      %v2835 = vunpack.c.h.b16 %v2502
      %v2836 = vunpack.c.l.b16 %v2503
      %v2837 = vunpack.c.h.b16 %v2503
      %v2838 = vunpack.c.l.b16 %v2504
      %v2839 = vunpack.c.h.b16 %v2504
      %v2840 = vunpack.c.l.b16 %v2505
      %v2841 = vunpack.c.h.b16 %v2505
      %v2842 = vunpack.c.l.b16 %v2506
      %v2843 = vunpack.c.h.b16 %v2506
      %v2844 = vunpack.c.l.b16 %v2507
      %v2845 = vunpack.c.h.b16 %v2507
      %v2846 = vunpack.c.l.b16 %v2508
      %v2847 = vunpack.c.h.b16 %v2508
      %v2848 = vunpack.c.l.b16 %v2509
      %v2849 = vunpack.c.h.b16 %v2509
      %v2850 = vunpack.c.l.b16 %v2510
      %v2851 = vunpack.c.h.b16 %v2510
      %v2852 = vunpack.c.l.b16 %v2511
      %v2853 = vunpack.c.h.b16 %v2511
      %v2854 = vunpack.c.l.b16 %v2512
      %v2855 = vunpack.c.h.b16 %v2512
      %v2856 = vunpack.c.l.b16 %v2513
      %v2857 = vunpack.c.h.b16 %v2513
      %v2858 = vunpack.c.l.b16 %v2514
      %v2859 = vunpack.c.h.b16 %v2514
      %v2860 = vunpack.c.l.b16 %v2515
      %v2861 = vunpack.c.h.b16 %v2515
      %v2862 = vunpack.c.l.b16 %v2516
      %v2863 = vunpack.c.h.b16 %v2516
      %v2864 = vunpack.c.l.b16 %v2517
      %v2865 = vunpack.c.h.b16 %v2517
      %v2866 = vunpack.c.l.b16 %v2518
      %v2867 = vunpack.c.h.b16 %v2518
      %v2868 = vunpack.c.l.b16 %v2519
      %v2869 = vunpack.c.h.b16 %v2519
      %v2870 = vunpack.c.l.b16 %v2520
      %v2871 = vunpack.c.h.b16 %v2520
      %v2872 = vunpack.c.l.b16 %v2521
      %v2873 = vunpack.c.h.b16 %v2521
      %v2874 = vunpack.c.l.b16 %v2522
      %v2875 = vunpack.c.h.b16 %v2522
      %v2876 = vunpack.c.l.b16 %v2523
      %v2877 = vunpack.c.h.b16 %v2523
      %v2878 = vunpack.c.l.b16 %v2524
      %v2879 = vunpack.c.h.b16 %v2524
      %v2880 = vunpack.c.l.b16 %v2525
      %v2881 = vunpack.c.h.b16 %v2525
      %v2882 = vunpack.c.l.b16 %v2526
      %v2883 = vunpack.c.h.b16 %v2526
      %v2884 = vunpack.c.l.b16 %v2527
      %v2885 = vunpack.c.h.b16 %v2527
      %v2886 = vunpack.c.l.b16 %v2528
      %v2887 = vunpack.c.h.b16 %v2528
      %v2888 = vunpack.c.l.b16 %v2529
      %v2889 = vunpack.c.h.b16 %v2529
      %v2890 = vunpack.c.l.b16 %v2530
      %v2891 = vunpack.c.h.b16 %v2530
      %v2892 = vunpack.c.l.b16 %v2531
      %v2893 = vunpack.c.h.b16 %v2531
      %v2894 = vunpack.c.l.b16 %v2532
      %v2895 = vunpack.c.h.b16 %v2532
      %v2896 = vunpack.c.l.b16 %v2533
      %v2897 = vunpack.c.h.b16 %v2533
      %v2898 = vunpack.c.l.b16 %v2534
      %v2899 = vunpack.c.h.b16 %v2534
      %v2900 = vunpack.c.l.b16 %v2535
      %v2901 = vunpack.c.h.b16 %v2535
      %v2902 = vunpack.c.l.b16 %v2536
      %v2903 = vunpack.c.h.b16 %v2536
      %v2904 = vunpack.c.l.b16 %v2537
      %v2905 = vunpack.c.h.b16 %v2537
      %v2906 = vunpack.c.l.b16 %v2538
      %v2907 = vunpack.c.h.b16 %v2538
      %v2908 = vunpack.c.l.b16 %v2539
      %v2909 = vunpack.c.h.b16 %v2539
      %v2910 = vunpack.c.l.b16 %v2540
      %v2911 = vunpack.c.h.b16 %v2540
      %v2912 = vunpack.c.l.b16 %v2541
      %v2913 = vunpack.c.h.b16 %v2541
      %v2914 = vunpack.c.l.b16 %v2542
      %v2915 = vunpack.c.h.b16 %v2542
      %v2916 = vunpack.c.l.b16 %v2543
      %v2917 = vunpack.c.h.b16 %v2543
      %v2918 = vunpack.c.l.b16 %v2544
      %v2919 = vunpack.c.h.b16 %v2544
      %v2920 = vunpack.c.l.b16 %v2545
      %v2921 = vunpack.c.h.b16 %v2545
      %v2922 = vunpack.c.l.b16 %v2546
      %v2923 = vunpack.c.h.b16 %v2546
      %v2924 = vunpack.c.l.b16 %v2547
      %v2925 = vunpack.c.h.b16 %v2547
      %v2926 = vunpack.c.l.b16 %v2548
      %v2927 = vunpack.c.h.b16 %v2548
      %v2928 = vunpack.c.l.b16 %v2549
      %v2929 = vunpack.c.h.b16 %v2549
      %v2930 = vunpack.c.l.b16 %v2550
      %v2931 = vunpack.c.h.b16 %v2550
      %v2932 = vunpack.c.l.b16 %v2551
      %v2933 = vunpack.c.h.b16 %v2551
      %v2934 = vunpack.c.l.b16 %v2552
      %v2935 = vunpack.c.h.b16 %v2552
      %v2936 = vunpack.c.l.b16 %v2553
      %v2937 = vunpack.c.h.b16 %v2553
      %v2938 = vunpack.c.l.b16 %v2554
      %v2939 = vunpack.c.h.b16 %v2554
      %v2940 = vunpack.c.l.b16 %v2555
      %v2941 = vunpack.c.h.b16 %v2555
      %v2942 = vunpack.c.l.b16 %v2556
      %v2943 = vunpack.c.h.b16 %v2556
      %v2944 = vunpack.c.l.b16 %v2557
      %v2945 = vunpack.c.h.b16 %v2557
      %v2946 = vunpack.c.l.b16 %v2558
      %v2947 = vunpack.c.h.b16 %v2558
      %v2948 = vunpack.c.l.b16 %v2559
      %v2949 = vunpack.c.h.b16 %v2559
      %v2950 = vunpack.c.l.b16 %v2560
      %v2951 = vunpack.c.h.b16 %v2560
      %v2952 = vunpack.c.l.b16 %v2561
      %v2953 = vunpack.c.h.b16 %v2561
      %v2954 = vunpack.c.l.b16 %v2562
      %v2955 = vunpack.c.h.b16 %v2562
      %v2956 = vunpack.c.l.b16 %v2563
      %v2957 = vunpack.c.h.b16 %v2563
      %v2958 = vpack.c.b16 %v2706, %v2702
      %v2959 = vpack.c.b16 %v2707, %v2703
      %v2960 = vpack.c.b16 %v2708, %v2704
      %v2961 = vpack.c.b16 %v2709, %v2705
      %v2962 = vpack.c.b16 %v2714, %v2710
      %v2963 = vpack.c.b16 %v2715, %v2711
      %v2964 = vpack.c.b16 %v2716, %v2712
      %v2965 = vpack.c.b16 %v2717, %v2713
      %v2966 = vpack.c.b16 %v2722, %v2718
      %v2967 = vpack.c.b16 %v2723, %v2719
      %v2968 = vpack.c.b16 %v2724, %v2720
      %v2969 = vpack.c.b16 %v2725, %v2721
      %v2970 = vpack.c.b16 %v2730, %v2726
      %v2971 = vpack.c.b16 %v2731, %v2727
      %v2972 = vpack.c.b16 %v2732, %v2728
      %v2973 = vpack.c.b16 %v2733, %v2729
      %v2974 = vpack.c.b16 %v2738, %v2734
      %v2975 = vpack.c.b16 %v2739, %v2735
      %v2976 = vpack.c.b16 %v2740, %v2736
      %v2977 = vpack.c.b16 %v2741, %v2737
      %v2978 = vpack.c.b16 %v2746, %v2742
      %v2979 = vpack.c.b16 %v2747, %v2743
      %v2980 = vpack.c.b16 %v2748, %v2744
      %v2981 = vpack.c.b16 %v2749, %v2745
      %v2982 = vpack.c.b16 %v2754, %v2750
      %v2983 = vpack.c.b16 %v2755, %v2751
      %v2984 = vpack.c.b16 %v2756, %v2752
      %v2985 = vpack.c.b16 %v2757, %v2753
      %v2986 = vpack.c.b16 %v2762, %v2758
      %v2987 = vpack.c.b16 %v2763, %v2759
      %v2988 = vpack.c.b16 %v2764, %v2760
      %v2989 = vpack.c.b16 %v2765, %v2761
      %v2990 = vpack.c.b16 %v2770, %v2766
      %v2991 = vpack.c.b16 %v2771, %v2767
      %v2992 = vpack.c.b16 %v2772, %v2768
      %v2993 = vpack.c.b16 %v2773, %v2769
      %v2994 = vpack.c.b16 %v2778, %v2774
      %v2995 = vpack.c.b16 %v2779, %v2775
      %v2996 = vpack.c.b16 %v2780, %v2776
      %v2997 = vpack.c.b16 %v2781, %v2777
      %v2998 = vpack.c.b16 %v2786, %v2782
      %v2999 = vpack.c.b16 %v2787, %v2783
      %v3000 = vpack.c.b16 %v2788, %v2784
      %v3001 = vpack.c.b16 %v2789, %v2785
      %v3002 = vpack.c.b16 %v2794, %v2790
      %v3003 = vpack.c.b16 %v2795, %v2791
      %v3004 = vpack.c.b16 %v2796, %v2792
      %v3005 = vpack.c.b16 %v2797, %v2793
      %v3006 = vpack.c.b16 %v2802, %v2798
      %v3007 = vpack.c.b16 %v2803, %v2799
      %v3008 = vpack.c.b16 %v2804, %v2800
      %v3009 = vpack.c.b16 %v2805, %v2801
      %v3010 = vpack.c.b16 %v2810, %v2806
      %v3011 = vpack.c.b16 %v2811, %v2807
      %v3012 = vpack.c.b16 %v2812, %v2808
      %v3013 = vpack.c.b16 %v2813, %v2809
      %v3014 = vpack.c.b16 %v2818, %v2814
      %v3015 = vpack.c.b16 %v2819, %v2815
      %v3016 = vpack.c.b16 %v2820, %v2816
      %v3017 = vpack.c.b16 %v2821, %v2817
      %v3018 = vpack.c.b16 %v2826, %v2822
      %v3019 = vpack.c.b16 %v2827, %v2823
      %v3020 = vpack.c.b16 %v2828, %v2824
      %v3021 = vpack.c.b16 %v2829, %v2825
      %v3022 = vpack.c.b16 %v2834, %v2830
      %v3023 = vpack.c.b16 %v2835, %v2831
      %v3024 = vpack.c.b16 %v2836, %v2832
      %v3025 = vpack.c.b16 %v2837, %v2833
      %v3026 = vpack.c.b16 %v2842, %v2838
      %v3027 = vpack.c.b16 %v2843, %v2839
      %v3028 = vpack.c.b16 %v2844, %v2840
      %v3029 = vpack.c.b16 %v2845, %v2841
      %v3030 = vpack.c.b16 %v2850, %v2846
      %v3031 = vpack.c.b16 %v2851, %v2847
      %v3032 = vpack.c.b16 %v2852, %v2848
      %v3033 = vpack.c.b16 %v2853, %v2849
      %v3034 = vpack.c.b16 %v2858, %v2854
      %v3035 = vpack.c.b16 %v2859, %v2855
      %v3036 = vpack.c.b16 %v2860, %v2856
      %v3037 = vpack.c.b16 %v2861, %v2857
      %v3038 = vpack.c.b16 %v2866, %v2862
      %v3039 = vpack.c.b16 %v2867, %v2863
      %v3040 = vpack.c.b16 %v2868, %v2864
      %v3041 = vpack.c.b16 %v2869, %v2865
      %v3042 = vpack.c.b16 %v2874, %v2870
      %v3043 = vpack.c.b16 %v2875, %v2871
      %v3044 = vpack.c.b16 %v2876, %v2872
      %v3045 = vpack.c.b16 %v2877, %v2873
      %v3046 = vpack.c.b16 %v2882, %v2878
      %v3047 = vpack.c.b16 %v2883, %v2879
      %v3048 = vpack.c.b16 %v2884, %v2880
      %v3049 = vpack.c.b16 %v2885, %v2881
      %v3050 = vpack.c.b16 %v2890, %v2886
      %v3051 = vpack.c.b16 %v2891, %v2887
      %v3052 = vpack.c.b16 %v2892, %v2888
      %v3053 = vpack.c.b16 %v2893, %v2889
      %v3054 = vpack.c.b16 %v2898, %v2894
      %v3055 = vpack.c.b16 %v2899, %v2895
      %v3056 = vpack.c.b16 %v2900, %v2896
      %v3057 = vpack.c.b16 %v2901, %v2897
      %v3058 = vpack.c.b16 %v2906, %v2902
      %v3059 = vpack.c.b16 %v2907, %v2903
      %v3060 = vpack.c.b16 %v2908, %v2904
      %v3061 = vpack.c.b16 %v2909, %v2905
      %v3062 = vpack.c.b16 %v2914, %v2910
      %v3063 = vpack.c.b16 %v2915, %v2911
      %v3064 = vpack.c.b16 %v2916, %v2912
      %v3065 = vpack.c.b16 %v2917, %v2913
      %v3066 = vpack.c.b16 %v2922, %v2918
      %v3067 = vpack.c.b16 %v2923, %v2919
      %v3068 = vpack.c.b16 %v2924, %v2920
      %v3069 = vpack.c.b16 %v2925, %v2921
      %v3070 = vpack.c.b16 %v2930, %v2926
      %v3071 = vpack.c.b16 %v2931, %v2927
      %v3072 = vpack.c.b16 %v2932, %v2928
      %v3073 = vpack.c.b16 %v2933, %v2929
      %v3074 = vpack.c.b16 %v2938, %v2934
      %v3075 = vpack.c.b16 %v2939, %v2935
      %v3076 = vpack.c.b16 %v2940, %v2936
      %v3077 = vpack.c.b16 %v2941, %v2937
      %v3078 = vpack.c.b16 %v2946, %v2942
      %v3079 = vpack.c.b16 %v2947, %v2943
      %v3080 = vpack.c.b16 %v2948, %v2944
      %v3081 = vpack.c.b16 %v2949, %v2945
      %v3082 = vpack.c.b16 %v2954, %v2950
      %v3083 = vpack.c.b16 %v2955, %v2951
      %v3084 = vpack.c.b16 %v2956, %v2952
      %v3085 = vpack.c.b16 %v2957, %v2953
      %3214 = vmatpush.bf16.msra.mxu0 %v2986
      %3215 = vmatpush.bf16.msra.mxu0 %v2982
      %3216 = vmatpush.bf16.msra.mxu0 %v2978
      %3217 = vmatpush.bf16.msra.mxu0 %v2974
      %3218 = vmatpush.bf16.msra.mxu0 %v2970
      %3219 = vmatpush.bf16.msra.mxu0 %v2966
      %3220 = vmatpush.bf16.msra.mxu0 %v2962
      %3221 = vmatpush.bf16.msra.mxu0 %v2958
      %3222 = vmatmul.bf16.gmra.mxu0 %v2566
      %v3223 = vpop.f32.mrf.mxu0
      %v3224 = vadd.f32 0.0, %v3223
      %v3225 = vpop.f32.mrf.mxu0
      %3226 = vdwg.mxu0
      %3227 = vmatpush.bf16.msra.mxu0 %v3018
      %3228 = vmatpush.bf16.msra.mxu0 %v3014
      %3229 = vmatpush.bf16.msra.mxu0 %v3010
      %3230 = vmatpush.bf16.msra.mxu0 %v3006
      %3231 = vmatpush.bf16.msra.mxu0 %v3002
      %3232 = vmatpush.bf16.msra.mxu0 %v2998
      %3233 = vmatpush.bf16.msra.mxu0 %v2994
      %3234 = vmatpush.bf16.msra.mxu0 %v2990
      %3235 = vmatmul.bf16.gmra.mxu0 %v2567
      %v3236 = vpop.f32.mrf.mxu0
      %v3237 = vadd.f32 %v3224, %v3236
      %v3238 = vpop.f32.mrf.mxu0
      %3239 = vdwg.mxu0
      %3240 = vmatpush.bf16.msra.mxu0 %v3050
      %3241 = vmatpush.bf16.msra.mxu0 %v3046
      %3242 = vmatpush.bf16.msra.mxu0 %v3042
      %3243 = vmatpush.bf16.msra.mxu0 %v3038
      %3244 = vmatpush.bf16.msra.mxu0 %v3034
      %3245 = vmatpush.bf16.msra.mxu0 %v3030
      %3246 = vmatpush.bf16.msra.mxu0 %v3026
      %3247 = vmatpush.bf16.msra.mxu0 %v3022
      %3248 = vmatmul.bf16.gmra.mxu0 %v2568
      %v3249 = vpop.f32.mrf.mxu0
      %v3250 = vadd.f32 %v3237, %v3249
      %v3251 = vpop.f32.mrf.mxu0
      %3252 = vdwg.mxu0
      %3253 = vmatpush.bf16.msra.mxu0 %v3082
      %3254 = vmatpush.bf16.msra.mxu0 %v3078
      %3255 = vmatpush.bf16.msra.mxu0 %v3074
      %3256 = vmatpush.bf16.msra.mxu0 %v3070
      %3257 = vmatpush.bf16.msra.mxu0 %v3066
      %3258 = vmatpush.bf16.msra.mxu0 %v3062
      %3259 = vmatpush.bf16.msra.mxu0 %v3058
      %3260 = vmatpush.bf16.msra.mxu0 %v3054
      %3261 = vmatmul.bf16.gmra.mxu0 %v2569
      %v3262 = vpop.f32.mrf.mxu0
      %v3263 = vadd.f32 %v3250, %v3262
      %v3264 = vpop.f32.mrf.mxu0
      %3265 = vdwg.mxu0
      %3266 = vmatpush.bf16.msra.mxu0 %v2987
      %3267 = vmatpush.bf16.msra.mxu0 %v2983
      %3268 = vmatpush.bf16.msra.mxu0 %v2979
      %3269 = vmatpush.bf16.msra.mxu0 %v2975
      %3270 = vmatpush.bf16.msra.mxu0 %v2971
      %3271 = vmatpush.bf16.msra.mxu0 %v2967
      %3272 = vmatpush.bf16.msra.mxu0 %v2963
      %3273 = vmatpush.bf16.msra.mxu0 %v2959
      %3274 = vmatmul.bf16.gmra.mxu0 %v2566
      %v3275 = vpop.f32.mrf.mxu0
      %v3276 = vadd.f32 0.0, %v3275
      %v3277 = vpop.f32.mrf.mxu0
      %3278 = vdwg.mxu0
      %3279 = vmatpush.bf16.msra.mxu0 %v3019
      %3280 = vmatpush.bf16.msra.mxu0 %v3015
      %3281 = vmatpush.bf16.msra.mxu0 %v3011
      %3282 = vmatpush.bf16.msra.mxu0 %v3007
      %3283 = vmatpush.bf16.msra.mxu0 %v3003
      %3284 = vmatpush.bf16.msra.mxu0 %v2999
      %3285 = vmatpush.bf16.msra.mxu0 %v2995
      %3286 = vmatpush.bf16.msra.mxu0 %v2991
      %3287 = vmatmul.bf16.gmra.mxu0 %v2567
      %v3288 = vpop.f32.mrf.mxu0
      %v3289 = vadd.f32 %v3276, %v3288
      %v3290 = vpop.f32.mrf.mxu0
      %3291 = vdwg.mxu0
      %3292 = vmatpush.bf16.msra.mxu0 %v3051
      %3293 = vmatpush.bf16.msra.mxu0 %v3047
      %3294 = vmatpush.bf16.msra.mxu0 %v3043
      %3295 = vmatpush.bf16.msra.mxu0 %v3039
      %3296 = vmatpush.bf16.msra.mxu0 %v3035
      %3297 = vmatpush.bf16.msra.mxu0 %v3031
      %3298 = vmatpush.bf16.msra.mxu0 %v3027
      %3299 = vmatpush.bf16.msra.mxu0 %v3023
      %3300 = vmatmul.bf16.gmra.mxu0 %v2568
      %v3301 = vpop.f32.mrf.mxu0
      %v3302 = vadd.f32 %v3289, %v3301
      %v3303 = vpop.f32.mrf.mxu0
      %3304 = vdwg.mxu0
      %3305 = vmatpush.bf16.msra.mxu0 %v3083
      %3306 = vmatpush.bf16.msra.mxu0 %v3079
      %3307 = vmatpush.bf16.msra.mxu0 %v3075
      %3308 = vmatpush.bf16.msra.mxu0 %v3071
      %3309 = vmatpush.bf16.msra.mxu0 %v3067
      %3310 = vmatpush.bf16.msra.mxu0 %v3063
      %3311 = vmatpush.bf16.msra.mxu0 %v3059
      %3312 = vmatpush.bf16.msra.mxu0 %v3055
      %3313 = vmatmul.bf16.gmra.mxu0 %v2569
      %v3314 = vpop.f32.mrf.mxu0
      %v3315 = vadd.f32 %v3302, %v3314
      %v3316 = vpop.f32.mrf.mxu0
      %3317 = vdwg.mxu0
      %3318 = vmatpush.bf16.msra.mxu0 %v2988
      %3319 = vmatpush.bf16.msra.mxu0 %v2984
      %3320 = vmatpush.bf16.msra.mxu0 %v2980
      %3321 = vmatpush.bf16.msra.mxu0 %v2976
      %3322 = vmatpush.bf16.msra.mxu0 %v2972
      %3323 = vmatpush.bf16.msra.mxu0 %v2968
      %3324 = vmatpush.bf16.msra.mxu0 %v2964
      %3325 = vmatpush.bf16.msra.mxu0 %v2960
      %3326 = vmatmul.bf16.gmra.mxu0 %v2566
      %v3327 = vpop.f32.mrf.mxu0
      %v3328 = vadd.f32 0.0, %v3327
      %v3329 = vpop.f32.mrf.mxu0
      %3330 = vdwg.mxu0
      %3331 = vmatpush.bf16.msra.mxu0 %v3020
      %3332 = vmatpush.bf16.msra.mxu0 %v3016
      %3333 = vmatpush.bf16.msra.mxu0 %v3012
      %3334 = vmatpush.bf16.msra.mxu0 %v3008
      %3335 = vmatpush.bf16.msra.mxu0 %v3004
      %3336 = vmatpush.bf16.msra.mxu0 %v3000
      %3337 = vmatpush.bf16.msra.mxu0 %v2996
      %3338 = vmatpush.bf16.msra.mxu0 %v2992
      %3339 = vmatmul.bf16.gmra.mxu0 %v2567
      %v3340 = vpop.f32.mrf.mxu0
      %v3341 = vadd.f32 %v3328, %v3340
      %v3342 = vpop.f32.mrf.mxu0
      %3343 = vdwg.mxu0
      %3344 = vmatpush.bf16.msra.mxu0 %v3052
      %3345 = vmatpush.bf16.msra.mxu0 %v3048
      %3346 = vmatpush.bf16.msra.mxu0 %v3044
      %3347 = vmatpush.bf16.msra.mxu0 %v3040
      %3348 = vmatpush.bf16.msra.mxu0 %v3036
      %3349 = vmatpush.bf16.msra.mxu0 %v3032
      %3350 = vmatpush.bf16.msra.mxu0 %v3028
      %3351 = vmatpush.bf16.msra.mxu0 %v3024
      %3352 = vmatmul.bf16.gmra.mxu0 %v2568
      %v3353 = vpop.f32.mrf.mxu0
      %v3354 = vadd.f32 %v3341, %v3353
      %v3355 = vpop.f32.mrf.mxu0
      %3356 = vdwg.mxu0
      %3357 = vmatpush.bf16.msra.mxu0 %v3084
      %3358 = vmatpush.bf16.msra.mxu0 %v3080
      %3359 = vmatpush.bf16.msra.mxu0 %v3076
      %3360 = vmatpush.bf16.msra.mxu0 %v3072
      %3361 = vmatpush.bf16.msra.mxu0 %v3068
      %3362 = vmatpush.bf16.msra.mxu0 %v3064
      %3363 = vmatpush.bf16.msra.mxu0 %v3060
      %3364 = vmatpush.bf16.msra.mxu0 %v3056
      %3365 = vmatmul.bf16.gmra.mxu0 %v2569
      %v3366 = vpop.f32.mrf.mxu0
      %v3367 = vadd.f32 %v3354, %v3366
      %v3368 = vpop.f32.mrf.mxu0
      %3369 = vdwg.mxu0
      %3370 = vmatpush.bf16.msra.mxu0 %v2989
      %3371 = vmatpush.bf16.msra.mxu0 %v2985
      %3372 = vmatpush.bf16.msra.mxu0 %v2981
      %3373 = vmatpush.bf16.msra.mxu0 %v2977
      %3374 = vmatpush.bf16.msra.mxu0 %v2973
      %3375 = vmatpush.bf16.msra.mxu0 %v2969
      %3376 = vmatpush.bf16.msra.mxu0 %v2965
      %3377 = vmatpush.bf16.msra.mxu0 %v2961
      %3378 = vmatmul.bf16.gmra.mxu0 %v2566
      %v3379 = vpop.f32.mrf.mxu0
      %v3380 = vadd.f32 0.0, %v3379
      %v3381 = vpop.f32.mrf.mxu0
      %3382 = vdwg.mxu0
      %3383 = vmatpush.bf16.msra.mxu0 %v3021
      %3384 = vmatpush.bf16.msra.mxu0 %v3017
      %3385 = vmatpush.bf16.msra.mxu0 %v3013
      %3386 = vmatpush.bf16.msra.mxu0 %v3009
      %3387 = vmatpush.bf16.msra.mxu0 %v3005
      %3388 = vmatpush.bf16.msra.mxu0 %v3001
      %3389 = vmatpush.bf16.msra.mxu0 %v2997
      %3390 = vmatpush.bf16.msra.mxu0 %v2993
      %3391 = vmatmul.bf16.gmra.mxu0 %v2567
      %v3392 = vpop.f32.mrf.mxu0
      %v3393 = vadd.f32 %v3380, %v3392
      %v3394 = vpop.f32.mrf.mxu0
      %3395 = vdwg.mxu0
      %3396 = vmatpush.bf16.msra.mxu0 %v3053
      %3397 = vmatpush.bf16.msra.mxu0 %v3049
      %3398 = vmatpush.bf16.msra.mxu0 %v3045
      %3399 = vmatpush.bf16.msra.mxu0 %v3041
      %3400 = vmatpush.bf16.msra.mxu0 %v3037
      %3401 = vmatpush.bf16.msra.mxu0 %v3033
      %3402 = vmatpush.bf16.msra.mxu0 %v3029
      %3403 = vmatpush.bf16.msra.mxu0 %v3025
      %3404 = vmatmul.bf16.gmra.mxu0 %v2568
      %v3405 = vpop.f32.mrf.mxu0
      %v3406 = vadd.f32 %v3393, %v3405
      %v3407 = vpop.f32.mrf.mxu0
      %3408 = vdwg.mxu0
      %3409 = vmatpush.bf16.msra.mxu0 %v3085
      %3410 = vmatpush.bf16.msra.mxu0 %v3081
      %3411 = vmatpush.bf16.msra.mxu0 %v3077
      %3412 = vmatpush.bf16.msra.mxu0 %v3073
      %3413 = vmatpush.bf16.msra.mxu0 %v3069
      %3414 = vmatpush.bf16.msra.mxu0 %v3065
      %3415 = vmatpush.bf16.msra.mxu0 %v3061
      %3416 = vmatpush.bf16.msra.mxu0 %v3057
      %3417 = vmatmul.bf16.gmra.mxu0 %v2569
      %v3418 = vpop.f32.mrf.mxu0
      %v3419 = vadd.f32 %v3406, %v3418
      %v3420 = vpop.f32.mrf.mxu0
      %3421 = vdwg.mxu0
      %v3426 = vrot.slane %v3315, 6
      %v3427 = vrot.slane %v3367, 4
      %v3428 = vrot.slane %v3419, 2
      %vm3429 = vcmask 1041408
      %v3430 = vsel %vm3429, %v3263, %v3426
      %vm3431 = vcmask 1045508
      %v3432 = vsel %vm3431, %v3427, %v3428
      %vm3433 = vcmask 1043456
      %v3434 = vsel %vm3433, %v3430, %v3432
      %v3436 = vadd.f32 %v2435, %v3434
      %3437 = vst [vmem:[#allocation3] sm:$0xff] %v3436
      %p3438 = scmp.eq.s32.totalorder %s32, 3
      // Predicated region
      $region101: #{siamese_forward.1} parent=95 // pred_check
        %p3439 = pneg %p3438
      $region102: #{siamese_forward.1} parent=95 // pred_check_branch
        %3441 = sbr.rel (%p3439) target = $region104
      $region103: #{siamese_forward.1} parent=95 // pred_region
        %v3442 = vld [vmem:[#allocation3] sm:$0xff]
        %v3443 = vld [vmem:[%s8] sm:$0xf]
        %v3445 = vperm.slane %v3443, 0
        %v3446 = vperm.slane %v3443, 1
        %v3447 = vperm.slane %v3443, 2
        %v3448 = vperm.slane %v3443, 3
        %v3449 = vrot.slane %v3446, 6
        %v3450 = vrot.slane %v3447, 4
        %v3451 = vrot.slane %v3448, 2
        %v3452 = vsel %vm3429, %v3445, %v3449
        %v3453 = vsel %vm3431, %v3450, %v3451
        %v3454 = vsel %vm3433, %v3452, %v3453
        %v3456 = vadd.f32 %v3442, %v3454
        %v3457 = vmax.f32 %v3456, 0.0
        %3459 = vst [vmem:[#allocation1] ss:$4 sm:$0xff] %v3457
        %v3460 = vld.sshfl [vmem:[#allocation1] sm:$0xff pattern:$0x73625140]
        %v3461 = vld.sshfl [vmem:[#allocation1 + $0x8] sm:$0xff pattern:$0x73625140]
        %v3462 = vld.sshfl [vmem:[#allocation1 + $0x10] sm:$0xff pattern:$0x73625140]
        %v3463 = vld.sshfl [vmem:[#allocation1 + $0x18] sm:$0xff pattern:$0x73625140]
        %v3468 = vpack.c.bf16 %v3460, %v3460
        %v3469 = vpack.c.bf16 %v3461, %v3461
        %v3470 = vpack.c.bf16 %v3462, %v3462
        %v3471 = vpack.c.bf16 %v3463, %v3463
        %v3472 = vld [vmem:[%s9] sm:$0xff]
        %v3473 = vld [vmem:[%s9 + $0x8] sm:$0xff]
        %v3474 = vld [vmem:[%s9 + $0x10] sm:$0xff]
        %v3475 = vld [vmem:[%s9 + $0x18] sm:$0xff]
        %v3476 = vld [vmem:[%s9 + $0x20] sm:$0xff]
        %v3477 = vld [vmem:[%s9 + $0x28] sm:$0xff]
        %v3478 = vld [vmem:[%s9 + $0x30] sm:$0xff]
        %v3479 = vld [vmem:[%s9 + $0x38] sm:$0xff]
        %v3480 = vld [vmem:[%s9 + $0x40] sm:$0xff]
        %v3481 = vld [vmem:[%s9 + $0x48] sm:$0xff]
        %v3482 = vld [vmem:[%s9 + $0x50] sm:$0xff]
        %v3483 = vld [vmem:[%s9 + $0x58] sm:$0xff]
        %v3484 = vld [vmem:[%s9 + $0x60] sm:$0xff]
        %v3485 = vld [vmem:[%s9 + $0x68] sm:$0xff]
        %v3486 = vld [vmem:[%s9 + $0x70] sm:$0xff]
        %v3487 = vld [vmem:[%s9 + $0x78] sm:$0xff]
        %v3488 = vld [vmem:[%s9 + $0x80] sm:$0xff]
        %v3489 = vld [vmem:[%s9 + $0x88] sm:$0xff]
        %v3490 = vld [vmem:[%s9 + $0x90] sm:$0xff]
        %v3491 = vld [vmem:[%s9 + $0x98] sm:$0xff]
        %v3492 = vld [vmem:[%s9 + $0xa0] sm:$0xff]
        %v3493 = vld [vmem:[%s9 + $0xa8] sm:$0xff]
        %v3494 = vld [vmem:[%s9 + $0xb0] sm:$0xff]
        %v3495 = vld [vmem:[%s9 + $0xb8] sm:$0xff]
        %v3496 = vld [vmem:[%s9 + $0xc0] sm:$0xff]
        %v3497 = vld [vmem:[%s9 + $0xc8] sm:$0xff]
        %v3498 = vld [vmem:[%s9 + $0xd0] sm:$0xff]
        %v3499 = vld [vmem:[%s9 + $0xd8] sm:$0xff]
        %v3500 = vld [vmem:[%s9 + $0xe0] sm:$0xff]
        %v3501 = vld [vmem:[%s9 + $0xe8] sm:$0xff]
        %v3502 = vld [vmem:[%s9 + $0xf0] sm:$0xff]
        %v3503 = vld [vmem:[%s9 + $0xf8] sm:$0xff]
        %v3504 = vld [vmem:[%s9 + $0x100] sm:$0xff]
        %v3505 = vld [vmem:[%s9 + $0x108] sm:$0xff]
        %v3506 = vld [vmem:[%s9 + $0x110] sm:$0xff]
        %v3507 = vld [vmem:[%s9 + $0x118] sm:$0xff]
        %v3508 = vld [vmem:[%s9 + $0x120] sm:$0xff]
        %v3509 = vld [vmem:[%s9 + $0x128] sm:$0xff]
        %v3510 = vld [vmem:[%s9 + $0x130] sm:$0xff]
        %v3511 = vld [vmem:[%s9 + $0x138] sm:$0xff]
        %v3512 = vld [vmem:[%s9 + $0x140] sm:$0xff]
        %v3513 = vld [vmem:[%s9 + $0x148] sm:$0xff]
        %v3514 = vld [vmem:[%s9 + $0x150] sm:$0xff]
        %v3515 = vld [vmem:[%s9 + $0x158] sm:$0xff]
        %v3516 = vld [vmem:[%s9 + $0x160] sm:$0xff]
        %v3517 = vld [vmem:[%s9 + $0x168] sm:$0xff]
        %v3518 = vld [vmem:[%s9 + $0x170] sm:$0xff]
        %v3519 = vld [vmem:[%s9 + $0x178] sm:$0xff]
        %v3520 = vld [vmem:[%s9 + $0x180] sm:$0xff]
        %v3521 = vld [vmem:[%s9 + $0x188] sm:$0xff]
        %v3522 = vld [vmem:[%s9 + $0x190] sm:$0xff]
        %v3523 = vld [vmem:[%s9 + $0x198] sm:$0xff]
        %v3524 = vld [vmem:[%s9 + $0x1a0] sm:$0xff]
        %v3525 = vld [vmem:[%s9 + $0x1a8] sm:$0xff]
        %v3526 = vld [vmem:[%s9 + $0x1b0] sm:$0xff]
        %v3527 = vld [vmem:[%s9 + $0x1b8] sm:$0xff]
        %v3528 = vld [vmem:[%s9 + $0x1c0] sm:$0xff]
        %v3529 = vld [vmem:[%s9 + $0x1c8] sm:$0xff]
        %v3530 = vld [vmem:[%s9 + $0x1d0] sm:$0xff]
        %v3531 = vld [vmem:[%s9 + $0x1d8] sm:$0xff]
        %v3532 = vld [vmem:[%s9 + $0x1e0] sm:$0xff]
        %v3533 = vld [vmem:[%s9 + $0x1e8] sm:$0xff]
        %v3534 = vld [vmem:[%s9 + $0x1f0] sm:$0xff]
        %v3535 = vld [vmem:[%s9 + $0x1f8] sm:$0xff]
        %v3536 = vld [vmem:[%s10] sm:$0x3]
        %v3538 = vperm.slane %v3536, 0
        %v3539 = vperm.slane %v3536, 1
        %v3606 = vunpack.c.l.b16 %v3472
        %v3607 = vunpack.c.h.b16 %v3472
        %v3608 = vunpack.c.l.b16 %v3473
        %v3609 = vunpack.c.h.b16 %v3473
        %v3610 = vunpack.c.l.b16 %v3474
        %v3611 = vunpack.c.h.b16 %v3474
        %v3612 = vunpack.c.l.b16 %v3475
        %v3613 = vunpack.c.h.b16 %v3475
        %v3614 = vunpack.c.l.b16 %v3476
        %v3615 = vunpack.c.h.b16 %v3476
        %v3616 = vunpack.c.l.b16 %v3477
        %v3617 = vunpack.c.h.b16 %v3477
        %v3618 = vunpack.c.l.b16 %v3478
        %v3619 = vunpack.c.h.b16 %v3478
        %v3620 = vunpack.c.l.b16 %v3479
        %v3621 = vunpack.c.h.b16 %v3479
        %v3622 = vunpack.c.l.b16 %v3480
        %v3623 = vunpack.c.h.b16 %v3480
        %v3624 = vunpack.c.l.b16 %v3481
        %v3625 = vunpack.c.h.b16 %v3481
        %v3626 = vunpack.c.l.b16 %v3482
        %v3627 = vunpack.c.h.b16 %v3482
        %v3628 = vunpack.c.l.b16 %v3483
        %v3629 = vunpack.c.h.b16 %v3483
        %v3630 = vunpack.c.l.b16 %v3484
        %v3631 = vunpack.c.h.b16 %v3484
        %v3632 = vunpack.c.l.b16 %v3485
        %v3633 = vunpack.c.h.b16 %v3485
        %v3634 = vunpack.c.l.b16 %v3486
        %v3635 = vunpack.c.h.b16 %v3486
        %v3636 = vunpack.c.l.b16 %v3487
        %v3637 = vunpack.c.h.b16 %v3487
        %v3638 = vunpack.c.l.b16 %v3488
        %v3639 = vunpack.c.h.b16 %v3488
        %v3640 = vunpack.c.l.b16 %v3489
        %v3641 = vunpack.c.h.b16 %v3489
        %v3642 = vunpack.c.l.b16 %v3490
        %v3643 = vunpack.c.h.b16 %v3490
        %v3644 = vunpack.c.l.b16 %v3491
        %v3645 = vunpack.c.h.b16 %v3491
        %v3646 = vunpack.c.l.b16 %v3492
        %v3647 = vunpack.c.h.b16 %v3492
        %v3648 = vunpack.c.l.b16 %v3493
        %v3649 = vunpack.c.h.b16 %v3493
        %v3650 = vunpack.c.l.b16 %v3494
        %v3651 = vunpack.c.h.b16 %v3494
        %v3652 = vunpack.c.l.b16 %v3495
        %v3653 = vunpack.c.h.b16 %v3495
        %v3654 = vunpack.c.l.b16 %v3496
        %v3655 = vunpack.c.h.b16 %v3496
        %v3656 = vunpack.c.l.b16 %v3497
        %v3657 = vunpack.c.h.b16 %v3497
        %v3658 = vunpack.c.l.b16 %v3498
        %v3659 = vunpack.c.h.b16 %v3498
        %v3660 = vunpack.c.l.b16 %v3499
        %v3661 = vunpack.c.h.b16 %v3499
        %v3662 = vunpack.c.l.b16 %v3500
        %v3663 = vunpack.c.h.b16 %v3500
        %v3664 = vunpack.c.l.b16 %v3501
        %v3665 = vunpack.c.h.b16 %v3501
        %v3666 = vunpack.c.l.b16 %v3502
        %v3667 = vunpack.c.h.b16 %v3502
        %v3668 = vunpack.c.l.b16 %v3503
        %v3669 = vunpack.c.h.b16 %v3503
        %v3670 = vunpack.c.l.b16 %v3504
        %v3671 = vunpack.c.h.b16 %v3504
        %v3672 = vunpack.c.l.b16 %v3505
        %v3673 = vunpack.c.h.b16 %v3505
        %v3674 = vunpack.c.l.b16 %v3506
        %v3675 = vunpack.c.h.b16 %v3506
        %v3676 = vunpack.c.l.b16 %v3507
        %v3677 = vunpack.c.h.b16 %v3507
        %v3678 = vunpack.c.l.b16 %v3508
        %v3679 = vunpack.c.h.b16 %v3508
        %v3680 = vunpack.c.l.b16 %v3509
        %v3681 = vunpack.c.h.b16 %v3509
        %v3682 = vunpack.c.l.b16 %v3510
        %v3683 = vunpack.c.h.b16 %v3510
        %v3684 = vunpack.c.l.b16 %v3511
        %v3685 = vunpack.c.h.b16 %v3511
        %v3686 = vunpack.c.l.b16 %v3512
        %v3687 = vunpack.c.h.b16 %v3512
        %v3688 = vunpack.c.l.b16 %v3513
        %v3689 = vunpack.c.h.b16 %v3513
        %v3690 = vunpack.c.l.b16 %v3514
        %v3691 = vunpack.c.h.b16 %v3514
        %v3692 = vunpack.c.l.b16 %v3515
        %v3693 = vunpack.c.h.b16 %v3515
        %v3694 = vunpack.c.l.b16 %v3516
        %v3695 = vunpack.c.h.b16 %v3516
        %v3696 = vunpack.c.l.b16 %v3517
        %v3697 = vunpack.c.h.b16 %v3517
        %v3698 = vunpack.c.l.b16 %v3518
        %v3699 = vunpack.c.h.b16 %v3518
        %v3700 = vunpack.c.l.b16 %v3519
        %v3701 = vunpack.c.h.b16 %v3519
        %v3702 = vunpack.c.l.b16 %v3520
        %v3703 = vunpack.c.h.b16 %v3520
        %v3704 = vunpack.c.l.b16 %v3521
        %v3705 = vunpack.c.h.b16 %v3521
        %v3706 = vunpack.c.l.b16 %v3522
        %v3707 = vunpack.c.h.b16 %v3522
        %v3708 = vunpack.c.l.b16 %v3523
        %v3709 = vunpack.c.h.b16 %v3523
        %v3710 = vunpack.c.l.b16 %v3524
        %v3711 = vunpack.c.h.b16 %v3524
        %v3712 = vunpack.c.l.b16 %v3525
        %v3713 = vunpack.c.h.b16 %v3525
        %v3714 = vunpack.c.l.b16 %v3526
        %v3715 = vunpack.c.h.b16 %v3526
        %v3716 = vunpack.c.l.b16 %v3527
        %v3717 = vunpack.c.h.b16 %v3527
        %v3718 = vunpack.c.l.b16 %v3528
        %v3719 = vunpack.c.h.b16 %v3528
        %v3720 = vunpack.c.l.b16 %v3529
        %v3721 = vunpack.c.h.b16 %v3529
        %v3722 = vunpack.c.l.b16 %v3530
        %v3723 = vunpack.c.h.b16 %v3530
        %v3724 = vunpack.c.l.b16 %v3531
        %v3725 = vunpack.c.h.b16 %v3531
        %v3726 = vunpack.c.l.b16 %v3532
        %v3727 = vunpack.c.h.b16 %v3532
        %v3728 = vunpack.c.l.b16 %v3533
        %v3729 = vunpack.c.h.b16 %v3533
        %v3730 = vunpack.c.l.b16 %v3534
        %v3731 = vunpack.c.h.b16 %v3534
        %v3732 = vunpack.c.l.b16 %v3535
        %v3733 = vunpack.c.h.b16 %v3535
        %v3734 = vpack.c.b16 %v3608, %v3606
        %v3735 = vpack.c.b16 %v3609, %v3607
        %v3736 = vpack.c.b16 %v3612, %v3610
        %v3737 = vpack.c.b16 %v3613, %v3611
        %v3738 = vpack.c.b16 %v3616, %v3614
        %v3739 = vpack.c.b16 %v3617, %v3615
        %v3740 = vpack.c.b16 %v3620, %v3618
        %v3741 = vpack.c.b16 %v3621, %v3619
        %v3742 = vpack.c.b16 %v3624, %v3622
        %v3743 = vpack.c.b16 %v3625, %v3623
        %v3744 = vpack.c.b16 %v3628, %v3626
        %v3745 = vpack.c.b16 %v3629, %v3627
        %v3746 = vpack.c.b16 %v3632, %v3630
        %v3747 = vpack.c.b16 %v3633, %v3631
        %v3748 = vpack.c.b16 %v3636, %v3634
        %v3749 = vpack.c.b16 %v3637, %v3635
        %v3750 = vpack.c.b16 %v3640, %v3638
        %v3751 = vpack.c.b16 %v3641, %v3639
        %v3752 = vpack.c.b16 %v3644, %v3642
        %v3753 = vpack.c.b16 %v3645, %v3643
        %v3754 = vpack.c.b16 %v3648, %v3646
        %v3755 = vpack.c.b16 %v3649, %v3647
        %v3756 = vpack.c.b16 %v3652, %v3650
        %v3757 = vpack.c.b16 %v3653, %v3651
        %v3758 = vpack.c.b16 %v3656, %v3654
        %v3759 = vpack.c.b16 %v3657, %v3655
        %v3760 = vpack.c.b16 %v3660, %v3658
        %v3761 = vpack.c.b16 %v3661, %v3659
        %v3762 = vpack.c.b16 %v3664, %v3662
        %v3763 = vpack.c.b16 %v3665, %v3663
        %v3764 = vpack.c.b16 %v3668, %v3666
        %v3765 = vpack.c.b16 %v3669, %v3667
        %v3766 = vpack.c.b16 %v3672, %v3670
        %v3767 = vpack.c.b16 %v3673, %v3671
        %v3768 = vpack.c.b16 %v3676, %v3674
        %v3769 = vpack.c.b16 %v3677, %v3675
        %v3770 = vpack.c.b16 %v3680, %v3678
        %v3771 = vpack.c.b16 %v3681, %v3679
        %v3772 = vpack.c.b16 %v3684, %v3682
        %v3773 = vpack.c.b16 %v3685, %v3683
        %v3774 = vpack.c.b16 %v3688, %v3686
        %v3775 = vpack.c.b16 %v3689, %v3687
        %v3776 = vpack.c.b16 %v3692, %v3690
        %v3777 = vpack.c.b16 %v3693, %v3691
        %v3778 = vpack.c.b16 %v3696, %v3694
        %v3779 = vpack.c.b16 %v3697, %v3695
        %v3780 = vpack.c.b16 %v3700, %v3698
        %v3781 = vpack.c.b16 %v3701, %v3699
        %v3782 = vpack.c.b16 %v3704, %v3702
        %v3783 = vpack.c.b16 %v3705, %v3703
        %v3784 = vpack.c.b16 %v3708, %v3706
        %v3785 = vpack.c.b16 %v3709, %v3707
        %v3786 = vpack.c.b16 %v3712, %v3710
        %v3787 = vpack.c.b16 %v3713, %v3711
        %v3788 = vpack.c.b16 %v3716, %v3714
        %v3789 = vpack.c.b16 %v3717, %v3715
        %v3790 = vpack.c.b16 %v3720, %v3718
        %v3791 = vpack.c.b16 %v3721, %v3719
        %v3792 = vpack.c.b16 %v3724, %v3722
        %v3793 = vpack.c.b16 %v3725, %v3723
        %v3794 = vpack.c.b16 %v3728, %v3726
        %v3795 = vpack.c.b16 %v3729, %v3727
        %v3796 = vpack.c.b16 %v3732, %v3730
        %v3797 = vpack.c.b16 %v3733, %v3731
        %3862 = vmatpush.bf16.msra.mxu0 %v3748
        %3863 = vmatpush.bf16.msra.mxu0 %v3746
        %3864 = vmatpush.bf16.msra.mxu0 %v3744
        %3865 = vmatpush.bf16.msra.mxu0 %v3742
        %3866 = vmatpush.bf16.msra.mxu0 %v3740
        %3867 = vmatpush.bf16.msra.mxu0 %v3738
        %3868 = vmatpush.bf16.msra.mxu0 %v3736
        %3869 = vmatpush.bf16.msra.mxu0 %v3734
        %3870 = vmatmul.bf16.gmra.mxu0 %v3468
        %v3871 = vpop.f32.mrf.mxu0
        %v3872 = vadd.f32 %v3538, %v3871
        %v3873 = vpop.f32.mrf.mxu0
        %3874 = vdwg.mxu0
        %3875 = vmatpush.bf16.msra.mxu0 %v3764
        %3876 = vmatpush.bf16.msra.mxu0 %v3762
        %3877 = vmatpush.bf16.msra.mxu0 %v3760
        %3878 = vmatpush.bf16.msra.mxu0 %v3758
        %3879 = vmatpush.bf16.msra.mxu0 %v3756
        %3880 = vmatpush.bf16.msra.mxu0 %v3754
        %3881 = vmatpush.bf16.msra.mxu0 %v3752
        %3882 = vmatpush.bf16.msra.mxu0 %v3750
        %3883 = vmatmul.bf16.gmra.mxu0 %v3469
        %v3884 = vpop.f32.mrf.mxu0
        %v3885 = vadd.f32 %v3872, %v3884
        %v3886 = vpop.f32.mrf.mxu0
        %3887 = vdwg.mxu0
        %3888 = vmatpush.bf16.msra.mxu0 %v3780
        %3889 = vmatpush.bf16.msra.mxu0 %v3778
        %3890 = vmatpush.bf16.msra.mxu0 %v3776
        %3891 = vmatpush.bf16.msra.mxu0 %v3774
        %3892 = vmatpush.bf16.msra.mxu0 %v3772
        %3893 = vmatpush.bf16.msra.mxu0 %v3770
        %3894 = vmatpush.bf16.msra.mxu0 %v3768
        %3895 = vmatpush.bf16.msra.mxu0 %v3766
        %3896 = vmatmul.bf16.gmra.mxu0 %v3470
        %v3897 = vpop.f32.mrf.mxu0
        %v3898 = vadd.f32 %v3885, %v3897
        %v3899 = vpop.f32.mrf.mxu0
        %3900 = vdwg.mxu0
        %3901 = vmatpush.bf16.msra.mxu0 %v3796
        %3902 = vmatpush.bf16.msra.mxu0 %v3794
        %3903 = vmatpush.bf16.msra.mxu0 %v3792
        %3904 = vmatpush.bf16.msra.mxu0 %v3790
        %3905 = vmatpush.bf16.msra.mxu0 %v3788
        %3906 = vmatpush.bf16.msra.mxu0 %v3786
        %3907 = vmatpush.bf16.msra.mxu0 %v3784
        %3908 = vmatpush.bf16.msra.mxu0 %v3782
        %3909 = vmatmul.bf16.gmra.mxu0 %v3471
        %v3910 = vpop.f32.mrf.mxu0
        %v3911 = vadd.f32 %v3898, %v3910
        %v3912 = vpop.f32.mrf.mxu0
        %3913 = vdwg.mxu0
        %3914 = vmatpush.bf16.msra.mxu0 %v3749
        %3915 = vmatpush.bf16.msra.mxu0 %v3747
        %3916 = vmatpush.bf16.msra.mxu0 %v3745
        %3917 = vmatpush.bf16.msra.mxu0 %v3743
        %3918 = vmatpush.bf16.msra.mxu0 %v3741
        %3919 = vmatpush.bf16.msra.mxu0 %v3739
        %3920 = vmatpush.bf16.msra.mxu0 %v3737
        %3921 = vmatpush.bf16.msra.mxu0 %v3735
        %3922 = vmatmul.bf16.gmra.mxu0 %v3468
        %v3923 = vpop.f32.mrf.mxu0
        %v3924 = vadd.f32 %v3539, %v3923
        %v3925 = vpop.f32.mrf.mxu0
        %3926 = vdwg.mxu0
        %3927 = vmatpush.bf16.msra.mxu0 %v3765
        %3928 = vmatpush.bf16.msra.mxu0 %v3763
        %3929 = vmatpush.bf16.msra.mxu0 %v3761
        %3930 = vmatpush.bf16.msra.mxu0 %v3759
        %3931 = vmatpush.bf16.msra.mxu0 %v3757
        %3932 = vmatpush.bf16.msra.mxu0 %v3755
        %3933 = vmatpush.bf16.msra.mxu0 %v3753
        %3934 = vmatpush.bf16.msra.mxu0 %v3751
        %3935 = vmatmul.bf16.gmra.mxu0 %v3469
        %v3936 = vpop.f32.mrf.mxu0
        %v3937 = vadd.f32 %v3924, %v3936
        %v3938 = vpop.f32.mrf.mxu0
        %3939 = vdwg.mxu0
        %3940 = vmatpush.bf16.msra.mxu0 %v3781
        %3941 = vmatpush.bf16.msra.mxu0 %v3779
        %3942 = vmatpush.bf16.msra.mxu0 %v3777
        %3943 = vmatpush.bf16.msra.mxu0 %v3775
        %3944 = vmatpush.bf16.msra.mxu0 %v3773
        %3945 = vmatpush.bf16.msra.mxu0 %v3771
        %3946 = vmatpush.bf16.msra.mxu0 %v3769
        %3947 = vmatpush.bf16.msra.mxu0 %v3767
        %3948 = vmatmul.bf16.gmra.mxu0 %v3470
        %v3949 = vpop.f32.mrf.mxu0
        %v3950 = vadd.f32 %v3937, %v3949
        %v3951 = vpop.f32.mrf.mxu0
        %3952 = vdwg.mxu0
        %3953 = vmatpush.bf16.msra.mxu0 %v3797
        %3954 = vmatpush.bf16.msra.mxu0 %v3795
        %3955 = vmatpush.bf16.msra.mxu0 %v3793
        %3956 = vmatpush.bf16.msra.mxu0 %v3791
        %3957 = vmatpush.bf16.msra.mxu0 %v3789
        %3958 = vmatpush.bf16.msra.mxu0 %v3787
        %3959 = vmatpush.bf16.msra.mxu0 %v3785
        %3960 = vmatpush.bf16.msra.mxu0 %v3783
        %3961 = vmatmul.bf16.gmra.mxu0 %v3471
        %v3962 = vpop.f32.mrf.mxu0
        %v3963 = vadd.f32 %v3950, %v3962
        %v3964 = vpop.f32.mrf.mxu0
        %3965 = vdwg.mxu0
        %v3966 = vmax.f32 %v3911, 0.0
        %v3967 = vmax.f32 %v3963, 0.0
        %v3968 = vpack.c.bf16 %v3966, %v3966
        %v3969 = vpack.c.bf16 %v3967, %v3967
        %v3970 = vld [vmem:[%s11] sm:$0xf]
        %v3971 = vld [vmem:[%s11 + $0x4] sm:$0xf]
        %v3972 = vld [vmem:[%s11 + $0x8] sm:$0xf]
        %v3973 = vld [vmem:[%s11 + $0xc] sm:$0xf]
        %v3974 = vld [vmem:[%s11 + $0x10] sm:$0xf]
        %v3975 = vld [vmem:[%s11 + $0x14] sm:$0xf]
        %v3976 = vld [vmem:[%s11 + $0x18] sm:$0xf]
        %v3977 = vld [vmem:[%s11 + $0x1c] sm:$0xf]
        %v3978 = vld [vmem:[%s11 + $0x20] sm:$0xf]
        %v3979 = vld [vmem:[%s11 + $0x24] sm:$0xf]
        %v3980 = vld [vmem:[%s11 + $0x28] sm:$0xf]
        %v3981 = vld [vmem:[%s11 + $0x2c] sm:$0xf]
        %v3982 = vld [vmem:[%s11 + $0x30] sm:$0xf]
        %v3983 = vld [vmem:[%s11 + $0x34] sm:$0xf]
        %v3984 = vld [vmem:[%s11 + $0x38] sm:$0xf]
        %v3985 = vld [vmem:[%s11 + $0x3c] sm:$0xf]
        %v3986 = vld [vmem:[%s11 + $0x40] sm:$0xf]
        %v3987 = vld [vmem:[%s11 + $0x44] sm:$0xf]
        %v3988 = vld [vmem:[%s11 + $0x48] sm:$0xf]
        %v3989 = vld [vmem:[%s11 + $0x4c] sm:$0xf]
        %v3990 = vld [vmem:[%s11 + $0x50] sm:$0xf]
        %v3991 = vld [vmem:[%s11 + $0x54] sm:$0xf]
        %v3992 = vld [vmem:[%s11 + $0x58] sm:$0xf]
        %v3993 = vld [vmem:[%s11 + $0x5c] sm:$0xf]
        %v3994 = vld [vmem:[%s11 + $0x60] sm:$0xf]
        %v3995 = vld [vmem:[%s11 + $0x64] sm:$0xf]
        %v3996 = vld [vmem:[%s11 + $0x68] sm:$0xf]
        %v3997 = vld [vmem:[%s11 + $0x6c] sm:$0xf]
        %v3998 = vld [vmem:[%s11 + $0x70] sm:$0xf]
        %v3999 = vld [vmem:[%s11 + $0x74] sm:$0xf]
        %v4000 = vld [vmem:[%s11 + $0x78] sm:$0xf]
        %v4001 = vld [vmem:[%s11 + $0x7c] sm:$0xf]
        %v4002 = vld [vmem:[%s12] sm:$0x1]
        %v4004 = vperm.slane %v4002, 0
        %v4038 = vunpack.c.l.b16 %v3970
        %v4039 = vunpack.c.l.b16 %v3971
        %v4040 = vunpack.c.l.b16 %v3972
        %v4041 = vunpack.c.l.b16 %v3973
        %v4042 = vunpack.c.l.b16 %v3974
        %v4043 = vunpack.c.l.b16 %v3975
        %v4044 = vunpack.c.l.b16 %v3976
        %v4045 = vunpack.c.l.b16 %v3977
        %v4046 = vunpack.c.l.b16 %v3978
        %v4047 = vunpack.c.l.b16 %v3979
        %v4048 = vunpack.c.l.b16 %v3980
        %v4049 = vunpack.c.l.b16 %v3981
        %v4050 = vunpack.c.l.b16 %v3982
        %v4051 = vunpack.c.l.b16 %v3983
        %v4052 = vunpack.c.l.b16 %v3984
        %v4053 = vunpack.c.l.b16 %v3985
        %v4054 = vunpack.c.l.b16 %v3986
        %v4055 = vunpack.c.l.b16 %v3987
        %v4056 = vunpack.c.l.b16 %v3988
        %v4057 = vunpack.c.l.b16 %v3989
        %v4058 = vunpack.c.l.b16 %v3990
        %v4059 = vunpack.c.l.b16 %v3991
        %v4060 = vunpack.c.l.b16 %v3992
        %v4061 = vunpack.c.l.b16 %v3993
        %v4062 = vunpack.c.l.b16 %v3994
        %v4063 = vunpack.c.l.b16 %v3995
        %v4064 = vunpack.c.l.b16 %v3996
        %v4065 = vunpack.c.l.b16 %v3997
        %v4066 = vunpack.c.l.b16 %v3998
        %v4067 = vunpack.c.l.b16 %v3999
        %v4068 = vunpack.c.l.b16 %v4000
        %v4069 = vunpack.c.l.b16 %v4001
        %v4070 = vpack.c.b16 %v4039, %v4038
        %v4071 = vpack.c.b16 %v4041, %v4040
        %v4072 = vpack.c.b16 %v4043, %v4042
        %v4073 = vpack.c.b16 %v4045, %v4044
        %v4074 = vpack.c.b16 %v4047, %v4046
        %v4075 = vpack.c.b16 %v4049, %v4048
        %v4076 = vpack.c.b16 %v4051, %v4050
        %v4077 = vpack.c.b16 %v4053, %v4052
        %v4078 = vpack.c.b16 %v4055, %v4054
        %v4079 = vpack.c.b16 %v4057, %v4056
        %v4080 = vpack.c.b16 %v4059, %v4058
        %v4081 = vpack.c.b16 %v4061, %v4060
        %v4082 = vpack.c.b16 %v4063, %v4062
        %v4083 = vpack.c.b16 %v4065, %v4064
        %v4084 = vpack.c.b16 %v4067, %v4066
        %v4085 = vpack.c.b16 %v4069, %v4068
        %4102 = vmatpush.bf16.msra.mxu0 %v4077
        %4103 = vmatpush.bf16.msra.mxu0 %v4076
        %4104 = vmatpush.bf16.msra.mxu0 %v4075
        %4105 = vmatpush.bf16.msra.mxu0 %v4074
        %4106 = vmatpush.bf16.msra.mxu0 %v4073
        %4107 = vmatpush.bf16.msra.mxu0 %v4072
        %4108 = vmatpush.bf16.msra.mxu0 %v4071
        %4109 = vmatpush.bf16.msra.mxu0 %v4070
        %4110 = vmatmul.bf16.gmra.mxu0 %v3968
        %v4111 = vpop.f32.mrf.mxu0
        %v4112 = vadd.f32 %v4004, %v4111
        %v4113 = vpop.f32.mrf.mxu0
        %4114 = vdwg.mxu0
        %4115 = vmatpush.bf16.msra.mxu0 %v4085
        %4116 = vmatpush.bf16.msra.mxu0 %v4084
        %4117 = vmatpush.bf16.msra.mxu0 %v4083
        %4118 = vmatpush.bf16.msra.mxu0 %v4082
        %4119 = vmatpush.bf16.msra.mxu0 %v4081
        %4120 = vmatpush.bf16.msra.mxu0 %v4080
        %4121 = vmatpush.bf16.msra.mxu0 %v4079
        %4122 = vmatpush.bf16.msra.mxu0 %v4078
        %4123 = vmatmul.bf16.gmra.mxu0 %v3969
        %v4124 = vpop.f32.mrf.mxu0
        %v4125 = vadd.f32 %v4112, %v4124
        %v4126 = vpop.f32.mrf.mxu0
        %4127 = vdwg.mxu0
        %v4128 = vmax.f32 %v4125, 0.0
        %v4129 = vpack.c.bf16 %v4128, %v4128
        %v4130 = vld [vmem:[%s13] sm:$0xf]
        %v4131 = vld [vmem:[%s13 + $0x4] sm:$0xf]
        %v4132 = vld [vmem:[%s13 + $0x8] sm:$0xf]
        %v4133 = vld [vmem:[%s13 + $0xc] sm:$0xf]
        %v4134 = vld [vmem:[%s13 + $0x10] sm:$0xf]
        %v4135 = vld [vmem:[%s13 + $0x14] sm:$0xf]
        %v4136 = vld [vmem:[%s13 + $0x18] sm:$0xf]
        %v4137 = vld [vmem:[%s13 + $0x1c] sm:$0xf]
        %v4138 = vld [vmem:[%s13 + $0x20] sm:$0xf]
        %v4139 = vld [vmem:[%s13 + $0x24] sm:$0xf]
        %v4140 = vld [vmem:[%s13 + $0x28] sm:$0xf]
        %v4141 = vld [vmem:[%s13 + $0x2c] sm:$0xf]
        %v4142 = vld [vmem:[%s13 + $0x30] sm:$0xf]
        %v4143 = vld [vmem:[%s13 + $0x34] sm:$0xf]
        %v4144 = vld [vmem:[%s13 + $0x38] sm:$0xf]
        %v4145 = vld [vmem:[%s13 + $0x3c] sm:$0xf]
        %v4146 = vld [vmem:[%s14] sm:$0x1]
        %v4148 = vperm.slane %v4146, 0
        %v4166 = vunpack.c.l.b16 %v4130
        %v4167 = vunpack.c.l.b16 %v4131
        %v4168 = vunpack.c.l.b16 %v4132
        %v4169 = vunpack.c.l.b16 %v4133
        %v4170 = vunpack.c.l.b16 %v4134
        %v4171 = vunpack.c.l.b16 %v4135
        %v4172 = vunpack.c.l.b16 %v4136
        %v4173 = vunpack.c.l.b16 %v4137
        %v4174 = vunpack.c.l.b16 %v4138
        %v4175 = vunpack.c.l.b16 %v4139
        %v4176 = vunpack.c.l.b16 %v4140
        %v4177 = vunpack.c.l.b16 %v4141
        %v4178 = vunpack.c.l.b16 %v4142
        %v4179 = vunpack.c.l.b16 %v4143
        %v4180 = vunpack.c.l.b16 %v4144
        %v4181 = vunpack.c.l.b16 %v4145
        %v4182 = vpack.c.b16 %v4167, %v4166
        %v4183 = vpack.c.b16 %v4169, %v4168
        %v4184 = vpack.c.b16 %v4171, %v4170
        %v4185 = vpack.c.b16 %v4173, %v4172
        %v4186 = vpack.c.b16 %v4175, %v4174
        %v4187 = vpack.c.b16 %v4177, %v4176
        %v4188 = vpack.c.b16 %v4179, %v4178
        %v4189 = vpack.c.b16 %v4181, %v4180
        %4198 = vmatpush.bf16.msra.mxu0 %v4189
        %4199 = vmatpush.bf16.msra.mxu0 %v4188
        %4200 = vmatpush.bf16.msra.mxu0 %v4187
        %4201 = vmatpush.bf16.msra.mxu0 %v4186
        %4202 = vmatpush.bf16.msra.mxu0 %v4185
        %4203 = vmatpush.bf16.msra.mxu0 %v4184
        %4204 = vmatpush.bf16.msra.mxu0 %v4183
        %4205 = vmatpush.bf16.msra.mxu0 %v4182
        %4206 = vmatmul.bf16.gmra.mxu0 %v4129
        %v4207 = vpop.f32.mrf.mxu0
        %v4208 = vadd.f32 %v4148, %v4207
        %v4209 = vpop.f32.mrf.mxu0
        %4210 = vdwg.mxu0
        %v4211 = vmax.f32 %v4208, 0.0
        %v4212 = vpack.c.bf16 %v4211, %v4211
        %v4213 = vld [vmem:[%s15] sm:$0xf]
        %v4214 = vld [vmem:[%s15 + $0x4] sm:$0xf]
        %v4215 = vld [vmem:[%s15 + $0x8] sm:$0xf]
        %v4216 = vld [vmem:[%s15 + $0xc] sm:$0xf]
        %v4217 = vld [vmem:[%s15 + $0x10] sm:$0xf]
        %v4218 = vld [vmem:[%s15 + $0x14] sm:$0xf]
        %v4219 = vld [vmem:[%s15 + $0x18] sm:$0xf]
        %v4220 = vld [vmem:[%s15 + $0x1c] sm:$0xf]
        %v4221 = vld [vmem:[%s16] sm:$0x1]
        %v4223 = vperm.slane %v4221, 0
        %v4233 = vunpack.c.l.b16 %v4213
        %v4234 = vunpack.c.l.b16 %v4214
        %v4235 = vunpack.c.l.b16 %v4215
        %v4236 = vunpack.c.l.b16 %v4216
        %v4237 = vunpack.c.l.b16 %v4217
        %v4238 = vunpack.c.l.b16 %v4218
        %v4239 = vunpack.c.l.b16 %v4219
        %v4240 = vunpack.c.l.b16 %v4220
        %v4241 = vpack.c.b16 %v4234, %v4233
        %v4242 = vpack.c.b16 %v4236, %v4235
        %v4243 = vpack.c.b16 %v4238, %v4237
        %v4244 = vpack.c.b16 %v4240, %v4239
        %vm4249 = vcmask 523264
        %v4251 = vsel %vm4249, %v4212, 0
        %4253 = vmatpush.bf16.msra.mxu0 0
        %4254 = vmatpush.bf16.msra.mxu0 0
        %4255 = vmatpush.bf16.msra.mxu0 0
        %4256 = vmatpush.bf16.msra.mxu0 0
        %4257 = vmatpush.bf16.msra.mxu0 %v4244
        %4258 = vmatpush.bf16.msra.mxu0 %v4243
        %4259 = vmatpush.bf16.msra.mxu0 %v4242
        %4260 = vmatpush.bf16.msra.mxu0 %v4241
        %4261 = vmatmul.bf16.gmra.mxu0 %v4251
        %v4262 = vpop.f32.mrf.mxu0
        %v4263 = vadd.f32 %v4223, %v4262
        %v4264 = vpop.f32.mrf.mxu0
        %4265 = vdwg.mxu0
        %v4266 = vmax.f32 %v4263, 0.0
        %v4267 = vpack.c.bf16 %v4266, %v4266
        %v4268 = vld [vmem:[%s17] sm:$0xf]
        %v4269 = vld [vmem:[%s17 + $0x4] sm:$0xf]
        %v4270 = vld [vmem:[%s17 + $0x8] sm:$0xf]
        %v4271 = vld [vmem:[%s17 + $0xc] sm:$0xf]
        %v4272 = vld [vmem:[#allocation4] sm:$0x1]
        %v4274 = vperm.slane %v4272, 0
        %v4280 = vunpack.c.l.b16 %v4268
        %v4281 = vunpack.c.l.b16 %v4269
        %v4282 = vunpack.c.l.b16 %v4270
        %v4283 = vunpack.c.l.b16 %v4271
        %v4284 = vpack.c.b16 %v4281, %v4280
        %v4285 = vpack.c.b16 %v4283, %v4282
        %vm4288 = vcmask 261120
        %v4290 = vsel %vm4288, %v4267, 0
        %4292 = vmatpush.bf16.msra.mxu0 0
        %4293 = vmatpush.bf16.msra.mxu0 0
        %4294 = vmatpush.bf16.msra.mxu0 0
        %4295 = vmatpush.bf16.msra.mxu0 0
        %4296 = vmatpush.bf16.msra.mxu0 0
        %4297 = vmatpush.bf16.msra.mxu0 0
        %4298 = vmatpush.bf16.msra.mxu0 %v4285
        %4299 = vmatpush.bf16.msra.mxu0 %v4284
        %4300 = vmatmul.bf16.gmra.mxu0 %v4290
        %v4301 = vpop.f32.mrf.mxu0
        %v4302 = vadd.f32 %v4274, %v4301
        %v4303 = vpop.f32.mrf.mxu0
        %4304 = vdwg.mxu0
        %v4305 = vsub.f32 0.0, %v4302
        %v4306 = vmul.f32 %v4305, 1.442695
        %v4307 = vpow.pop %v4306
        %v4308 = vadd.f32 %v4307, 1.0
        %v4309 = vrcp.pop %v4308
        %v4310 = vmul.f32 %v4308, %v4309
        %v4311 = vsub.f32 1.0, %v4310
        %v4312 = vmul.f32 %v4309, %v4311
        %v4313 = vadd.f32 %v4309, %v4312
        %vm4314 = vweird.f32 %v4308
        %vm4315 = vweird.f32 %v4309
        %vm4316 = vmor %vm4314, %vm4315
        %v4317 = vsel %vm4316, %v4309, %v4313
        %v4318 = vand.u32 2147483647, %v4308
        %vm4319 = vcmp.eq.f32.partialorder %v4318, 8.507059e+37
        %v4320 = vand.u32 %v4308, 2147483648
        %v4321 = vor.u32 1.1754944e-38, %v4320
        %v4322 = vsel %vm4319, %v4321, %v4317
        %v4323 = vmul.f32 1.0, %v4322
        %v4324 = vmul.f32 %v4323, 100.0
        %v4325 = vmin.f32 %v4324, 100.0
        %vm4326 = vcmask 1024
        %4327 = vst.msk [vmem:[%s19] sm:$0x3] %vm4326, %v4325
      $region104: #{siamese_forward.1} parent=95 // pred_fallthru
        _
      // Predicated region
      $region105: #{siamese_forward.1} parent=95 // pred_check
        %p4328 = pneg %p449
      $region106: #{siamese_forward.1} parent=95 // pred_check_branch
        %4330 = sbr.rel (%p4328) target = $region108
      $region107: #{siamese_forward.1} parent=95 // pred_region
        _
      $region108: #{siamese_forward.1} parent=95 // pred_fallthru
        _
      // Predicated region
      $region109: #{siamese_forward.1} parent=95 // pred_check
        %p4331 = pneg %p449
      $region110: #{siamese_forward.1} parent=95 // pred_check_branch
        %4333 = sbr.rel (%p4331) target = $region112
      $region111: #{siamese_forward.1} parent=95 // pred_region
        _
      $region112: #{siamese_forward.1} parent=95 // pred_fallthru
        _
    $region96: #{siamese_forward.1} parent=5 // pred_fallthru
      _
    %p4334 = scmp.le.s32.totalorder 2, %s27
    // Predicated region
    $region113: #{siamese_forward.1} parent=5 // pred_check
      %p4335 = pneg %p4334
    $region114: #{siamese_forward.1} parent=5 // pred_check_branch
      %4337 = sbr.rel (%p4335) target = $region116
    $region115: #{siamese_forward.1} parent=5 // pred_region
      %s4338 = ssub.s32 %s27, 2
    $region116: #{siamese_forward.1} parent=5 // pred_fallthru
      _
  $region6: #{siamese_forward.1} parent=0 // loop_footer
    %s31 = sadd.s32 1, %s27
  $region7: #{siamese_forward.1} parent=0 // loop_footer_branch
    %26 = sbr.rel target = $region3
  $region8: #{siamese_forward.1} parent=0 // loop_exit
    _

</llo_original>
